<compile_context>
chip_gen: v5e
topology: v5e:2x2
jax: 0.10.0
libtpu: 0.0.40
codegen_flags: <defaults>
</compile_context>

<pallas_src>
import jax
import jax.numpy as jnp
from jax.experimental import pallas as pl
from jax.experimental.pallas import tpu as pltpu

# ----------------------------------------------------------------------------
# Architecture constants (32x32 input is implied by fc1 = Linear(64*5*5, 120)).
# ----------------------------------------------------------------------------
H = W = 32
CIN, C1, C2 = 3, 64, 64
K = 5
KK = K * K * CIN                 # 75  conv1 contraction depth
P1H = 14                         # pooled1 spatial side (28 -> 14)
NP1 = P1H * P1H                  # 196 dense pooled1 rows
QBLK = 200                       # per-quadrant row block (196 padded to %8==0)
H2 = 10                          # conv2 output side
L2 = (H2 - 1) * P1H + (H2 - 1) + 1   # 136 conv2 rows in dense pooled1 coords
P1W_ROWS = 4 * P1H + L2          # 192 rows of widened pooled1 buffer
WIDE = K * C1                    # 320 grouped conv2 contraction (5 taps x 64)
P2_SPAN = 28 * 4 + 2 * 4 + 1     # 121 rows spanning all valid pool2 positions
HP2 = 5                          # pooled2 spatial side
FC_IN = C2 * HP2 * HP2           # 1600
FC1, FC2, N_CLASSES = 120, 84, 10


# ----------------------------------------------------------------------------
# Conv stage kernel: one grid step per batch element.
# ----------------------------------------------------------------------------
def _conv_kernel(lhs_ref, w1_ref, b1_ref, w2_ref, b2_ref, out_ref,
                 acc1_ref, p1_ref, p1w_ref, acc2_ref):
    # ---- conv1: ONE (800,75)x(75,64) matmul, single store (no RMW) ---------
    acc1_ref[...] = jnp.dot(lhs_ref[0], w1_ref[...],
                            preferred_element_type=jnp.float32)

    # ---- pool1 (2x2/2) = max over the 4 aligned quadrant blocks; +bias+ReLU -
    m = jnp.maximum(
        jnp.maximum(acc1_ref[0:NP1, :],
                    acc1_ref[QBLK:QBLK + NP1, :]),
        jnp.maximum(acc1_ref[2 * QBLK:2 * QBLK + NP1, :],
                    acc1_ref[3 * QBLK:3 * QBLK + NP1, :]))
    p1_ref[...] = jnp.maximum(m + b1_ref[...], 0.0).astype(p1_ref.dtype)

    # ---- widen pooled1: row r holds pooled1 rows r..r+4 in 64-lane blocks ---
    for j in range(K):
        p1w_ref[:, j * C1:(j + 1) * C1] = p1_ref[j:j + P1W_ROWS, :]

    # ---- conv2: 5 grouped (136,320)x(320,64) matmuls, register accumulation -
    acc2 = jnp.dot(p1w_ref[0:L2, :], w2_ref[0],
                   preferred_element_type=jnp.float32)
    for i in range(1, K):
        acc2 = acc2 + jnp.dot(p1w_ref[i * P1H:i * P1H + L2, :], w2_ref[i],
                              preferred_element_type=jnp.float32)
    acc2_ref[...] = acc2                                  # single store

    # ---- pool2 (2x2/2) fused with conv2 bias + ReLU -------------------------
    # valid pooled2 positions live at rows 28*hq + 2*wq of `dx` (gathered by
    # the wrapper), everything is a plain shifted-slice maximum.
    dy = jnp.maximum(acc2_ref[0:L2 - P1H, :], acc2_ref[P1H:L2, :])     # (122,64)
    dx = jnp.maximum(dy[0:P2_SPAN, :], dy[1:P2_SPAN + 1, :])           # (121,64)
    out_ref[0] = jnp.maximum(dx + b2_ref[...], 0.0).astype(out_ref.dtype)


# ----------------------------------------------------------------------------
# FC stage kernel: whole batch at once (bf16 inputs, f32 accumulation).
# ----------------------------------------------------------------------------
def _fc_kernel(x_ref, fw1_ref, fb1_ref, fw2_ref, fb2_ref, fw3_ref, fb3_ref,
               out_ref):
    h = jnp.dot(x_ref[...], fw1_ref[...],
                preferred_element_type=jnp.float32) + fb1_ref[...]
    h = jnp.maximum(h, 0.0).astype(jnp.bfloat16)
    h = jnp.dot(h, fw2_ref[...],
                preferred_element_type=jnp.float32) + fb2_ref[...]
    h = jnp.maximum(h, 0.0).astype(jnp.bfloat16)
    out_ref[...] = jnp.dot(h, fw3_ref[...],
                           preferred_element_type=jnp.float32) + fb3_ref[...]


# ----------------------------------------------------------------------------
# Host-side wrapper: tiny XLA layout work + two pallas_calls.
# ----------------------------------------------------------------------------
def _forward(x_nchw, p):
    N = x_nchw.shape[0]
    assert x_nchw.shape[1:] == (CIN, H, W)

    # conv1 im2col (K=75), rows grouped by pool1 quadrant q = dy*2+dx and,
    # inside each (padded-to-200) block, by pooled position hp*14+wp.
    xh = jnp.transpose(x_nchw, (0, 2, 3, 1))                      # NHWC
    taps = [xh[:, i:i + 2 * P1H, j:j + 2 * P1H, :]
            for i in range(K) for j in range(K)]
    col = jnp.concatenate(taps, axis=-1)                          # (N,28,28,75)
    col = col.reshape(N, P1H, 2, P1H, 2, KK)                      # (n,hp,dy,wp,dx,75)
    col = jnp.transpose(col, (0, 2, 4, 1, 3, 5)).reshape(N, 4, NP1, KK)
    col = jnp.pad(col, ((0, 0), (0, 0), (0, QBLK - NP1), (0, 0)))
    lhs1 = col.reshape(N, 4 * QBLK, KK)                           # (N,800,75)

    pooled2 = pl.pallas_call(
        _conv_kernel,
        grid=(N,),
        out_shape=jax.ShapeDtypeStruct((N, P2_SPAN, C2), jnp.bfloat16),
        in_specs=[
            pl.BlockSpec((1, 4 * QBLK, KK), lambda n: (n, 0, 0)),
            pl.BlockSpec((KK, C1), lambda n: (0, 0)),
            pl.BlockSpec((1, C1), lambda n: (0, 0)),
            pl.BlockSpec((K, WIDE, C2), lambda n: (0, 0, 0)),
            pl.BlockSpec((1, C2), lambda n: (0, 0)),
        ],
        out_specs=pl.BlockSpec((1, P2_SPAN, C2), lambda n: (n, 0, 0)),
        scratch_shapes=[
            pltpu.VMEM((4 * QBLK, C1), jnp.float32),      # conv1 result
            pltpu.VMEM((NP1, C1), jnp.bfloat16),          # dense pooled1
            pltpu.VMEM((P1W_ROWS, WIDE), jnp.bfloat16),   # widened pooled1
            pltpu.VMEM((L2, C2), jnp.float32),            # conv2 result
        ],
        compiler_params=pltpu.CompilerParams(
            dimension_semantics=("parallel",)),
    )(lhs1, p["w1p"], p["b1"], p["w2g"], p["b2"])

    # Gather the 25 valid pooled2 rows (row = 28*hq + 2*wq) -> (N, 1600) in
    # (position-major, channel-minor) order; fc1 weights are pre-permuted to
    # match PyTorch's (c, h, w) flatten.
    sel = jnp.array([28 * hq + 2 * wq for hq in range(HP2) for wq in range(HP2)],
                    jnp.int32)
    xfc = pooled2[:, sel, :].reshape(N, FC_IN)

    out = pl.pallas_call(
        _fc_kernel,
        out_shape=jax.ShapeDtypeStruct((N, N_CLASSES), jnp.float32),
    )(xfc, p["fw1"], p["fb1"], p["fw2"], p["fb2"], p["fw3"], p["fb3"])
    return out


net_forward = jax.jit(_forward)


# ----------------------------------------------------------------------------
# Parameters: PyTorch-default-style init, then one-time packing for the kernel.
# ----------------------------------------------------------------------------
def init_params(key):
    def u(k, shape, fan_in):
        bound = 1.0 / (fan_in ** 0.5)
        return jax.random.uniform(k, shape, jnp.float32, -bound, bound)

    ks = jax.random.split(key, 10)
    return {
        "conv1_w": u(ks[0], (C1, CIN, K, K), CIN * K * K),
        "conv1_b": u(ks[1], (C1,), CIN * K * K),
        "conv2_w": u(ks[2], (C2, C1, K, K), C1 * K * K),
        "conv2_b": u(ks[3], (C2,), C1 * K * K),
        "fc1_w":   u(ks[4], (FC1, FC_IN), FC_IN),
        "fc1_b":   u(ks[5], (FC1,), FC_IN),
        "fc2_w":   u(ks[6], (FC2, FC1), FC1),
        "fc2_b":   u(ks[7], (FC2,), FC1),
        "fc3_w":   u(ks[8], (N_CLASSES, FC2), FC2),
        "fc3_b":   u(ks[9], (N_CLASSES,), FC2),
    }


def pack_params(p):
    bf16, f32 = jnp.bfloat16, jnp.float32

    # conv1: (Cout, Cin, kh, kw) -> (kh*kw*Cin, Cout); contraction row
    # (i*5+j)*3 + cin matches the wrapper's im2col lane order.  Kept f32.
    w1p = jnp.transpose(p["conv1_w"], (2, 3, 1, 0)).reshape(KK, C1).astype(f32)

    # conv2: grouped by kernel row i -> (5, 5*64, 64); contraction row
    # j*64 + cin matches the widened pooled1 lane layout.
    w2g = jnp.transpose(p["conv2_w"], (2, 3, 1, 0)).reshape(K, K * C1, C2)

    # fc1 rows permuted once so the kernel's (position, channel) flatten order
    # matches PyTorch's (channel, h, w)-major x.view(-1, 64*5*5).
    fw1 = jnp.transpose(p["fc1_w"].reshape(FC1, C2, HP2, HP2),
                        (2, 3, 1, 0)).reshape(FC_IN, FC1)

    return {
        "w1p": w1p,
        "b1":  p["conv1_b"].reshape(1, C1).astype(f32),
        "w2g": w2g.astype(bf16),
        "b2":  p["conv2_b"].reshape(1, C2).astype(f32),
        "fw1": fw1.astype(bf16),
        "fb1": p["fc1_b"].reshape(1, FC1).astype(f32),
        "fw2": jnp.transpose(p["fc2_w"]).astype(bf16),
        "fb2": p["fc2_b"].reshape(1, FC2).astype(f32),
        "fw3": jnp.transpose(p["fc3_w"]).astype(bf16),
        "fb3": p["fc3_b"].reshape(1, N_CLASSES).astype(f32),
    }


# ----------------------------------------------------------------------------
# Pure-JAX reference (mirrors the kernel's precision choices) for sanity check.
# ----------------------------------------------------------------------------
def reference_forward(x, p):
    bf16, f32 = jnp.bfloat16, jnp.float32
    dn = ("NCHW", "OIHW", "NCHW")

    def pool(y):
        return jax.lax.reduce_window(y, -jnp.inf, jax.lax.max,
                                     (1, 1, 2, 2), (1, 1, 2, 2), "VALID")

    y = jax.lax.conv_general_dilated(x, p["conv1_w"], (1, 1), "VALID",
                                     dimension_numbers=dn,
                                     precision=jax.lax.Precision.HIGHEST)
    y = pool(jnp.maximum(y + p["conv1_b"][None, :, None, None], 0.0))
    y = jax.lax.conv_general_dilated(y.astype(bf16), p["conv2_w"].astype(bf16),
                                     (1, 1), "VALID", dimension_numbers=dn,
                                     preferred_element_type=f32)
    y = pool(jnp.maximum(y + p["conv2_b"][None, :, None, None], 0.0))
    y = y.reshape(y.shape[0], -1)
    y = jnp.maximum(jnp.dot(y.astype(bf16), p["fc1_w"].T.astype(bf16),
                            preferred_element_type=f32) + p["fc1_b"], 0.0)
    y = jnp.maximum(jnp.dot(y.astype(bf16), p["fc2_w"].T.astype(bf16),
                            preferred_element_type=f32) + p["fc2_b"], 0.0)
    return jnp.dot(y.astype(bf16), p["fc3_w"].T.astype(bf16),
                   preferred_element_type=f32) + p["fc3_b"]


if __name__ == "__main__":
    key = jax.random.PRNGKey(0)
    k_x, k_p = jax.random.split(key)
    x = jax.random.normal(k_x, (2, CIN, H, W), jnp.float32)

    raw = init_params(k_p)
    packed = pack_params(raw)

    out = jax.block_until_ready(net_forward(x, packed))
    assert out.shape == (2, N_CLASSES), out.shape
    assert out.dtype == jnp.float32

    ref = jax.block_until_ready(reference_forward(x, raw))
    scale = float(jnp.max(jnp.abs(ref))) + 1e-6
    max_err = float(jnp.max(jnp.abs(out - ref)))
    if max_err > 0.05 * scale + 1e-5:
        raise AssertionError(f"kernel mismatch vs reference: {max_err} (scale {scale})")

    print("KERNEL_OK")
</pallas_src>

<mosaic_0001>
module attributes {stable_mosaic.version = 11 : i64} {
  func.func @_conv_kernel(%arg0: i32, %arg1: memref<1x800x75xf32, #tpu.memory_space<vmem>>, %arg2: memref<75x64xf32, #tpu.memory_space<vmem>>, %arg3: memref<1x64xf32, #tpu.memory_space<vmem>>, %arg4: memref<5x320x64xbf16, #tpu.memory_space<vmem>>, %arg5: memref<1x64xf32, #tpu.memory_space<vmem>>, %arg6: memref<1x121x64xbf16, #tpu.memory_space<vmem>>, %arg7: memref<800x64xf32, #tpu.memory_space<vmem>>, %arg8: memref<196x64xbf16, #tpu.memory_space<vmem>>, %arg9: memref<192x320xbf16, #tpu.memory_space<vmem>>, %arg10: memref<136x64xf32, #tpu.memory_space<vmem>>) attributes {dimension_semantics = [#tpu.dimension_semantics<parallel>], iteration_bounds = array<i64: 2>, scalar_prefetch = 0 : i64, scratch_operands = 4 : i64, tpu.core_type = #tpu.core_type<tc>, window_params = [{transform_indices = @transform_0, window_bounds = array<i64: 1, 800, 75>}, {pipeline_mode = #tpu.pipeline_mode<synchronous>, transform_indices = @transform_1, window_bounds = array<i64: 75, 64>}, {pipeline_mode = #tpu.pipeline_mode<synchronous>, transform_indices = @transform_2, window_bounds = array<i64: 1, 64>}, {pipeline_mode = #tpu.pipeline_mode<synchronous>, transform_indices = @transform_3, window_bounds = array<i64: 5, 320, 64>}, {pipeline_mode = #tpu.pipeline_mode<synchronous>, transform_indices = @transform_4, window_bounds = array<i64: 1, 64>}, {transform_indices = @transform_5, window_bounds = array<i64: 1, 121, 64>}]} {
    %c0 = arith.constant 0 : index
    %c0_0 = arith.constant 0 : index
    %c0_1 = arith.constant 0 : index
    %0 = vector.load %arg1[%c0, %c0_0, %c0_1] : memref<1x800x75xf32, #tpu.memory_space<vmem>>, vector<1x800x75xf32>
    %1 = vector.shape_cast %0 : vector<1x800x75xf32> to vector<800x75xf32>
    %c0_2 = arith.constant 0 : index
    %c0_3 = arith.constant 0 : index
    %2 = vector.load %arg2[%c0_2, %c0_3] : memref<75x64xf32, #tpu.memory_space<vmem>>, vector<75x64xf32>
    %cst = arith.constant dense<0.000000e+00> : vector<800x64xf32>
    %3 = tpu.matmul %1, %2, %cst {dimension_numbers = #tpu.dot_dimension_numbers<[1], [0], [0], [1], [0, 0, 1, 1], [], []>} : vector<800x75xf32>, vector<75x64xf32>, vector<800x64xf32> -> vector<800x64xf32>
    %c0_4 = arith.constant 0 : index
    %c0_5 = arith.constant 0 : index
    %4 = vector.load %arg7[%c0_4, %c0_5] : memref<800x64xf32, #tpu.memory_space<vmem>>, vector<800x64xf32>
    tpu.vector_store %arg7[%c0_4, %c0_5], %3 {strides = array<i32>} : memref<800x64xf32, #tpu.memory_space<vmem>>, vector<800x64xf32>,
    %c0_6 = arith.constant 0 : index
    %c0_7 = arith.constant 0 : index
    %5 = vector.load %arg7[%c0_6, %c0_7] : memref<800x64xf32, #tpu.memory_space<vmem>>, vector<196x64xf32>
    %c200 = arith.constant 200 : index
    %c0_8 = arith.constant 0 : index
    %6 = vector.load %arg7[%c200, %c0_8] : memref<800x64xf32, #tpu.memory_space<vmem>>, vector<196x64xf32>
    %7 = arith.maximumf %5, %6 : vector<196x64xf32>
    %c400 = arith.constant 400 : index
    %c0_9 = arith.constant 0 : index
    %8 = vector.load %arg7[%c400, %c0_9] : memref<800x64xf32, #tpu.memory_space<vmem>>, vector<196x64xf32>
    %c600 = arith.constant 600 : index
    %c0_10 = arith.constant 0 : index
    %9 = vector.load %arg7[%c600, %c0_10] : memref<800x64xf32, #tpu.memory_space<vmem>>, vector<196x64xf32>
    %10 = arith.maximumf %8, %9 : vector<196x64xf32>
    %11 = arith.maximumf %7, %10 : vector<196x64xf32>
    %c0_11 = arith.constant 0 : index
    %c0_12 = arith.constant 0 : index
    %12 = vector.load %arg3[%c0_11, %c0_12] : memref<1x64xf32, #tpu.memory_space<vmem>>, vector<1x64xf32>
    %13 = vector.broadcast %12 : vector<1x64xf32> to vector<196x64xf32>
    %14 = arith.addf %11, %13 : vector<196x64xf32>
    %cst_13 = arith.constant 0.000000e+00 : f32
    %15 = vector.broadcast %cst_13 : f32 to vector<196x64xf32>
    %16 = arith.maximumf %14, %15 : vector<196x64xf32>
    %17 = arith.truncf %16 : vector<196x64xf32> to vector<196x64xbf16>
    %c0_14 = arith.constant 0 : index
    %c0_15 = arith.constant 0 : index
    %18 = vector.load %arg8[%c0_14, %c0_15] : memref<196x64xbf16, #tpu.memory_space<vmem>>, vector<196x64xbf16>
    tpu.vector_store %arg8[%c0_14, %c0_15], %17 {strides = array<i32>} : memref<196x64xbf16, #tpu.memory_space<vmem>>, vector<196x64xbf16>,
    %c0_16 = arith.constant 0 : index
    %c0_17 = arith.constant 0 : index
    %19 = vector.load %arg8[%c0_16, %c0_17] : memref<196x64xbf16, #tpu.memory_space<vmem>>, vector<192x64xbf16>
    %c0_18 = arith.constant 0 : index
    %c0_19 = arith.constant 0 : index
    %20 = vector.load %arg9[%c0_18, %c0_19] : memref<192x320xbf16, #tpu.memory_space<vmem>>, vector<192x64xbf16>
    tpu.vector_store %arg9[%c0_18, %c0_19], %19 {strides = array<i32>} : memref<192x320xbf16, #tpu.memory_space<vmem>>, vector<192x64xbf16>,
    %c1 = arith.constant 1 : index
    %c0_20 = arith.constant 0 : index
    %21 = vector.load %arg8[%c1, %c0_20] : memref<196x64xbf16, #tpu.memory_space<vmem>>, vector<192x64xbf16>
    %c0_21 = arith.constant 0 : index
    %c64 = arith.constant 64 : index
    %22 = vector.load %arg9[%c0_21, %c64] : memref<192x320xbf16, #tpu.memory_space<vmem>>, vector<192x64xbf16>
    tpu.vector_store %arg9[%c0_21, %c64], %21 {strides = array<i32>} : memref<192x320xbf16, #tpu.memory_space<vmem>>, vector<192x64xbf16>,
    %c2 = arith.constant 2 : index
    %c0_22 = arith.constant 0 : index
    %23 = vector.load %arg8[%c2, %c0_22] : memref<196x64xbf16, #tpu.memory_space<vmem>>, vector<192x64xbf16>
    %c0_23 = arith.constant 0 : index
    %c128 = arith.constant 128 : index
    %24 = vector.load %arg9[%c0_23, %c128] : memref<192x320xbf16, #tpu.memory_space<vmem>>, vector<192x64xbf16>
    tpu.vector_store %arg9[%c0_23, %c128], %23 {strides = array<i32>} : memref<192x320xbf16, #tpu.memory_space<vmem>>, vector<192x64xbf16>,
    %c3 = arith.constant 3 : index
    %c0_24 = arith.constant 0 : index
    %25 = vector.load %arg8[%c3, %c0_24] : memref<196x64xbf16, #tpu.memory_space<vmem>>, vector<192x64xbf16>
    %c0_25 = arith.constant 0 : index
    %c192 = arith.constant 192 : index
    %26 = vector.load %arg9[%c0_25, %c192] : memref<192x320xbf16, #tpu.memory_space<vmem>>, vector<192x64xbf16>
    tpu.vector_store %arg9[%c0_25, %c192], %25 {strides = array<i32>} : memref<192x320xbf16, #tpu.memory_space<vmem>>, vector<192x64xbf16>,
    %c4 = arith.constant 4 : index
    %c0_26 = arith.constant 0 : index
    %27 = vector.load %arg8[%c4, %c0_26] : memref<196x64xbf16, #tpu.memory_space<vmem>>, vector<192x64xbf16>
    %c0_27 = arith.constant 0 : index
    %c256 = arith.constant 256 : index
    %28 = vector.load %arg9[%c0_27, %c256] : memref<192x320xbf16, #tpu.memory_space<vmem>>, vector<192x64xbf16>
    tpu.vector_store %arg9[%c0_27, %c256], %27 {strides = array<i32>} : memref<192x320xbf16, #tpu.memory_space<vmem>>, vector<192x64xbf16>,
    %c0_28 = arith.constant 0 : index
    %c0_29 = arith.constant 0 : index
    %29 = vector.load %arg9[%c0_28, %c0_29] : memref<192x320xbf16, #tpu.memory_space<vmem>>, vector<136x320xbf16>
    %c0_30 = arith.constant 0 : index
    %c0_31 = arith.constant 0 : index
    %c0_32 = arith.constant 0 : index
    %30 = vector.load %arg4[%c0_30, %c0_31, %c0_32] : memref<5x320x64xbf16, #tpu.memory_space<vmem>>, vector<1x320x64xbf16>
    %31 = vector.shape_cast %30 : vector<1x320x64xbf16> to vector<320x64xbf16>
    %cst_33 = arith.constant dense<0.000000e+00> : vector<136x64xf32>
    %32 = tpu.matmul %29, %31, %cst_33 {dimension_numbers = #tpu.dot_dimension_numbers<[1], [0], [0], [1], [0, 0, 1, 1], [], []>} : vector<136x320xbf16>, vector<320x64xbf16>, vector<136x64xf32> -> vector<136x64xf32>
    %c14 = arith.constant 14 : index
    %c0_34 = arith.constant 0 : index
    %33 = vector.load %arg9[%c14, %c0_34] : memref<192x320xbf16, #tpu.memory_space<vmem>>, vector<136x320xbf16>
    %c1_35 = arith.constant 1 : index
    %c0_36 = arith.constant 0 : index
    %c0_37 = arith.constant 0 : index
    %34 = vector.load %arg4[%c1_35, %c0_36, %c0_37] : memref<5x320x64xbf16, #tpu.memory_space<vmem>>, vector<1x320x64xbf16>
    %35 = vector.shape_cast %34 : vector<1x320x64xbf16> to vector<320x64xbf16>
    %cst_38 = arith.constant dense<0.000000e+00> : vector<136x64xf32>
    %36 = tpu.matmul %33, %35, %cst_38 {dimension_numbers = #tpu.dot_dimension_numbers<[1], [0], [0], [1], [0, 0, 1, 1], [], []>} : vector<136x320xbf16>, vector<320x64xbf16>, vector<136x64xf32> -> vector<136x64xf32>
    %37 = arith.addf %32, %36 : vector<136x64xf32>
    %c28 = arith.constant 28 : index
    %c0_39 = arith.constant 0 : index
    %38 = vector.load %arg9[%c28, %c0_39] : memref<192x320xbf16, #tpu.memory_space<vmem>>, vector<136x320xbf16>
    %c2_40 = arith.constant 2 : index
    %c0_41 = arith.constant 0 : index
    %c0_42 = arith.constant 0 : index
    %39 = vector.load %arg4[%c2_40, %c0_41, %c0_42] : memref<5x320x64xbf16, #tpu.memory_space<vmem>>, vector<1x320x64xbf16>
    %40 = vector.shape_cast %39 : vector<1x320x64xbf16> to vector<320x64xbf16>
    %cst_43 = arith.constant dense<0.000000e+00> : vector<136x64xf32>
    %41 = tpu.matmul %38, %40, %cst_43 {dimension_numbers = #tpu.dot_dimension_numbers<[1], [0], [0], [1], [0, 0, 1, 1], [], []>} : vector<136x320xbf16>, vector<320x64xbf16>, vector<136x64xf32> -> vector<136x64xf32>
    %42 = arith.addf %37, %41 : vector<136x64xf32>
    %c42 = arith.constant 42 : index
    %c0_44 = arith.constant 0 : index
    %43 = vector.load %arg9[%c42, %c0_44] : memref<192x320xbf16, #tpu.memory_space<vmem>>, vector<136x320xbf16>
    %c3_45 = arith.constant 3 : index
    %c0_46 = arith.constant 0 : index
    %c0_47 = arith.constant 0 : index
    %44 = vector.load %arg4[%c3_45, %c0_46, %c0_47] : memref<5x320x64xbf16, #tpu.memory_space<vmem>>, vector<1x320x64xbf16>
    %45 = vector.shape_cast %44 : vector<1x320x64xbf16> to vector<320x64xbf16>
    %cst_48 = arith.constant dense<0.000000e+00> : vector<136x64xf32>
    %46 = tpu.matmul %43, %45, %cst_48 {dimension_numbers = #tpu.dot_dimension_numbers<[1], [0], [0], [1], [0, 0, 1, 1], [], []>} : vector<136x320xbf16>, vector<320x64xbf16>, vector<136x64xf32> -> vector<136x64xf32>
    %47 = arith.addf %42, %46 : vector<136x64xf32>
    %c56 = arith.constant 56 : index
    %c0_49 = arith.constant 0 : index
    %48 = vector.load %arg9[%c56, %c0_49] : memref<192x320xbf16, #tpu.memory_space<vmem>>, vector<136x320xbf16>
    %c4_50 = arith.constant 4 : index
    %c0_51 = arith.constant 0 : index
    %c0_52 = arith.constant 0 : index
    %49 = vector.load %arg4[%c4_50, %c0_51, %c0_52] : memref<5x320x64xbf16, #tpu.memory_space<vmem>>, vector<1x320x64xbf16>
    %50 = vector.shape_cast %49 : vector<1x320x64xbf16> to vector<320x64xbf16>
    %cst_53 = arith.constant dense<0.000000e+00> : vector<136x64xf32>
    %51 = tpu.matmul %48, %50, %cst_53 {dimension_numbers = #tpu.dot_dimension_numbers<[1], [0], [0], [1], [0, 0, 1, 1], [], []>} : vector<136x320xbf16>, vector<320x64xbf16>, vector<136x64xf32> -> vector<136x64xf32>
    %52 = arith.addf %47, %51 : vector<136x64xf32>
    %c0_54 = arith.constant 0 : index
    %c0_55 = arith.constant 0 : index
    %53 = vector.load %arg10[%c0_54, %c0_55] : memref<136x64xf32, #tpu.memory_space<vmem>>, vector<136x64xf32>
    tpu.vector_store %arg10[%c0_54, %c0_55], %52 {strides = array<i32>} : memref<136x64xf32, #tpu.memory_space<vmem>>, vector<136x64xf32>,
    %c0_56 = arith.constant 0 : index
    %c0_57 = arith.constant 0 : index
    %54 = vector.load %arg10[%c0_56, %c0_57] : memref<136x64xf32, #tpu.memory_space<vmem>>, vector<122x64xf32>
    %c14_58 = arith.constant 14 : index
    %c0_59 = arith.constant 0 : index
    %55 = vector.load %arg10[%c14_58, %c0_59] : memref<136x64xf32, #tpu.memory_space<vmem>>, vector<122x64xf32>
    %56 = arith.maximumf %54, %55 : vector<122x64xf32>
    %57 = vector.extract_strided_slice %56 {offsets = [0, 0], sizes = [121, 64], strides = [1, 1]} : vector<122x64xf32> to vector<121x64xf32>
    %58 = vector.extract_strided_slice %56 {offsets = [1, 0], sizes = [121, 64], strides = [1, 1]} : vector<122x64xf32> to vector<121x64xf32>
    %59 = arith.maximumf %57, %58 : vector<121x64xf32>
    %c0_60 = arith.constant 0 : index
    %c0_61 = arith.constant 0 : index
    %60 = vector.load %arg5[%c0_60, %c0_61] : memref<1x64xf32, #tpu.memory_space<vmem>>, vector<1x64xf32>
    %61 = vector.broadcast %60 : vector<1x64xf32> to vector<121x64xf32>
    %62 = arith.addf %59, %61 : vector<121x64xf32>
    %cst_62 = arith.constant 0.000000e+00 : f32
    %63 = vector.broadcast %cst_62 : f32 to vector<121x64xf32>
    %64 = arith.maximumf %62, %63 : vector<121x64xf32>
    %65 = arith.truncf %64 : vector<121x64xf32> to vector<121x64xbf16>
    %c0_63 = arith.constant 0 : index
    %c0_64 = arith.constant 0 : index
    %c0_65 = arith.constant 0 : index
    %66 = vector.load %arg6[%c0_63, %c0_64, %c0_65] : memref<1x121x64xbf16, #tpu.memory_space<vmem>>, vector<1x121x64xbf16>
    %67 = vector.shape_cast %66 : vector<1x121x64xbf16> to vector<121x64xbf16>
    %68 = vector.shape_cast %65 : vector<121x64xbf16> to vector<1x121x64xbf16>
    tpu.vector_store %arg6[%c0_63, %c0_64, %c0_65], %68 {strides = array<i32>} : memref<1x121x64xbf16, #tpu.memory_space<vmem>>, vector<1x121x64xbf16>,
    return
  }
  func.func @transform_0(%arg0: i32) -> (i32, i32, i32) {
    %c0_i32 = arith.constant 0 : i32
    %c0_i32_0 = arith.constant 0 : i32
    %c0_i32_1 = arith.constant 0 : i32
    return %arg0, %c0_i32, %c0_i32_0 : i32, i32, i32
  }
  func.func @transform_1(%arg0: i32) -> (i32, i32) {
    %c0_i32 = arith.constant 0 : i32
    %c0_i32_0 = arith.constant 0 : i32
    %c0_i32_1 = arith.constant 0 : i32
    return %c0_i32, %c0_i32_0 : i32, i32
  }
  func.func @transform_2(%arg0: i32) -> (i32, i32) {
    %c0_i32 = arith.constant 0 : i32
    %c0_i32_0 = arith.constant 0 : i32
    %c0_i32_1 = arith.constant 0 : i32
    return %c0_i32, %c0_i32_0 : i32, i32
  }
  func.func @transform_3(%arg0: i32) -> (i32, i32, i32) {
    %c0_i32 = arith.constant 0 : i32
    %c0_i32_0 = arith.constant 0 : i32
    %c0_i32_1 = arith.constant 0 : i32
    %c0_i32_2 = arith.constant 0 : i32
    return %c0_i32, %c0_i32_0, %c0_i32_1 : i32, i32, i32
  }
  func.func @transform_4(%arg0: i32) -> (i32, i32) {
    %c0_i32 = arith.constant 0 : i32
    %c0_i32_0 = arith.constant 0 : i32
    %c0_i32_1 = arith.constant 0 : i32
    return %c0_i32, %c0_i32_0 : i32, i32
  }
  func.func @transform_5(%arg0: i32) -> (i32, i32, i32) {
    %c0_i32 = arith.constant 0 : i32
    %c0_i32_0 = arith.constant 0 : i32
    %c0_i32_1 = arith.constant 0 : i32
    return %arg0, %c0_i32, %c0_i32_0 : i32, i32, i32
  }
}

module attributes {stable_mosaic.version = 11 : i64} {
  func.func @_fc_kernel(%arg0: memref<2x1600xbf16, #tpu.memory_space<vmem>>, %arg1: memref<1600x120xbf16, #tpu.memory_space<vmem>>, %arg2: memref<1x120xf32, #tpu.memory_space<vmem>>, %arg3: memref<120x84xbf16, #tpu.memory_space<vmem>>, %arg4: memref<1x84xf32, #tpu.memory_space<vmem>>, %arg5: memref<84x10xbf16, #tpu.memory_space<vmem>>, %arg6: memref<1x10xf32, #tpu.memory_space<vmem>>, %arg7: memref<2x10xf32, #tpu.memory_space<vmem>>) attributes {dimension_semantics = [], scalar_prefetch = 0 : i64, scratch_operands = 0 : i64, tpu.core_type = #tpu.core_type<tc>} {
    %c0 = arith.constant 0 : index
    %c0_0 = arith.constant 0 : index
    %0 = vector.load %arg0[%c0, %c0_0] : memref<2x1600xbf16, #tpu.memory_space<vmem>>, vector<2x1600xbf16>
    %c0_1 = arith.constant 0 : index
    %c0_2 = arith.constant 0 : index
    %1 = vector.load %arg1[%c0_1, %c0_2] : memref<1600x120xbf16, #tpu.memory_space<vmem>>, vector<1600x120xbf16>
    %cst = arith.constant dense<0.000000e+00> : vector<2x120xf32>
    %2 = tpu.matmul %0, %1, %cst {dimension_numbers = #tpu.dot_dimension_numbers<[1], [0], [0], [1], [0, 0, 1, 1], [], []>} : vector<2x1600xbf16>, vector<1600x120xbf16>, vector<2x120xf32> -> vector<2x120xf32>
    %c0_3 = arith.constant 0 : index
    %c0_4 = arith.constant 0 : index
    %3 = vector.load %arg2[%c0_3, %c0_4] : memref<1x120xf32, #tpu.memory_space<vmem>>, vector<1x120xf32>
    %4 = vector.broadcast %3 : vector<1x120xf32> to vector<2x120xf32>
    %5 = arith.addf %2, %4 : vector<2x120xf32>
    %cst_5 = arith.constant 0.000000e+00 : f32
    %6 = vector.broadcast %cst_5 : f32 to vector<2x120xf32>
    %7 = arith.maximumf %5, %6 : vector<2x120xf32>
    %8 = arith.truncf %7 : vector<2x120xf32> to vector<2x120xbf16>
    %c0_6 = arith.constant 0 : index
    %c0_7 = arith.constant 0 : index
    %9 = vector.load %arg3[%c0_6, %c0_7] : memref<120x84xbf16, #tpu.memory_space<vmem>>, vector<120x84xbf16>
    %cst_8 = arith.constant dense<0.000000e+00> : vector<2x84xf32>
    %10 = tpu.matmul %8, %9, %cst_8 {dimension_numbers = #tpu.dot_dimension_numbers<[1], [0], [0], [1], [0, 0, 1, 1], [], []>} : vector<2x120xbf16>, vector<120x84xbf16>, vector<2x84xf32> -> vector<2x84xf32>
    %c0_9 = arith.constant 0 : index
    %c0_10 = arith.constant 0 : index
    %11 = vector.load %arg4[%c0_9, %c0_10] : memref<1x84xf32, #tpu.memory_space<vmem>>, vector<1x84xf32>
    %12 = vector.broadcast %11 : vector<1x84xf32> to vector<2x84xf32>
    %13 = arith.addf %10, %12 : vector<2x84xf32>
    %cst_11 = arith.constant 0.000000e+00 : f32
    %14 = vector.broadcast %cst_11 : f32 to vector<2x84xf32>
    %15 = arith.maximumf %13, %14 : vector<2x84xf32>
    %16 = arith.truncf %15 : vector<2x84xf32> to vector<2x84xbf16>
    %c0_12 = arith.constant 0 : index
    %c0_13 = arith.constant 0 : index
    %17 = vector.load %arg5[%c0_12, %c0_13] : memref<84x10xbf16, #tpu.memory_space<vmem>>, vector<84x10xbf16>
    %cst_14 = arith.constant dense<0.000000e+00> : vector<2x10xf32>
    %18 = tpu.matmul %16, %17, %cst_14 {dimension_numbers = #tpu.dot_dimension_numbers<[1], [0], [0], [1], [0, 0, 1, 1], [], []>} : vector<2x84xbf16>, vector<84x10xbf16>, vector<2x10xf32> -> vector<2x10xf32>
    %c0_15 = arith.constant 0 : index
    %c0_16 = arith.constant 0 : index
    %19 = vector.load %arg6[%c0_15, %c0_16] : memref<1x10xf32, #tpu.memory_space<vmem>>, vector<1x10xf32>
    %20 = vector.broadcast %19 : vector<1x10xf32> to vector<2x10xf32>
    %21 = arith.addf %18, %20 : vector<2x10xf32>
    %c0_17 = arith.constant 0 : index
    %c0_18 = arith.constant 0 : index
    %22 = vector.load %arg7[%c0_17, %c0_18] : memref<2x10xf32, #tpu.memory_space<vmem>>, vector<2x10xf32>
    tpu.vector_store %arg7[%c0_17, %c0_18], %21 {strides = array<i32>} : memref<2x10xf32, #tpu.memory_space<vmem>>, vector<2x10xf32>,
    return
  }
}

</mosaic_0001>

<llo_original>
// kernel: _forward.3
$region0: #{_forward.3}
  #allocation0 [shape = 'u32[]', space=smem, size = 0x4, offset = 0x4, fixed_abs, tag = 'smem constant byte address 0x4 - core index']
  #allocation1 [shape = 'u32[72,128]{1,0:T(1,128)}', space=vmem, size = 0x9000, scoped, tag = 'internal scratch']
  %s0 = inlined_call_operand.vmem [shape: bf16[2,1600], index: 0, kind: input, shape index: {}]
  %s1 = inlined_call_operand.vmem [shape: bf16[1600,120], index: 1, kind: input, shape index: {}]
  %s2 = inlined_call_operand.vmem [shape: f32[1,120], index: 2, kind: input, shape index: {}]
  %s3 = inlined_call_operand.vmem [shape: bf16[120,84], index: 3, kind: input, shape index: {}]
  %s4 = inlined_call_operand.vmem [shape: f32[1,84], index: 4, kind: input, shape index: {}]
  %s5 = inlined_call_operand.vmem [shape: bf16[84,10], index: 5, kind: input, shape index: {}]
  %s6 = inlined_call_operand.vmem [shape: f32[1,10], index: 6, kind: input, shape index: {}]
  %s7 = inlined_call_operand.hbm [shape: f32[2,10], index: 7, kind: output, shape index: {}]
  %s8 = sld [smem:[#allocation0]]
  $region38: #{_forward.3} parent=0
    _
  %s10 = ssub.s32 1, %s8
  %s11 = scalar_select 0, %s10, %s8
  $region1: #{_forward.3} parent=0
    #allocation2 [shape = 'u8[1024]{0}', space=vmem, size = 0x400, scoped, tag = 'output window, operand 0, single buffered']
    #allocation3 [shape = 's32[1]{0}', space=sflag, size = 0x4, scoped, tag = 'scoped memory for _forward.3']
    %12 = vsyncpa [#allocation3], 0
    // Predicated region
    $region2: #{_forward.3} parent=1 // pred_check
      _
    $region3: #{_forward.3} parent=1 // pred_check_branch
      %14 = sbr.rel (0) target = $region5
    $region4: #{_forward.3} parent=1 // pred_region
      _
    $region5: #{_forward.3} parent=1 // pred_fallthru
      _
    // Predicated region
    $region6: #{_forward.3} parent=1 // pred_check
      _
    $region7: #{_forward.3} parent=1 // pred_check_branch
      %16 = sbr.rel (0) target = $region9
    $region8: #{_forward.3} parent=1 // pred_region
      _
    $region9: #{_forward.3} parent=1 // pred_fallthru
      _
    // Predicated region
    $region10: #{_forward.3} parent=1 // pred_check
      _
    $region11: #{_forward.3} parent=1 // pred_check_branch
      %18 = sbr.rel (0) target = $region13
    $region12: #{_forward.3} parent=1 // pred_region
      _
    $region13: #{_forward.3} parent=1 // pred_fallthru
      _
    // Predicated region
    $region14: #{_forward.3} parent=1 // pred_check
      _
    $region15: #{_forward.3} parent=1 // pred_check_branch
      %20 = sbr.rel (0) target = $region17
    $region16: #{_forward.3} parent=1 // pred_region
      _
    $region17: #{_forward.3} parent=1 // pred_fallthru
      _
    // Predicated region
    $region18: #{_forward.3} parent=1 // pred_check
      _
    $region19: #{_forward.3} parent=1 // pred_check_branch
      %22 = sbr.rel (0) target = $region21
    $region20: #{_forward.3} parent=1 // pred_region
      _
    $region21: #{_forward.3} parent=1 // pred_fallthru
      _
    // Predicated region
    $region22: #{_forward.3} parent=1 // pred_check
      _
    $region23: #{_forward.3} parent=1 // pred_check_branch
      %24 = sbr.rel (0) target = $region25
    $region24: #{_forward.3} parent=1 // pred_region
      _
    $region25: #{_forward.3} parent=1 // pred_fallthru
      _
    // Predicated region
    $region26: #{_forward.3} parent=1 // pred_check
      _
    $region27: #{_forward.3} parent=1 // pred_check_branch
      %26 = sbr.rel (0) target = $region29
    $region28: #{_forward.3} parent=1 // pred_region
      _
    $region29: #{_forward.3} parent=1 // pred_fallthru
      _
    %v28 = vld [vmem:[%s0] sm:$0xff]
    %v29 = vld [vmem:[%s0 + $0x8] sm:$0x1f]
    %v30 = vld [vmem:[%s1] sm:$0xf]
    %v31 = vld [vmem:[%s1 + $0x4] sm:$0xf]
    %v32 = vld [vmem:[%s1 + $0x8] sm:$0xf]
    %v33 = vld [vmem:[%s1 + $0xc] sm:$0xf]
    %v34 = vld [vmem:[%s1 + $0x10] sm:$0xf]
    %v35 = vld [vmem:[%s1 + $0x14] sm:$0xf]
    %v36 = vld [vmem:[%s1 + $0x18] sm:$0xf]
    %v37 = vld [vmem:[%s1 + $0x1c] sm:$0xf]
    %v38 = vld [vmem:[%s1 + $0x20] sm:$0xf]
    %v39 = vld [vmem:[%s1 + $0x24] sm:$0xf]
    %v40 = vld [vmem:[%s1 + $0x28] sm:$0xf]
    %v41 = vld [vmem:[%s1 + $0x2c] sm:$0xf]
    %v42 = vld [vmem:[%s1 + $0x30] sm:$0xf]
    %v43 = vld [vmem:[%s1 + $0x34] sm:$0xf]
    %v44 = vld [vmem:[%s1 + $0x38] sm:$0xf]
    %v45 = vld [vmem:[%s1 + $0x3c] sm:$0xf]
    %v46 = vld [vmem:[%s1 + $0x40] sm:$0xf]
    %v47 = vld [vmem:[%s1 + $0x44] sm:$0xf]
    %v48 = vld [vmem:[%s1 + $0x48] sm:$0xf]
    %v49 = vld [vmem:[%s1 + $0x4c] sm:$0xf]
    %v50 = vld [vmem:[%s1 + $0x50] sm:$0xf]
    %v51 = vld [vmem:[%s1 + $0x54] sm:$0xf]
    %v52 = vld [vmem:[%s1 + $0x58] sm:$0xf]
    %v53 = vld [vmem:[%s1 + $0x5c] sm:$0xf]
    %v54 = vld [vmem:[%s1 + $0x60] sm:$0xf]
    %v55 = vld [vmem:[%s1 + $0x64] sm:$0xf]
    %v56 = vld [vmem:[%s1 + $0x68] sm:$0xf]
    %v57 = vld [vmem:[%s1 + $0x6c] sm:$0xf]
    %v58 = vld [vmem:[%s1 + $0x70] sm:$0xf]
    %v59 = vld [vmem:[%s1 + $0x74] sm:$0xf]
    %v60 = vld [vmem:[%s1 + $0x78] sm:$0xf]
    %v61 = vld [vmem:[%s1 + $0x7c] sm:$0xf]
    %v62 = vld [vmem:[%s1 + $0x80] sm:$0xf]
    %v63 = vld [vmem:[%s1 + $0x84] sm:$0xf]
    %v64 = vld [vmem:[%s1 + $0x88] sm:$0xf]
    %v65 = vld [vmem:[%s1 + $0x8c] sm:$0xf]
    %v66 = vld [vmem:[%s1 + $0x90] sm:$0xf]
    %v67 = vld [vmem:[%s1 + $0x94] sm:$0xf]
    %v68 = vld [vmem:[%s1 + $0x98] sm:$0xf]
    %v69 = vld [vmem:[%s1 + $0x9c] sm:$0xf]
    %v70 = vld [vmem:[%s1 + $0xa0] sm:$0xf]
    %v71 = vld [vmem:[%s1 + $0xa4] sm:$0xf]
    %v72 = vld [vmem:[%s1 + $0xa8] sm:$0xf]
    %v73 = vld [vmem:[%s1 + $0xac] sm:$0xf]
    %v74 = vld [vmem:[%s1 + $0xb0] sm:$0xf]
    %v75 = vld [vmem:[%s1 + $0xb4] sm:$0xf]
    %v76 = vld [vmem:[%s1 + $0xb8] sm:$0xf]
    %v77 = vld [vmem:[%s1 + $0xbc] sm:$0xf]
    %v78 = vld [vmem:[%s1 + $0xc0] sm:$0xf]
    %v79 = vld [vmem:[%s1 + $0xc4] sm:$0xf]
    %v80 = vld [vmem:[%s1 + $0xc8] sm:$0xf]
    %v81 = vld [vmem:[%s1 + $0xcc] sm:$0xf]
    %v82 = vld [vmem:[%s1 + $0xd0] sm:$0xf]
    %v83 = vld [vmem:[%s1 + $0xd4] sm:$0xf]
    %v84 = vld [vmem:[%s1 + $0xd8] sm:$0xf]
    %v85 = vld [vmem:[%s1 + $0xdc] sm:$0xf]
    %v86 = vld [vmem:[%s1 + $0xe0] sm:$0xf]
    %v87 = vld [vmem:[%s1 + $0xe4] sm:$0xf]
    %v88 = vld [vmem:[%s1 + $0xe8] sm:$0xf]
    %v89 = vld [vmem:[%s1 + $0xec] sm:$0xf]
    %v90 = vld [vmem:[%s1 + $0xf0] sm:$0xf]
    %v91 = vld [vmem:[%s1 + $0xf4] sm:$0xf]
    %v92 = vld [vmem:[%s1 + $0xf8] sm:$0xf]
    %v93 = vld [vmem:[%s1 + $0xfc] sm:$0xf]
    %v94 = vld [vmem:[%s1 + $0x100] sm:$0xf]
    %v95 = vld [vmem:[%s1 + $0x104] sm:$0xf]
    %v96 = vld [vmem:[%s1 + $0x108] sm:$0xf]
    %v97 = vld [vmem:[%s1 + $0x10c] sm:$0xf]
    %v98 = vld [vmem:[%s1 + $0x110] sm:$0xf]
    %v99 = vld [vmem:[%s1 + $0x114] sm:$0xf]
    %v100 = vld [vmem:[%s1 + $0x118] sm:$0xf]
    %v101 = vld [vmem:[%s1 + $0x11c] sm:$0xf]
    %v102 = vld [vmem:[%s1 + $0x120] sm:$0xf]
    %v103 = vld [vmem:[%s1 + $0x124] sm:$0xf]
    %v104 = vld [vmem:[%s1 + $0x128] sm:$0xf]
    %v105 = vld [vmem:[%s1 + $0x12c] sm:$0xf]
    %v106 = vld [vmem:[%s1 + $0x130] sm:$0xf]
    %v107 = vld [vmem:[%s1 + $0x134] sm:$0xf]
    %v108 = vld [vmem:[%s1 + $0x138] sm:$0xf]
    %v109 = vld [vmem:[%s1 + $0x13c] sm:$0xf]
    %v110 = vld [vmem:[%s1 + $0x140] sm:$0xf]
    %v111 = vld [vmem:[%s1 + $0x144] sm:$0xf]
    %v112 = vld [vmem:[%s1 + $0x148] sm:$0xf]
    %v113 = vld [vmem:[%s1 + $0x14c] sm:$0xf]
    %v114 = vld [vmem:[%s1 + $0x150] sm:$0xf]
    %v115 = vld [vmem:[%s1 + $0x154] sm:$0xf]
    %v116 = vld [vmem:[%s1 + $0x158] sm:$0xf]
    %v117 = vld [vmem:[%s1 + $0x15c] sm:$0xf]
    %v118 = vld [vmem:[%s1 + $0x160] sm:$0xf]
    %v119 = vld [vmem:[%s1 + $0x164] sm:$0xf]
    %v120 = vld [vmem:[%s1 + $0x168] sm:$0xf]
    %v121 = vld [vmem:[%s1 + $0x16c] sm:$0xf]
    %v122 = vld [vmem:[%s1 + $0x170] sm:$0xf]
    %v123 = vld [vmem:[%s1 + $0x174] sm:$0xf]
    %v124 = vld [vmem:[%s1 + $0x178] sm:$0xf]
    %v125 = vld [vmem:[%s1 + $0x17c] sm:$0xf]
    %v126 = vld [vmem:[%s1 + $0x180] sm:$0xf]
    %v127 = vld [vmem:[%s1 + $0x184] sm:$0xf]
    %v128 = vld [vmem:[%s1 + $0x188] sm:$0xf]
    %v129 = vld [vmem:[%s1 + $0x18c] sm:$0xf]
    %v130 = vld [vmem:[%s1 + $0x190] sm:$0xf]
    %v131 = vld [vmem:[%s1 + $0x194] sm:$0xf]
    %v132 = vld [vmem:[%s1 + $0x198] sm:$0xf]
    %v133 = vld [vmem:[%s1 + $0x19c] sm:$0xf]
    %v134 = vld [vmem:[%s1 + $0x1a0] sm:$0xf]
    %v135 = vld [vmem:[%s1 + $0x1a4] sm:$0xf]
    %v136 = vld [vmem:[%s1 + $0x1a8] sm:$0xf]
    %v137 = vld [vmem:[%s1 + $0x1ac] sm:$0xf]
    %v138 = vld [vmem:[%s1 + $0x1b0] sm:$0xf]
    %v139 = vld [vmem:[%s1 + $0x1b4] sm:$0xf]
    %v140 = vld [vmem:[%s1 + $0x1b8] sm:$0xf]
    %v141 = vld [vmem:[%s1 + $0x1bc] sm:$0xf]
    %v142 = vld [vmem:[%s1 + $0x1c0] sm:$0xf]
    %v143 = vld [vmem:[%s1 + $0x1c4] sm:$0xf]
    %v144 = vld [vmem:[%s1 + $0x1c8] sm:$0xf]
    %v145 = vld [vmem:[%s1 + $0x1cc] sm:$0xf]
    %v146 = vld [vmem:[%s1 + $0x1d0] sm:$0xf]
    %v147 = vld [vmem:[%s1 + $0x1d4] sm:$0xf]
    %v148 = vld [vmem:[%s1 + $0x1d8] sm:$0xf]
    %v149 = vld [vmem:[%s1 + $0x1dc] sm:$0xf]
    %v150 = vld [vmem:[%s1 + $0x1e0] sm:$0xf]
    %v151 = vld [vmem:[%s1 + $0x1e4] sm:$0xf]
    %v152 = vld [vmem:[%s1 + $0x1e8] sm:$0xf]
    %v153 = vld [vmem:[%s1 + $0x1ec] sm:$0xf]
    %v154 = vld [vmem:[%s1 + $0x1f0] sm:$0xf]
    %v155 = vld [vmem:[%s1 + $0x1f4] sm:$0xf]
    %v156 = vld [vmem:[%s1 + $0x1f8] sm:$0xf]
    %v157 = vld [vmem:[%s1 + $0x1fc] sm:$0xf]
    %v158 = vld [vmem:[%s1 + $0x200] sm:$0xf]
    %v159 = vld [vmem:[%s1 + $0x204] sm:$0xf]
    %v160 = vld [vmem:[%s1 + $0x208] sm:$0xf]
    %v161 = vld [vmem:[%s1 + $0x20c] sm:$0xf]
    %v162 = vld [vmem:[%s1 + $0x210] sm:$0xf]
    %v163 = vld [vmem:[%s1 + $0x214] sm:$0xf]
    %v164 = vld [vmem:[%s1 + $0x218] sm:$0xf]
    %v165 = vld [vmem:[%s1 + $0x21c] sm:$0xf]
    %v166 = vld [vmem:[%s1 + $0x220] sm:$0xf]
    %v167 = vld [vmem:[%s1 + $0x224] sm:$0xf]
    %v168 = vld [vmem:[%s1 + $0x228] sm:$0xf]
    %v169 = vld [vmem:[%s1 + $0x22c] sm:$0xf]
    %v170 = vld [vmem:[%s1 + $0x230] sm:$0xf]
    %v171 = vld [vmem:[%s1 + $0x234] sm:$0xf]
    %v172 = vld [vmem:[%s1 + $0x238] sm:$0xf]
    %v173 = vld [vmem:[%s1 + $0x23c] sm:$0xf]
    %v174 = vld [vmem:[%s1 + $0x240] sm:$0xf]
    %v175 = vld [vmem:[%s1 + $0x244] sm:$0xf]
    %v176 = vld [vmem:[%s1 + $0x248] sm:$0xf]
    %v177 = vld [vmem:[%s1 + $0x24c] sm:$0xf]
    %v178 = vld [vmem:[%s1 + $0x250] sm:$0xf]
    %v179 = vld [vmem:[%s1 + $0x254] sm:$0xf]
    %v180 = vld [vmem:[%s1 + $0x258] sm:$0xf]
    %v181 = vld [vmem:[%s1 + $0x25c] sm:$0xf]
    %v182 = vld [vmem:[%s1 + $0x260] sm:$0xf]
    %v183 = vld [vmem:[%s1 + $0x264] sm:$0xf]
    %v184 = vld [vmem:[%s1 + $0x268] sm:$0xf]
    %v185 = vld [vmem:[%s1 + $0x26c] sm:$0xf]
    %v186 = vld [vmem:[%s1 + $0x270] sm:$0xf]
    %v187 = vld [vmem:[%s1 + $0x274] sm:$0xf]
    %v188 = vld [vmem:[%s1 + $0x278] sm:$0xf]
    %v189 = vld [vmem:[%s1 + $0x27c] sm:$0xf]
    %v190 = vld [vmem:[%s1 + $0x280] sm:$0xf]
    %v191 = vld [vmem:[%s1 + $0x284] sm:$0xf]
    %v192 = vld [vmem:[%s1 + $0x288] sm:$0xf]
    %v193 = vld [vmem:[%s1 + $0x28c] sm:$0xf]
    %v194 = vld [vmem:[%s1 + $0x290] sm:$0xf]
    %v195 = vld [vmem:[%s1 + $0x294] sm:$0xf]
    %v196 = vld [vmem:[%s1 + $0x298] sm:$0xf]
    %v197 = vld [vmem:[%s1 + $0x29c] sm:$0xf]
    %v198 = vld [vmem:[%s1 + $0x2a0] sm:$0xf]
    %v199 = vld [vmem:[%s1 + $0x2a4] sm:$0xf]
    %v200 = vld [vmem:[%s1 + $0x2a8] sm:$0xf]
    %v201 = vld [vmem:[%s1 + $0x2ac] sm:$0xf]
    %v202 = vld [vmem:[%s1 + $0x2b0] sm:$0xf]
    %v203 = vld [vmem:[%s1 + $0x2b4] sm:$0xf]
    %v204 = vld [vmem:[%s1 + $0x2b8] sm:$0xf]
    %v205 = vld [vmem:[%s1 + $0x2bc] sm:$0xf]
    %v206 = vld [vmem:[%s1 + $0x2c0] sm:$0xf]
    %v207 = vld [vmem:[%s1 + $0x2c4] sm:$0xf]
    %v208 = vld [vmem:[%s1 + $0x2c8] sm:$0xf]
    %v209 = vld [vmem:[%s1 + $0x2cc] sm:$0xf]
    %v210 = vld [vmem:[%s1 + $0x2d0] sm:$0xf]
    %v211 = vld [vmem:[%s1 + $0x2d4] sm:$0xf]
    %v212 = vld [vmem:[%s1 + $0x2d8] sm:$0xf]
    %v213 = vld [vmem:[%s1 + $0x2dc] sm:$0xf]
    %v214 = vld [vmem:[%s1 + $0x2e0] sm:$0xf]
    %v215 = vld [vmem:[%s1 + $0x2e4] sm:$0xf]
    %v216 = vld [vmem:[%s1 + $0x2e8] sm:$0xf]
    %v217 = vld [vmem:[%s1 + $0x2ec] sm:$0xf]
    %v218 = vld [vmem:[%s1 + $0x2f0] sm:$0xf]
    %v219 = vld [vmem:[%s1 + $0x2f4] sm:$0xf]
    %v220 = vld [vmem:[%s1 + $0x2f8] sm:$0xf]
    %v221 = vld [vmem:[%s1 + $0x2fc] sm:$0xf]
    %v222 = vld [vmem:[%s1 + $0x300] sm:$0xf]
    %v223 = vld [vmem:[%s1 + $0x304] sm:$0xf]
    %v224 = vld [vmem:[%s1 + $0x308] sm:$0xf]
    %v225 = vld [vmem:[%s1 + $0x30c] sm:$0xf]
    %v226 = vld [vmem:[%s1 + $0x310] sm:$0xf]
    %v227 = vld [vmem:[%s1 + $0x314] sm:$0xf]
    %v228 = vld [vmem:[%s1 + $0x318] sm:$0xf]
    %v229 = vld [vmem:[%s1 + $0x31c] sm:$0xf]
    %v230 = vld [vmem:[%s2] sm:$0x1]
    %v232 = vperm.slane %v230, 0
    %235 = vst [vmem:[#allocation1] ss:$9 sm:$0xff] %v28
    %v236 = vld [vmem:[#allocation1] sm:$0xff]
    %v237 = vld [vmem:[#allocation1 + $0x9] sm:$0xff]
    %v238 = vld [vmem:[#allocation1 + $0x12] sm:$0xff]
    %v239 = vld [vmem:[#allocation1 + $0x1b] sm:$0xff]
    %v240 = vld [vmem:[#allocation1 + $0x24] sm:$0xff]
    %v241 = vld [vmem:[#allocation1 + $0x2d] sm:$0xff]
    %v242 = vld [vmem:[#allocation1 + $0x36] sm:$0xff]
    %v243 = vld [vmem:[#allocation1 + $0x3f] sm:$0xff]
    %245 = vst [vmem:[#allocation1] ss:$9 sm:$0xff] %v29
    %v246 = vld [vmem:[#allocation1] sm:$0xff]
    %v247 = vld [vmem:[#allocation1 + $0x9] sm:$0xff]
    %v248 = vld [vmem:[#allocation1 + $0x12] sm:$0xff]
    %v249 = vld [vmem:[#allocation1 + $0x1b] sm:$0xff]
    %v250 = vld [vmem:[#allocation1 + $0x24] sm:$0xff]
    %v463 = vunpack.c.l.b16 %v30
    %v464 = vunpack.c.l.b16 %v31
    %v465 = vunpack.c.l.b16 %v32
    %v466 = vunpack.c.l.b16 %v33
    %v467 = vunpack.c.l.b16 %v34
    %v468 = vunpack.c.l.b16 %v35
    %v469 = vunpack.c.l.b16 %v36
    %v470 = vunpack.c.l.b16 %v37
    %v471 = vunpack.c.l.b16 %v38
    %v472 = vunpack.c.l.b16 %v39
    %v473 = vunpack.c.l.b16 %v40
    %v474 = vunpack.c.l.b16 %v41
    %v475 = vunpack.c.l.b16 %v42
    %v476 = vunpack.c.l.b16 %v43
    %v477 = vunpack.c.l.b16 %v44
    %v478 = vunpack.c.l.b16 %v45
    %v479 = vunpack.c.l.b16 %v46
    %v480 = vunpack.c.l.b16 %v47
    %v481 = vunpack.c.l.b16 %v48
    %v482 = vunpack.c.l.b16 %v49
    %v483 = vunpack.c.l.b16 %v50
    %v484 = vunpack.c.l.b16 %v51
    %v485 = vunpack.c.l.b16 %v52
    %v486 = vunpack.c.l.b16 %v53
    %v487 = vunpack.c.l.b16 %v54
    %v488 = vunpack.c.l.b16 %v55
    %v489 = vunpack.c.l.b16 %v56
    %v490 = vunpack.c.l.b16 %v57
    %v491 = vunpack.c.l.b16 %v58
    %v492 = vunpack.c.l.b16 %v59
    %v493 = vunpack.c.l.b16 %v60
    %v494 = vunpack.c.l.b16 %v61
    %v495 = vunpack.c.l.b16 %v62
    %v496 = vunpack.c.l.b16 %v63
    %v497 = vunpack.c.l.b16 %v64
    %v498 = vunpack.c.l.b16 %v65
    %v499 = vunpack.c.l.b16 %v66
    %v500 = vunpack.c.l.b16 %v67
    %v501 = vunpack.c.l.b16 %v68
    %v502 = vunpack.c.l.b16 %v69
    %v503 = vunpack.c.l.b16 %v70
    %v504 = vunpack.c.l.b16 %v71
    %v505 = vunpack.c.l.b16 %v72
    %v506 = vunpack.c.l.b16 %v73
    %v507 = vunpack.c.l.b16 %v74
    %v508 = vunpack.c.l.b16 %v75
    %v509 = vunpack.c.l.b16 %v76
    %v510 = vunpack.c.l.b16 %v77
    %v511 = vunpack.c.l.b16 %v78
    %v512 = vunpack.c.l.b16 %v79
    %v513 = vunpack.c.l.b16 %v80
    %v514 = vunpack.c.l.b16 %v81
    %v515 = vunpack.c.l.b16 %v82
    %v516 = vunpack.c.l.b16 %v83
    %v517 = vunpack.c.l.b16 %v84
    %v518 = vunpack.c.l.b16 %v85
    %v519 = vunpack.c.l.b16 %v86
    %v520 = vunpack.c.l.b16 %v87
    %v521 = vunpack.c.l.b16 %v88
    %v522 = vunpack.c.l.b16 %v89
    %v523 = vunpack.c.l.b16 %v90
    %v524 = vunpack.c.l.b16 %v91
    %v525 = vunpack.c.l.b16 %v92
    %v526 = vunpack.c.l.b16 %v93
    %v527 = vunpack.c.l.b16 %v94
    %v528 = vunpack.c.l.b16 %v95
    %v529 = vunpack.c.l.b16 %v96
    %v530 = vunpack.c.l.b16 %v97
    %v531 = vunpack.c.l.b16 %v98
    %v532 = vunpack.c.l.b16 %v99
    %v533 = vunpack.c.l.b16 %v100
    %v534 = vunpack.c.l.b16 %v101
    %v535 = vunpack.c.l.b16 %v102
    %v536 = vunpack.c.l.b16 %v103
    %v537 = vunpack.c.l.b16 %v104
    %v538 = vunpack.c.l.b16 %v105
    %v539 = vunpack.c.l.b16 %v106
    %v540 = vunpack.c.l.b16 %v107
    %v541 = vunpack.c.l.b16 %v108
    %v542 = vunpack.c.l.b16 %v109
    %v543 = vunpack.c.l.b16 %v110
    %v544 = vunpack.c.l.b16 %v111
    %v545 = vunpack.c.l.b16 %v112
    %v546 = vunpack.c.l.b16 %v113
    %v547 = vunpack.c.l.b16 %v114
    %v548 = vunpack.c.l.b16 %v115
    %v549 = vunpack.c.l.b16 %v116
    %v550 = vunpack.c.l.b16 %v117
    %v551 = vunpack.c.l.b16 %v118
    %v552 = vunpack.c.l.b16 %v119
    %v553 = vunpack.c.l.b16 %v120
    %v554 = vunpack.c.l.b16 %v121
    %v555 = vunpack.c.l.b16 %v122
    %v556 = vunpack.c.l.b16 %v123
    %v557 = vunpack.c.l.b16 %v124
    %v558 = vunpack.c.l.b16 %v125
    %v559 = vunpack.c.l.b16 %v126
    %v560 = vunpack.c.l.b16 %v127
    %v561 = vunpack.c.l.b16 %v128
    %v562 = vunpack.c.l.b16 %v129
    %v563 = vunpack.c.l.b16 %v130
    %v564 = vunpack.c.l.b16 %v131
    %v565 = vunpack.c.l.b16 %v132
    %v566 = vunpack.c.l.b16 %v133
    %v567 = vunpack.c.l.b16 %v134
    %v568 = vunpack.c.l.b16 %v135
    %v569 = vunpack.c.l.b16 %v136
    %v570 = vunpack.c.l.b16 %v137
    %v571 = vunpack.c.l.b16 %v138
    %v572 = vunpack.c.l.b16 %v139
    %v573 = vunpack.c.l.b16 %v140
    %v574 = vunpack.c.l.b16 %v141
    %v575 = vunpack.c.l.b16 %v142
    %v576 = vunpack.c.l.b16 %v143
    %v577 = vunpack.c.l.b16 %v144
    %v578 = vunpack.c.l.b16 %v145
    %v579 = vunpack.c.l.b16 %v146
    %v580 = vunpack.c.l.b16 %v147
    %v581 = vunpack.c.l.b16 %v148
    %v582 = vunpack.c.l.b16 %v149
    %v583 = vunpack.c.l.b16 %v150
    %v584 = vunpack.c.l.b16 %v151
    %v585 = vunpack.c.l.b16 %v152
    %v586 = vunpack.c.l.b16 %v153
    %v587 = vunpack.c.l.b16 %v154
    %v588 = vunpack.c.l.b16 %v155
    %v589 = vunpack.c.l.b16 %v156
    %v590 = vunpack.c.l.b16 %v157
    %v591 = vunpack.c.l.b16 %v158
    %v592 = vunpack.c.l.b16 %v159
    %v593 = vunpack.c.l.b16 %v160
    %v594 = vunpack.c.l.b16 %v161
    %v595 = vunpack.c.l.b16 %v162
    %v596 = vunpack.c.l.b16 %v163
    %v597 = vunpack.c.l.b16 %v164
    %v598 = vunpack.c.l.b16 %v165
    %v599 = vunpack.c.l.b16 %v166
    %v600 = vunpack.c.l.b16 %v167
    %v601 = vunpack.c.l.b16 %v168
    %v602 = vunpack.c.l.b16 %v169
    %v603 = vunpack.c.l.b16 %v170
    %v604 = vunpack.c.l.b16 %v171
    %v605 = vunpack.c.l.b16 %v172
    %v606 = vunpack.c.l.b16 %v173
    %v607 = vunpack.c.l.b16 %v174
    %v608 = vunpack.c.l.b16 %v175
    %v609 = vunpack.c.l.b16 %v176
    %v610 = vunpack.c.l.b16 %v177
    %v611 = vunpack.c.l.b16 %v178
    %v612 = vunpack.c.l.b16 %v179
    %v613 = vunpack.c.l.b16 %v180
    %v614 = vunpack.c.l.b16 %v181
    %v615 = vunpack.c.l.b16 %v182
    %v616 = vunpack.c.l.b16 %v183
    %v617 = vunpack.c.l.b16 %v184
    %v618 = vunpack.c.l.b16 %v185
    %v619 = vunpack.c.l.b16 %v186
    %v620 = vunpack.c.l.b16 %v187
    %v621 = vunpack.c.l.b16 %v188
    %v622 = vunpack.c.l.b16 %v189
    %v623 = vunpack.c.l.b16 %v190
    %v624 = vunpack.c.l.b16 %v191
    %v625 = vunpack.c.l.b16 %v192
    %v626 = vunpack.c.l.b16 %v193
    %v627 = vunpack.c.l.b16 %v194
    %v628 = vunpack.c.l.b16 %v195
    %v629 = vunpack.c.l.b16 %v196
    %v630 = vunpack.c.l.b16 %v197
    %v631 = vunpack.c.l.b16 %v198
    %v632 = vunpack.c.l.b16 %v199
    %v633 = vunpack.c.l.b16 %v200
    %v634 = vunpack.c.l.b16 %v201
    %v635 = vunpack.c.l.b16 %v202
    %v636 = vunpack.c.l.b16 %v203
    %v637 = vunpack.c.l.b16 %v204
    %v638 = vunpack.c.l.b16 %v205
    %v639 = vunpack.c.l.b16 %v206
    %v640 = vunpack.c.l.b16 %v207
    %v641 = vunpack.c.l.b16 %v208
    %v642 = vunpack.c.l.b16 %v209
    %v643 = vunpack.c.l.b16 %v210
    %v644 = vunpack.c.l.b16 %v211
    %v645 = vunpack.c.l.b16 %v212
    %v646 = vunpack.c.l.b16 %v213
    %v647 = vunpack.c.l.b16 %v214
    %v648 = vunpack.c.l.b16 %v215
    %v649 = vunpack.c.l.b16 %v216
    %v650 = vunpack.c.l.b16 %v217
    %v651 = vunpack.c.l.b16 %v218
    %v652 = vunpack.c.l.b16 %v219
    %v653 = vunpack.c.l.b16 %v220
    %v654 = vunpack.c.l.b16 %v221
    %v655 = vunpack.c.l.b16 %v222
    %v656 = vunpack.c.l.b16 %v223
    %v657 = vunpack.c.l.b16 %v224
    %v658 = vunpack.c.l.b16 %v225
    %v659 = vunpack.c.l.b16 %v226
    %v660 = vunpack.c.l.b16 %v227
    %v661 = vunpack.c.l.b16 %v228
    %v662 = vunpack.c.l.b16 %v229
    %v663 = vpack.c.b16 %v464, %v463
    %v664 = vpack.c.b16 %v466, %v465
    %v665 = vpack.c.b16 %v468, %v467
    %v666 = vpack.c.b16 %v470, %v469
    %v667 = vpack.c.b16 %v472, %v471
    %v668 = vpack.c.b16 %v474, %v473
    %v669 = vpack.c.b16 %v476, %v475
    %v670 = vpack.c.b16 %v478, %v477
    %v671 = vpack.c.b16 %v480, %v479
    %v672 = vpack.c.b16 %v482, %v481
    %v673 = vpack.c.b16 %v484, %v483
    %v674 = vpack.c.b16 %v486, %v485
    %v675 = vpack.c.b16 %v488, %v487
    %v676 = vpack.c.b16 %v490, %v489
    %v677 = vpack.c.b16 %v492, %v491
    %v678 = vpack.c.b16 %v494, %v493
    %v679 = vpack.c.b16 %v496, %v495
    %v680 = vpack.c.b16 %v498, %v497
    %v681 = vpack.c.b16 %v500, %v499
    %v682 = vpack.c.b16 %v502, %v501
    %v683 = vpack.c.b16 %v504, %v503
    %v684 = vpack.c.b16 %v506, %v505
    %v685 = vpack.c.b16 %v508, %v507
    %v686 = vpack.c.b16 %v510, %v509
    %v687 = vpack.c.b16 %v512, %v511
    %v688 = vpack.c.b16 %v514, %v513
    %v689 = vpack.c.b16 %v516, %v515
    %v690 = vpack.c.b16 %v518, %v517
    %v691 = vpack.c.b16 %v520, %v519
    %v692 = vpack.c.b16 %v522, %v521
    %v693 = vpack.c.b16 %v524, %v523
    %v694 = vpack.c.b16 %v526, %v525
    %v695 = vpack.c.b16 %v528, %v527
    %v696 = vpack.c.b16 %v530, %v529
    %v697 = vpack.c.b16 %v532, %v531
    %v698 = vpack.c.b16 %v534, %v533
    %v699 = vpack.c.b16 %v536, %v535
    %v700 = vpack.c.b16 %v538, %v537
    %v701 = vpack.c.b16 %v540, %v539
    %v702 = vpack.c.b16 %v542, %v541
    %v703 = vpack.c.b16 %v544, %v543
    %v704 = vpack.c.b16 %v546, %v545
    %v705 = vpack.c.b16 %v548, %v547
    %v706 = vpack.c.b16 %v550, %v549
    %v707 = vpack.c.b16 %v552, %v551
    %v708 = vpack.c.b16 %v554, %v553
    %v709 = vpack.c.b16 %v556, %v555
    %v710 = vpack.c.b16 %v558, %v557
    %v711 = vpack.c.b16 %v560, %v559
    %v712 = vpack.c.b16 %v562, %v561
    %v713 = vpack.c.b16 %v564, %v563
    %v714 = vpack.c.b16 %v566, %v565
    %v715 = vpack.c.b16 %v568, %v567
    %v716 = vpack.c.b16 %v570, %v569
    %v717 = vpack.c.b16 %v572, %v571
    %v718 = vpack.c.b16 %v574, %v573
    %v719 = vpack.c.b16 %v576, %v575
    %v720 = vpack.c.b16 %v578, %v577
    %v721 = vpack.c.b16 %v580, %v579
    %v722 = vpack.c.b16 %v582, %v581
    %v723 = vpack.c.b16 %v584, %v583
    %v724 = vpack.c.b16 %v586, %v585
    %v725 = vpack.c.b16 %v588, %v587
    %v726 = vpack.c.b16 %v590, %v589
    %v727 = vpack.c.b16 %v592, %v591
    %v728 = vpack.c.b16 %v594, %v593
    %v729 = vpack.c.b16 %v596, %v595
    %v730 = vpack.c.b16 %v598, %v597
    %v731 = vpack.c.b16 %v600, %v599
    %v732 = vpack.c.b16 %v602, %v601
    %v733 = vpack.c.b16 %v604, %v603
    %v734 = vpack.c.b16 %v606, %v605
    %v735 = vpack.c.b16 %v608, %v607
    %v736 = vpack.c.b16 %v610, %v609
    %v737 = vpack.c.b16 %v612, %v611
    %v738 = vpack.c.b16 %v614, %v613
    %v739 = vpack.c.b16 %v616, %v615
    %v740 = vpack.c.b16 %v618, %v617
    %v741 = vpack.c.b16 %v620, %v619
    %v742 = vpack.c.b16 %v622, %v621
    %v743 = vpack.c.b16 %v624, %v623
    %v744 = vpack.c.b16 %v626, %v625
    %v745 = vpack.c.b16 %v628, %v627
    %v746 = vpack.c.b16 %v630, %v629
    %v747 = vpack.c.b16 %v632, %v631
    %v748 = vpack.c.b16 %v634, %v633
    %v749 = vpack.c.b16 %v636, %v635
    %v750 = vpack.c.b16 %v638, %v637
    %v751 = vpack.c.b16 %v640, %v639
    %v752 = vpack.c.b16 %v642, %v641
    %v753 = vpack.c.b16 %v644, %v643
    %v754 = vpack.c.b16 %v646, %v645
    %v755 = vpack.c.b16 %v648, %v647
    %v756 = vpack.c.b16 %v650, %v649
    %v757 = vpack.c.b16 %v652, %v651
    %v758 = vpack.c.b16 %v654, %v653
    %v759 = vpack.c.b16 %v656, %v655
    %v760 = vpack.c.b16 %v658, %v657
    %v761 = vpack.c.b16 %v660, %v659
    %v762 = vpack.c.b16 %v662, %v661
    %vm863 = vcmask 523264
    %v864 = vsel %vm863, %v250, 0
    %866 = vmatpush.bf16.msra.mxu0 %v670
    %867 = vmatpush.bf16.msra.mxu0 %v669
    %868 = vmatpush.bf16.msra.mxu0 %v668
    %869 = vmatpush.bf16.msra.mxu0 %v667
    %870 = vmatpush.bf16.msra.mxu0 %v666
    %871 = vmatpush.bf16.msra.mxu0 %v665
    %872 = vmatpush.bf16.msra.mxu0 %v664
    %873 = vmatpush.bf16.msra.mxu0 %v663
    %874 = vmatmul.bf16.gmra.mxu0 %v236
    %v875 = vpop.f32.mrf.mxu0
    %v876 = vadd.f32 %v232, %v875
    %v877 = vpop.f32.mrf.mxu0
    %878 = vdwg.mxu0
    %879 = vmatpush.bf16.msra.mxu0 %v678
    %880 = vmatpush.bf16.msra.mxu0 %v677
    %881 = vmatpush.bf16.msra.mxu0 %v676
    %882 = vmatpush.bf16.msra.mxu0 %v675
    %883 = vmatpush.bf16.msra.mxu0 %v674
    %884 = vmatpush.bf16.msra.mxu0 %v673
    %885 = vmatpush.bf16.msra.mxu0 %v672
    %886 = vmatpush.bf16.msra.mxu0 %v671
    %887 = vmatmul.bf16.gmra.mxu0 %v237
    %v888 = vpop.f32.mrf.mxu0
    %v889 = vadd.f32 %v876, %v888
    %v890 = vpop.f32.mrf.mxu0
    %891 = vdwg.mxu0
    %892 = vmatpush.bf16.msra.mxu0 %v686
    %893 = vmatpush.bf16.msra.mxu0 %v685
    %894 = vmatpush.bf16.msra.mxu0 %v684
    %895 = vmatpush.bf16.msra.mxu0 %v683
    %896 = vmatpush.bf16.msra.mxu0 %v682
    %897 = vmatpush.bf16.msra.mxu0 %v681
    %898 = vmatpush.bf16.msra.mxu0 %v680
    %899 = vmatpush.bf16.msra.mxu0 %v679
    %900 = vmatmul.bf16.gmra.mxu0 %v238
    %v901 = vpop.f32.mrf.mxu0
    %v902 = vadd.f32 %v889, %v901
    %v903 = vpop.f32.mrf.mxu0
    %904 = vdwg.mxu0
    %905 = vmatpush.bf16.msra.mxu0 %v694
    %906 = vmatpush.bf16.msra.mxu0 %v693
    %907 = vmatpush.bf16.msra.mxu0 %v692
    %908 = vmatpush.bf16.msra.mxu0 %v691
    %909 = vmatpush.bf16.msra.mxu0 %v690
    %910 = vmatpush.bf16.msra.mxu0 %v689
    %911 = vmatpush.bf16.msra.mxu0 %v688
    %912 = vmatpush.bf16.msra.mxu0 %v687
    %913 = vmatmul.bf16.gmra.mxu0 %v239
    %v914 = vpop.f32.mrf.mxu0
    %v915 = vadd.f32 %v902, %v914
    %v916 = vpop.f32.mrf.mxu0
    %917 = vdwg.mxu0
    %918 = vmatpush.bf16.msra.mxu0 %v702
    %919 = vmatpush.bf16.msra.mxu0 %v701
    %920 = vmatpush.bf16.msra.mxu0 %v700
    %921 = vmatpush.bf16.msra.mxu0 %v699
    %922 = vmatpush.bf16.msra.mxu0 %v698
    %923 = vmatpush.bf16.msra.mxu0 %v697
    %924 = vmatpush.bf16.msra.mxu0 %v696
    %925 = vmatpush.bf16.msra.mxu0 %v695
    %926 = vmatmul.bf16.gmra.mxu0 %v240
    %v927 = vpop.f32.mrf.mxu0
    %v928 = vadd.f32 %v915, %v927
    %v929 = vpop.f32.mrf.mxu0
    %930 = vdwg.mxu0
    %931 = vmatpush.bf16.msra.mxu0 %v710
    %932 = vmatpush.bf16.msra.mxu0 %v709
    %933 = vmatpush.bf16.msra.mxu0 %v708
    %934 = vmatpush.bf16.msra.mxu0 %v707
    %935 = vmatpush.bf16.msra.mxu0 %v706
    %936 = vmatpush.bf16.msra.mxu0 %v705
    %937 = vmatpush.bf16.msra.mxu0 %v704
    %938 = vmatpush.bf16.msra.mxu0 %v703
    %939 = vmatmul.bf16.gmra.mxu0 %v241
    %v940 = vpop.f32.mrf.mxu0
    %v941 = vadd.f32 %v928, %v940
    %v942 = vpop.f32.mrf.mxu0
    %943 = vdwg.mxu0
    %944 = vmatpush.bf16.msra.mxu0 %v718
    %945 = vmatpush.bf16.msra.mxu0 %v717
    %946 = vmatpush.bf16.msra.mxu0 %v716
    %947 = vmatpush.bf16.msra.mxu0 %v715
    %948 = vmatpush.bf16.msra.mxu0 %v714
    %949 = vmatpush.bf16.msra.mxu0 %v713
    %950 = vmatpush.bf16.msra.mxu0 %v712
    %951 = vmatpush.bf16.msra.mxu0 %v711
    %952 = vmatmul.bf16.gmra.mxu0 %v242
    %v953 = vpop.f32.mrf.mxu0
    %v954 = vadd.f32 %v941, %v953
    %v955 = vpop.f32.mrf.mxu0
    %956 = vdwg.mxu0
    %957 = vmatpush.bf16.msra.mxu0 %v726
    %958 = vmatpush.bf16.msra.mxu0 %v725
    %959 = vmatpush.bf16.msra.mxu0 %v724
    %960 = vmatpush.bf16.msra.mxu0 %v723
    %961 = vmatpush.bf16.msra.mxu0 %v722
    %962 = vmatpush.bf16.msra.mxu0 %v721
    %963 = vmatpush.bf16.msra.mxu0 %v720
    %964 = vmatpush.bf16.msra.mxu0 %v719
    %965 = vmatmul.bf16.gmra.mxu0 %v243
    %v966 = vpop.f32.mrf.mxu0
    %v967 = vadd.f32 %v954, %v966
    %v968 = vpop.f32.mrf.mxu0
    %969 = vdwg.mxu0
    %970 = vmatpush.bf16.msra.mxu0 %v734
    %971 = vmatpush.bf16.msra.mxu0 %v733
    %972 = vmatpush.bf16.msra.mxu0 %v732
    %973 = vmatpush.bf16.msra.mxu0 %v731
    %974 = vmatpush.bf16.msra.mxu0 %v730
    %975 = vmatpush.bf16.msra.mxu0 %v729
    %976 = vmatpush.bf16.msra.mxu0 %v728
    %977 = vmatpush.bf16.msra.mxu0 %v727
    %978 = vmatmul.bf16.gmra.mxu0 %v246
    %v979 = vpop.f32.mrf.mxu0
    %v980 = vadd.f32 %v967, %v979
    %v981 = vpop.f32.mrf.mxu0
    %982 = vdwg.mxu0
    %983 = vmatpush.bf16.msra.mxu0 %v742
    %984 = vmatpush.bf16.msra.mxu0 %v741
    %985 = vmatpush.bf16.msra.mxu0 %v740
    %986 = vmatpush.bf16.msra.mxu0 %v739
    %987 = vmatpush.bf16.msra.mxu0 %v738
    %988 = vmatpush.bf16.msra.mxu0 %v737
    %989 = vmatpush.bf16.msra.mxu0 %v736
    %990 = vmatpush.bf16.msra.mxu0 %v735
    %991 = vmatmul.bf16.gmra.mxu0 %v247
    %v992 = vpop.f32.mrf.mxu0
    %v993 = vadd.f32 %v980, %v992
    %v994 = vpop.f32.mrf.mxu0
    %995 = vdwg.mxu0
    %996 = vmatpush.bf16.msra.mxu0 %v750
    %997 = vmatpush.bf16.msra.mxu0 %v749
    %998 = vmatpush.bf16.msra.mxu0 %v748
    %999 = vmatpush.bf16.msra.mxu0 %v747
    %1000 = vmatpush.bf16.msra.mxu0 %v746
    %1001 = vmatpush.bf16.msra.mxu0 %v745
    %1002 = vmatpush.bf16.msra.mxu0 %v744
    %1003 = vmatpush.bf16.msra.mxu0 %v743
    %1004 = vmatmul.bf16.gmra.mxu0 %v248
    %v1005 = vpop.f32.mrf.mxu0
    %v1006 = vadd.f32 %v993, %v1005
    %v1007 = vpop.f32.mrf.mxu0
    %1008 = vdwg.mxu0
    %1009 = vmatpush.bf16.msra.mxu0 %v758
    %1010 = vmatpush.bf16.msra.mxu0 %v757
    %1011 = vmatpush.bf16.msra.mxu0 %v756
    %1012 = vmatpush.bf16.msra.mxu0 %v755
    %1013 = vmatpush.bf16.msra.mxu0 %v754
    %1014 = vmatpush.bf16.msra.mxu0 %v753
    %1015 = vmatpush.bf16.msra.mxu0 %v752
    %1016 = vmatpush.bf16.msra.mxu0 %v751
    %1017 = vmatmul.bf16.gmra.mxu0 %v249
    %v1018 = vpop.f32.mrf.mxu0
    %v1019 = vadd.f32 %v1006, %v1018
    %v1020 = vpop.f32.mrf.mxu0
    %1021 = vdwg.mxu0
    %1022 = vmatpush.bf16.msra.mxu0 0
    %1023 = vmatpush.bf16.msra.mxu0 0
    %1024 = vmatpush.bf16.msra.mxu0 0
    %1025 = vmatpush.bf16.msra.mxu0 0
    %1026 = vmatpush.bf16.msra.mxu0 %v762
    %1027 = vmatpush.bf16.msra.mxu0 %v761
    %1028 = vmatpush.bf16.msra.mxu0 %v760
    %1029 = vmatpush.bf16.msra.mxu0 %v759
    %1030 = vmatmul.bf16.gmra.mxu0 %v864
    %v1031 = vpop.f32.mrf.mxu0
    %v1032 = vadd.f32 %v1019, %v1031
    %v1033 = vpop.f32.mrf.mxu0
    %1034 = vdwg.mxu0
    %v1035 = vmax.f32 %v1032, 0.0
    %v1036 = vpack.c.bf16 %v1035, %v1035
    %v1037 = vld [vmem:[%s3] sm:$0xf]
    %v1038 = vld [vmem:[%s3 + $0x4] sm:$0xf]
    %v1039 = vld [vmem:[%s3 + $0x8] sm:$0xf]
    %v1040 = vld [vmem:[%s3 + $0xc] sm:$0xf]
    %v1041 = vld [vmem:[%s3 + $0x10] sm:$0xf]
    %v1042 = vld [vmem:[%s3 + $0x14] sm:$0xf]
    %v1043 = vld [vmem:[%s3 + $0x18] sm:$0xf]
    %v1044 = vld [vmem:[%s3 + $0x1c] sm:$0xf]
    %v1045 = vld [vmem:[%s3 + $0x20] sm:$0xf]
    %v1046 = vld [vmem:[%s3 + $0x24] sm:$0xf]
    %v1047 = vld [vmem:[%s3 + $0x28] sm:$0xf]
    %v1048 = vld [vmem:[%s3 + $0x2c] sm:$0xf]
    %v1049 = vld [vmem:[%s3 + $0x30] sm:$0xf]
    %v1050 = vld [vmem:[%s3 + $0x34] sm:$0xf]
    %v1051 = vld [vmem:[%s3 + $0x38] sm:$0xf]
    %v1052 = vld [vmem:[%s4] sm:$0x1]
    %v1054 = vperm.slane %v1052, 0
    %v1071 = vunpack.c.l.b16 %v1037
    %v1072 = vunpack.c.l.b16 %v1038
    %v1073 = vunpack.c.l.b16 %v1039
    %v1074 = vunpack.c.l.b16 %v1040
    %v1075 = vunpack.c.l.b16 %v1041
    %v1076 = vunpack.c.l.b16 %v1042
    %v1077 = vunpack.c.l.b16 %v1043
    %v1078 = vunpack.c.l.b16 %v1044
    %v1079 = vunpack.c.l.b16 %v1045
    %v1080 = vunpack.c.l.b16 %v1046
    %v1081 = vunpack.c.l.b16 %v1047
    %v1082 = vunpack.c.l.b16 %v1048
    %v1083 = vunpack.c.l.b16 %v1049
    %v1084 = vunpack.c.l.b16 %v1050
    %v1085 = vunpack.c.l.b16 %v1051
    %v1086 = vpack.c.b16 %v1072, %v1071
    %v1087 = vpack.c.b16 %v1074, %v1073
    %v1088 = vpack.c.b16 %v1076, %v1075
    %v1089 = vpack.c.b16 %v1078, %v1077
    %v1090 = vpack.c.b16 %v1080, %v1079
    %v1091 = vpack.c.b16 %v1082, %v1081
    %v1092 = vpack.c.b16 %v1084, %v1083
    %v1093 = vpack.c.b16 %v1085, %v1085
    %vm1101 = vcmask 982016
    %v1103 = vsel %vm1101, %v1036, 0
    %vm1105 = vcmask 1043456
    %v1107 = vsel %vm1105, %v1093, 0
    %1109 = vmatpush.bf16.msra.mxu0 %v1107
    %1110 = vmatpush.bf16.msra.mxu0 %v1092
    %1111 = vmatpush.bf16.msra.mxu0 %v1091
    %1112 = vmatpush.bf16.msra.mxu0 %v1090
    %1113 = vmatpush.bf16.msra.mxu0 %v1089
    %1114 = vmatpush.bf16.msra.mxu0 %v1088
    %1115 = vmatpush.bf16.msra.mxu0 %v1087
    %1116 = vmatpush.bf16.msra.mxu0 %v1086
    %1117 = vmatmul.bf16.gmra.mxu0 %v1103
    %v1118 = vpop.f32.mrf.mxu0
    %v1119 = vadd.f32 %v1054, %v1118
    %v1120 = vpop.f32.mrf.mxu0
    %1121 = vdwg.mxu0
    %v1122 = vmax.f32 %v1119, 0.0
    %v1123 = vpack.c.bf16 %v1122, %v1122
    %v1124 = vld [vmem:[%s5] sm:$0xf]
    %v1125 = vld [vmem:[%s5 + $0x4] sm:$0xf]
    %v1126 = vld [vmem:[%s5 + $0x8] sm:$0xf]
    %v1127 = vld [vmem:[%s5 + $0xc] sm:$0xf]
    %v1128 = vld [vmem:[%s5 + $0x10] sm:$0xf]
    %v1129 = vld [vmem:[%s5 + $0x14] sm:$0xf]
    %v1130 = vld [vmem:[%s5 + $0x18] sm:$0xf]
    %v1131 = vld [vmem:[%s5 + $0x1c] sm:$0xf]
    %v1132 = vld [vmem:[%s5 + $0x20] sm:$0xf]
    %v1133 = vld [vmem:[%s5 + $0x24] sm:$0xf]
    %v1134 = vld [vmem:[%s5 + $0x28] sm:$0x3]
    %v1135 = vld [vmem:[%s6] sm:$0x1]
    %v1137 = vperm.slane %v1135, 0
    %v1150 = vunpack.c.l.b16 %v1124
    %v1151 = vunpack.c.l.b16 %v1125
    %v1152 = vunpack.c.l.b16 %v1126
    %v1153 = vunpack.c.l.b16 %v1127
    %v1154 = vunpack.c.l.b16 %v1128
    %v1155 = vunpack.c.l.b16 %v1129
    %v1156 = vunpack.c.l.b16 %v1130
    %v1157 = vunpack.c.l.b16 %v1131
    %v1158 = vunpack.c.l.b16 %v1132
    %v1159 = vunpack.c.l.b16 %v1133
    %v1160 = vunpack.c.l.b16 %v1134
    %v1161 = vpack.c.b16 %v1151, %v1150
    %v1162 = vpack.c.b16 %v1153, %v1152
    %v1163 = vpack.c.b16 %v1155, %v1154
    %v1164 = vpack.c.b16 %v1157, %v1156
    %v1165 = vpack.c.b16 %v1159, %v1158
    %v1166 = vpack.c.b16 %v1160, %v1160
    %vm1172 = vcmask 687104
    %v1174 = vsel %vm1172, %v1123, 0
    %vm1176 = vcmask 1041408
    %v1178 = vsel %vm1176, %v1166, 0
    %1180 = vmatpush.bf16.msra.mxu0 0
    %1181 = vmatpush.bf16.msra.mxu0 0
    %1182 = vmatpush.bf16.msra.mxu0 %v1178
    %1183 = vmatpush.bf16.msra.mxu0 %v1165
    %1184 = vmatpush.bf16.msra.mxu0 %v1164
    %1185 = vmatpush.bf16.msra.mxu0 %v1163
    %1186 = vmatpush.bf16.msra.mxu0 %v1162
    %1187 = vmatpush.bf16.msra.mxu0 %v1161
    %1188 = vmatmul.bf16.gmra.mxu0 %v1174
    %v1189 = vpop.f32.mrf.mxu0
    %v1190 = vadd.f32 %v1137, %v1189
    %v1191 = vpop.f32.mrf.mxu0
    %1192 = vdwg.mxu0
    %vm1193 = vcmask 74752
    %1194 = vst.msk [vmem:[#allocation2] sm:$0x3] %vm1193, %v1190
    // Predicated region
    $region30: #{_forward.3} parent=1 // pred_check
      _
    $region31: #{_forward.3} parent=1 // pred_check_branch
      %1196 = sbr.rel (0) target = $region33
    $region32: #{_forward.3} parent=1 // pred_region
      %1198 = vsyncadd [#allocation3], 0
      %s1200 = sshll.u32 [#allocation2], 4
      %s1201 = int_to_ptr.vmem [resolvable:$true] %s1200
      %s1202 = sshll.u32 %s7, 4
      %s1203 = int_to_ptr.hbm [resolvable:$true] %s1202
      %1205 = dma.vmem_to_hbm [thread:$0]  %s1201, 32, %s1203, [#allocation3]
    $region33: #{_forward.3} parent=1 // pred_fallthru
      _
    // Predicated region
    $region34: #{_forward.3} parent=1 // pred_check
      _
    $region35: #{_forward.3} parent=1 // pred_check_branch
      %1207 = sbr.rel (0) target = $region37
    $region36: #{_forward.3} parent=1 // pred_region
      %1209 = dma.done [#allocation3], 32
    $region37: #{_forward.3} parent=1 // pred_fallthru
      _
    %1210 = vsyncpa [#allocation3], 1

// kernel: _forward.2
$region0: #{_forward.2}
  #allocation0 [shape = 'u32[]', space=smem, size = 0x4, offset = 0x4, fixed_abs, tag = 'smem constant byte address 0x4 - core index']
  #allocation1 [shape = 'u32[72,128]{1,0:T(1,128)}', space=vmem, size = 0x9000, scoped, tag = 'internal scratch']
  #allocation2 [shape = 'f32[800,64]{1,0:T(8,128)}', space=vmem, size = 0x64000, scoped, tag = 'scratch operand']
  #allocation3 [shape = 'bf16[196,64]{1,0:T(8,128)(2,1)}', space=vmem, size = 0xc800, scoped, tag = 'scratch operand']
  #allocation4 [shape = 'bf16[192,320]{1,0:T(8,128)(2,1)}', space=vmem, size = 0x24000, scoped, tag = 'scratch operand']
  #allocation5 [shape = 'f32[136,64]{1,0:T(8,128)}', space=vmem, size = 0x11000, scoped, tag = 'scratch operand']
  %s0 = inlined_call_operand.vmem [shape: f32[2,800,75], index: 0, kind: input, shape index: {}]
  %s1 = inlined_call_operand.vmem [shape: f32[75,64], index: 1, kind: input, shape index: {}]
  %s2 = inlined_call_operand.vmem [shape: f32[1,64], index: 2, kind: input, shape index: {}]
  %s3 = inlined_call_operand.vmem [shape: bf16[5,320,64], index: 3, kind: input, shape index: {}]
  %s4 = inlined_call_operand.vmem [shape: f32[1,64], index: 4, kind: input, shape index: {}]
  %s5 = inlined_call_operand.vmem [shape: bf16[2,121,64], index: 5, kind: output, shape index: {}]
  %s6 = sld [smem:[#allocation0]]
  $region53: #{_forward.2} parent=0
    _
  %s8 = ssub.s32 1, %s6
  %s9 = scalar_select 0, %s8, %s6
  loop: start=0, step=1, limit=4
  $region2: #{_forward.2} parent=0 // loop_pre_header
    _
  $region3: #{_forward.2} parent=0 // loop_header
    %s11 = sphi 0, %s15
    %p12 = scmp.ge.s32.totalorder %s11, 4
    %s21 = sphi 0, %s23
    %s24 = sphi 0, %s21
    %s25 = sphi 0, %s24
    %s41 = sphi 0, %s25
    %s45 = sphi 0, %s45
    %s47 = sphi 0, %s45
    %s48 = sphi 0, %s47
    %s62 = sphi 0, %s48
    %s66 = sphi 0, %s66
    %s68 = sphi 0, %s66
    %s69 = sphi 0, %s68
    %s83 = sphi 0, %s69
    %s87 = sphi 0, %s87
    %s89 = sphi 0, %s87
    %s90 = sphi 0, %s89
    %s104 = sphi 0, %s90
    %s108 = sphi 0, %s108
    %s110 = sphi 0, %s108
    %s111 = sphi 0, %s110
    %s125 = sphi 0, %s111
    %s131 = sphi 0, %s133
    %s134 = sphi 0, %s131
    %s135 = sphi 0, %s134
    %s151 = sphi 0, %s135
  $region4: #{_forward.2} parent=0 // loop_header_branch
    %14 = sbr.rel (%p12) target = $region8
  $region5: #{_forward.2} parent=0 // loop_body
    %s16 = ssub.s32 %s11, 1
    %s17 = ssub.s32 %s11, 2
    %s18 = sadd.s32 %s11, 1
    %s19 = ssub.s32 %s11, %s18
    %p20 = scmp.eq.s32.totalorder %s19, 0
    %s22 = sadd.s32 %s21, 1
    %s23 = scalar_select %p20, %s21, %s22
    %p26 = pneg %p20
    %p27 = scmp.eq.s32.totalorder %s11, 1
    %p28 = por %p26, %p27
    %p29 = scmp.ne.s32.totalorder %s21, %s24
    %p30 = scmp.eq.s32.totalorder %s11, 0
    %p31 = por %p29, %p30
    %p32 = scmp.ne.s32.totalorder %s21, %s24
    %p33 = scmp.eq.s32.totalorder %s16, 1
    %p34 = por %p32, %p33
    %p35 = scmp.ne.s32.totalorder %s24, %s25
    %p36 = scmp.eq.s32.totalorder %s16, 0
    %p37 = por %p35, %p36
    %p38 = scmp.ne.s32.totalorder %s24, %s25
    %p39 = scmp.eq.s32.totalorder %s17, 1
    %p40 = por %p38, %p39
    %p42 = scmp.ne.s32.totalorder %s25, %s41
    %p43 = scmp.eq.s32.totalorder %s17, 0
    %p44 = por %p42, %p43
    %s46 = sadd.s32 %s45, 1
    %p49 = scmp.eq.s32.totalorder %s11, 1
    %p50 = scmp.ne.s32.totalorder %s45, %s47
    %p51 = scmp.eq.s32.totalorder %s11, 0
    %p52 = por %p50, %p51
    %p53 = scmp.ne.s32.totalorder %s45, %s47
    %p54 = scmp.eq.s32.totalorder %s16, 1
    %p55 = por %p53, %p54
    %p56 = scmp.ne.s32.totalorder %s47, %s48
    %p57 = scmp.eq.s32.totalorder %s16, 0
    %p58 = por %p56, %p57
    %p59 = scmp.ne.s32.totalorder %s47, %s48
    %p60 = scmp.eq.s32.totalorder %s17, 1
    %p61 = por %p59, %p60
    %p63 = scmp.ne.s32.totalorder %s48, %s62
    %p64 = scmp.eq.s32.totalorder %s17, 0
    %p65 = por %p63, %p64
    %s67 = sadd.s32 %s66, 1
    %p70 = scmp.eq.s32.totalorder %s11, 1
    %p71 = scmp.ne.s32.totalorder %s66, %s68
    %p72 = scmp.eq.s32.totalorder %s11, 0
    %p73 = por %p71, %p72
    %p74 = scmp.ne.s32.totalorder %s66, %s68
    %p75 = scmp.eq.s32.totalorder %s16, 1
    %p76 = por %p74, %p75
    %p77 = scmp.ne.s32.totalorder %s68, %s69
    %p78 = scmp.eq.s32.totalorder %s16, 0
    %p79 = por %p77, %p78
    %p80 = scmp.ne.s32.totalorder %s68, %s69
    %p81 = scmp.eq.s32.totalorder %s17, 1
    %p82 = por %p80, %p81
    %p84 = scmp.ne.s32.totalorder %s69, %s83
    %p85 = scmp.eq.s32.totalorder %s17, 0
    %p86 = por %p84, %p85
    %s88 = sadd.s32 %s87, 1
    %p91 = scmp.eq.s32.totalorder %s11, 1
    %p92 = scmp.ne.s32.totalorder %s87, %s89
    %p93 = scmp.eq.s32.totalorder %s11, 0
    %p94 = por %p92, %p93
    %p95 = scmp.ne.s32.totalorder %s87, %s89
    %p96 = scmp.eq.s32.totalorder %s16, 1
    %p97 = por %p95, %p96
    %p98 = scmp.ne.s32.totalorder %s89, %s90
    %p99 = scmp.eq.s32.totalorder %s16, 0
    %p100 = por %p98, %p99
    %p101 = scmp.ne.s32.totalorder %s89, %s90
    %p102 = scmp.eq.s32.totalorder %s17, 1
    %p103 = por %p101, %p102
    %p105 = scmp.ne.s32.totalorder %s90, %s104
    %p106 = scmp.eq.s32.totalorder %s17, 0
    %p107 = por %p105, %p106
    %s109 = sadd.s32 %s108, 1
    %p112 = scmp.eq.s32.totalorder %s11, 1
    %p113 = scmp.ne.s32.totalorder %s108, %s110
    %p114 = scmp.eq.s32.totalorder %s11, 0
    %p115 = por %p113, %p114
    %p116 = scmp.ne.s32.totalorder %s108, %s110
    %p117 = scmp.eq.s32.totalorder %s16, 1
    %p118 = por %p116, %p117
    %p119 = scmp.ne.s32.totalorder %s110, %s111
    %p120 = scmp.eq.s32.totalorder %s16, 0
    %p121 = por %p119, %p120
    %p122 = scmp.ne.s32.totalorder %s110, %s111
    %p123 = scmp.eq.s32.totalorder %s17, 1
    %p124 = por %p122, %p123
    %p126 = scmp.ne.s32.totalorder %s111, %s125
    %p127 = scmp.eq.s32.totalorder %s17, 0
    %p128 = por %p126, %p127
    %s129 = ssub.s32 %s11, %s18
    %p130 = scmp.eq.s32.totalorder %s129, 0
    %s132 = sadd.s32 %s131, 1
    %s133 = scalar_select %p130, %s131, %s132
    %p136 = pneg %p130
    %p137 = scmp.eq.s32.totalorder %s11, 1
    %p138 = por %p136, %p137
    %p139 = scmp.ne.s32.totalorder %s131, %s134
    %p140 = scmp.eq.s32.totalorder %s11, 0
    %p141 = por %p139, %p140
    %p142 = scmp.ne.s32.totalorder %s131, %s134
    %p143 = scmp.eq.s32.totalorder %s16, 1
    %p144 = por %p142, %p143
    %p145 = scmp.ne.s32.totalorder %s134, %s135
    %p146 = scmp.eq.s32.totalorder %s16, 0
    %p147 = por %p145, %p146
    %p148 = scmp.ne.s32.totalorder %s134, %s135
    %p149 = scmp.eq.s32.totalorder %s17, 1
    %p150 = por %p148, %p149
    %p152 = scmp.ne.s32.totalorder %s135, %s151
    %p153 = scmp.eq.s32.totalorder %s17, 0
    %p154 = por %p152, %p153
    %p155 = scmp.le.s32.totalorder 1, %s11
    %p156 = scmp.lt.s32.totalorder %s11, 3
    %p157 = pnand %p155, %p156
    %p158 = pneg %p157
    // Predicated region
    $region9: #{_forward.2} parent=5 // pred_check
      _
    $region10: #{_forward.2} parent=5 // pred_check_branch
      %160 = sbr.rel (%p157) target = $region12
    $region11: #{_forward.2} parent=5 // pred_region
      %s161 = ssub.s32 %s11, 1
      // Predicated region
      $region13: #{_forward.2} parent=11 // pred_check
        %p162 = pneg %p58
      $region14: #{_forward.2} parent=11 // pred_check_branch
        %164 = sbr.rel (%p162) target = $region16
      $region15: #{_forward.2} parent=11 // pred_region
        _
      $region16: #{_forward.2} parent=11 // pred_fallthru
        _
      // Predicated region
      $region17: #{_forward.2} parent=11 // pred_check
        %p165 = pneg %p79
      $region18: #{_forward.2} parent=11 // pred_check_branch
        %167 = sbr.rel (%p165) target = $region20
      $region19: #{_forward.2} parent=11 // pred_region
        _
      $region20: #{_forward.2} parent=11 // pred_fallthru
        _
      // Predicated region
      $region21: #{_forward.2} parent=11 // pred_check
        %p168 = pneg %p100
      $region22: #{_forward.2} parent=11 // pred_check_branch
        %170 = sbr.rel (%p168) target = $region24
      $region23: #{_forward.2} parent=11 // pred_region
        _
      $region24: #{_forward.2} parent=11 // pred_fallthru
        _
      // Predicated region
      $region25: #{_forward.2} parent=11 // pred_check
        %p171 = pneg %p121
      $region26: #{_forward.2} parent=11 // pred_check_branch
        %173 = sbr.rel (%p171) target = $region28
      $region27: #{_forward.2} parent=11 // pred_region
        _
      $region28: #{_forward.2} parent=11 // pred_fallthru
        _
    $region12: #{_forward.2} parent=5 // pred_fallthru
      _
    %p174 = scmp.lt.s32.totalorder %s11, 2
    // Predicated region
    $region29: #{_forward.2} parent=5 // pred_check
      %p175 = pneg %p174
    $region30: #{_forward.2} parent=5 // pred_check_branch
      %177 = sbr.rel (%p175) target = $region32
    $region31: #{_forward.2} parent=5 // pred_region
      // Predicated region
      $region33: #{_forward.2} parent=31 // pred_check
        %p178 = pneg %p31
      $region34: #{_forward.2} parent=31 // pred_check_branch
        %180 = sbr.rel (%p178) target = $region36
      $region35: #{_forward.2} parent=31 // pred_region
        %p181 = scmp.lt.s32.totalorder %s11, 1
        %s182 = scalar_select %p181, %s11, 1
        %s183 = smul.addr %s182, 100
        %s184 = smul.addr %s183, 8
        %s185 = scalar_lea.vmem %s0, %s184
      $region36: #{_forward.2} parent=31 // pred_fallthru
        _
    $region32: #{_forward.2} parent=5 // pred_fallthru
      _
    %p186 = scmp.le.s32.totalorder 1, %s11
    %p187 = scmp.lt.s32.totalorder %s11, 3
    %p188 = pnand %p186, %p187
    %p189 = pneg %p188
    // Predicated region
    $region37: #{_forward.2} parent=5 // pred_check
      _
    $region38: #{_forward.2} parent=5 // pred_check_branch
      %191 = sbr.rel (%p188) target = $region40
    $region39: #{_forward.2} parent=5 // pred_region
      %s192 = ssub.s32 %s11, 1
      %p193 = scmp.lt.s32.totalorder %s16, 1
      %s194 = scalar_select %p193, %s16, 1
      %s195 = smul.addr %s194, 100
      %s196 = smul.addr %s195, 8
      %s197 = scalar_lea.vmem %s0, %s196
      %p198 = pneg %p37
      %p199 = pneg %p34
      %p200 = pneg %p58
      %p201 = pneg %p55
      %p202 = pneg %p79
      %p203 = pneg %p76
      %p204 = pneg %p100
      %p205 = pneg %p97
      %p206 = pneg %p121
      %p207 = pneg %p118
      %p208 = pneg %p147
      %p209 = pneg %p144
      %p210 = scmp.lt.s32.totalorder %s16, 1
      %s211 = scalar_select %p210, %s16, 1
      %s212 = smul.addr %s211, 16
      %s213 = smul.addr %s212, 4
      %s214 = scalar_lea.vmem %s5, %s213
      %p215 = scmp.lt.s32.totalorder %s16, 1
      %s216 = scalar_select %p215, %s16, 1
      %s217 = smul.addr %s216, 100
      %s218 = smul.addr %s217, 8
      %s219 = scalar_lea.vmem %s0, %s218
      %p220 = scmp.lt.s32.totalorder %s16, 1
      %s221 = scalar_select %p220, %s16, 1
      %s222 = smul.addr %s221, 16
      %s223 = smul.addr %s222, 4
      %s224 = scalar_lea.vmem %s5, %s223
      %v226 = vld [vmem:[%s219] sm:$0xff]
      %v227 = vld [vmem:[%s219 + $0x8] sm:$0xff]
      %v228 = vld [vmem:[%s219 + $0x10] sm:$0xff]
      %v229 = vld [vmem:[%s219 + $0x18] sm:$0xff]
      %v230 = vld [vmem:[%s219 + $0x20] sm:$0xff]
      %v231 = vld [vmem:[%s219 + $0x28] sm:$0xff]
      %v232 = vld [vmem:[%s219 + $0x30] sm:$0xff]
      %v233 = vld [vmem:[%s219 + $0x38] sm:$0xff]
      %v234 = vld [vmem:[%s219 + $0x40] sm:$0xff]
      %v235 = vld [vmem:[%s219 + $0x48] sm:$0xff]
      %v236 = vld [vmem:[%s219 + $0x50] sm:$0xff]
      %v237 = vld [vmem:[%s219 + $0x58] sm:$0xff]
      %v238 = vld [vmem:[%s219 + $0x60] sm:$0xff]
      %v239 = vld [vmem:[%s219 + $0x68] sm:$0xff]
      %v240 = vld [vmem:[%s219 + $0x70] sm:$0xff]
      %v241 = vld [vmem:[%s219 + $0x78] sm:$0xff]
      %v242 = vld [vmem:[%s219 + $0x80] sm:$0xff]
      %v243 = vld [vmem:[%s219 + $0x88] sm:$0xff]
      %v244 = vld [vmem:[%s219 + $0x90] sm:$0xff]
      %v245 = vld [vmem:[%s219 + $0x98] sm:$0xff]
      %v246 = vld [vmem:[%s219 + $0xa0] sm:$0xff]
      %v247 = vld [vmem:[%s219 + $0xa8] sm:$0xff]
      %v248 = vld [vmem:[%s219 + $0xb0] sm:$0xff]
      %v249 = vld [vmem:[%s219 + $0xb8] sm:$0xff]
      %v250 = vld [vmem:[%s219 + $0xc0] sm:$0xff]
      %v251 = vld [vmem:[%s219 + $0xc8] sm:$0xff]
      %v252 = vld [vmem:[%s219 + $0xd0] sm:$0xff]
      %v253 = vld [vmem:[%s219 + $0xd8] sm:$0xff]
      %v254 = vld [vmem:[%s219 + $0xe0] sm:$0xff]
      %v255 = vld [vmem:[%s219 + $0xe8] sm:$0xff]
      %v256 = vld [vmem:[%s219 + $0xf0] sm:$0xff]
      %v257 = vld [vmem:[%s219 + $0xf8] sm:$0xff]
      %v258 = vld [vmem:[%s219 + $0x100] sm:$0xff]
      %v259 = vld [vmem:[%s219 + $0x108] sm:$0xff]
      %v260 = vld [vmem:[%s219 + $0x110] sm:$0xff]
      %v261 = vld [vmem:[%s219 + $0x118] sm:$0xff]
      %v262 = vld [vmem:[%s219 + $0x120] sm:$0xff]
      %v263 = vld [vmem:[%s219 + $0x128] sm:$0xff]
      %v264 = vld [vmem:[%s219 + $0x130] sm:$0xff]
      %v265 = vld [vmem:[%s219 + $0x138] sm:$0xff]
      %v266 = vld [vmem:[%s219 + $0x140] sm:$0xff]
      %v267 = vld [vmem:[%s219 + $0x148] sm:$0xff]
      %v268 = vld [vmem:[%s219 + $0x150] sm:$0xff]
      %v269 = vld [vmem:[%s219 + $0x158] sm:$0xff]
      %v270 = vld [vmem:[%s219 + $0x160] sm:$0xff]
      %v271 = vld [vmem:[%s219 + $0x168] sm:$0xff]
      %v272 = vld [vmem:[%s219 + $0x170] sm:$0xff]
      %v273 = vld [vmem:[%s219 + $0x178] sm:$0xff]
      %v274 = vld [vmem:[%s219 + $0x180] sm:$0xff]
      %v275 = vld [vmem:[%s219 + $0x188] sm:$0xff]
      %v276 = vld [vmem:[%s219 + $0x190] sm:$0xff]
      %v277 = vld [vmem:[%s219 + $0x198] sm:$0xff]
      %v278 = vld [vmem:[%s219 + $0x1a0] sm:$0xff]
      %v279 = vld [vmem:[%s219 + $0x1a8] sm:$0xff]
      %v280 = vld [vmem:[%s219 + $0x1b0] sm:$0xff]
      %v281 = vld [vmem:[%s219 + $0x1b8] sm:$0xff]
      %v282 = vld [vmem:[%s219 + $0x1c0] sm:$0xff]
      %v283 = vld [vmem:[%s219 + $0x1c8] sm:$0xff]
      %v284 = vld [vmem:[%s219 + $0x1d0] sm:$0xff]
      %v285 = vld [vmem:[%s219 + $0x1d8] sm:$0xff]
      %v286 = vld [vmem:[%s219 + $0x1e0] sm:$0xff]
      %v287 = vld [vmem:[%s219 + $0x1e8] sm:$0xff]
      %v288 = vld [vmem:[%s219 + $0x1f0] sm:$0xff]
      %v289 = vld [vmem:[%s219 + $0x1f8] sm:$0xff]
      %v290 = vld [vmem:[%s219 + $0x200] sm:$0xff]
      %v291 = vld [vmem:[%s219 + $0x208] sm:$0xff]
      %v292 = vld [vmem:[%s219 + $0x210] sm:$0xff]
      %v293 = vld [vmem:[%s219 + $0x218] sm:$0xff]
      %v294 = vld [vmem:[%s219 + $0x220] sm:$0xff]
      %v295 = vld [vmem:[%s219 + $0x228] sm:$0xff]
      %v296 = vld [vmem:[%s219 + $0x230] sm:$0xff]
      %v297 = vld [vmem:[%s219 + $0x238] sm:$0xff]
      %v298 = vld [vmem:[%s219 + $0x240] sm:$0xff]
      %v299 = vld [vmem:[%s219 + $0x248] sm:$0xff]
      %v300 = vld [vmem:[%s219 + $0x250] sm:$0xff]
      %v301 = vld [vmem:[%s219 + $0x258] sm:$0xff]
      %v302 = vld [vmem:[%s219 + $0x260] sm:$0xff]
      %v303 = vld [vmem:[%s219 + $0x268] sm:$0xff]
      %v304 = vld [vmem:[%s219 + $0x270] sm:$0xff]
      %v305 = vld [vmem:[%s219 + $0x278] sm:$0xff]
      %v306 = vld [vmem:[%s219 + $0x280] sm:$0xff]
      %v307 = vld [vmem:[%s219 + $0x288] sm:$0xff]
      %v308 = vld [vmem:[%s219 + $0x290] sm:$0xff]
      %v309 = vld [vmem:[%s219 + $0x298] sm:$0xff]
      %v310 = vld [vmem:[%s219 + $0x2a0] sm:$0xff]
      %v311 = vld [vmem:[%s219 + $0x2a8] sm:$0xff]
      %v312 = vld [vmem:[%s219 + $0x2b0] sm:$0xff]
      %v313 = vld [vmem:[%s219 + $0x2b8] sm:$0xff]
      %v314 = vld [vmem:[%s219 + $0x2c0] sm:$0xff]
      %v315 = vld [vmem:[%s219 + $0x2c8] sm:$0xff]
      %v316 = vld [vmem:[%s219 + $0x2d0] sm:$0xff]
      %v317 = vld [vmem:[%s219 + $0x2d8] sm:$0xff]
      %v318 = vld [vmem:[%s219 + $0x2e0] sm:$0xff]
      %v319 = vld [vmem:[%s219 + $0x2e8] sm:$0xff]
      %v320 = vld [vmem:[%s219 + $0x2f0] sm:$0xff]
      %v321 = vld [vmem:[%s219 + $0x2f8] sm:$0xff]
      %v322 = vld [vmem:[%s219 + $0x300] sm:$0xff]
      %v323 = vld [vmem:[%s219 + $0x308] sm:$0xff]
      %v324 = vld [vmem:[%s219 + $0x310] sm:$0xff]
      %v325 = vld [vmem:[%s219 + $0x318] sm:$0xff]
      %v326 = vld [vmem:[%s1] sm:$0xff]
      %v327 = vld [vmem:[%s1 + $0x8] sm:$0xff]
      %v328 = vld [vmem:[%s1 + $0x10] sm:$0xff]
      %v329 = vld [vmem:[%s1 + $0x18] sm:$0xff]
      %v330 = vld [vmem:[%s1 + $0x20] sm:$0xff]
      %v331 = vld [vmem:[%s1 + $0x28] sm:$0xff]
      %v332 = vld [vmem:[%s1 + $0x30] sm:$0xff]
      %v333 = vld [vmem:[%s1 + $0x38] sm:$0xff]
      %v334 = vld [vmem:[%s1 + $0x40] sm:$0xff]
      %v335 = vld [vmem:[%s1 + $0x48] sm:$0x7]
      %vm336 = vcmask 613376
      %v338 = vsel %vm336, %v226, 0
      %v341 = vsel %vm336, %v227, 0
      %v344 = vsel %vm336, %v228, 0
      %v347 = vsel %vm336, %v229, 0
      %v350 = vsel %vm336, %v230, 0
      %v353 = vsel %vm336, %v231, 0
      %v356 = vsel %vm336, %v232, 0
      %v359 = vsel %vm336, %v233, 0
      %v362 = vsel %vm336, %v234, 0
      %v365 = vsel %vm336, %v235, 0
      %v368 = vsel %vm336, %v236, 0
      %v371 = vsel %vm336, %v237, 0
      %v374 = vsel %vm336, %v238, 0
      %v377 = vsel %vm336, %v239, 0
      %v380 = vsel %vm336, %v240, 0
      %v383 = vsel %vm336, %v241, 0
      %v386 = vsel %vm336, %v242, 0
      %v389 = vsel %vm336, %v243, 0
      %v392 = vsel %vm336, %v244, 0
      %v395 = vsel %vm336, %v245, 0
      %v398 = vsel %vm336, %v246, 0
      %v401 = vsel %vm336, %v247, 0
      %v404 = vsel %vm336, %v248, 0
      %v407 = vsel %vm336, %v249, 0
      %v410 = vsel %vm336, %v250, 0
      %v413 = vsel %vm336, %v251, 0
      %v416 = vsel %vm336, %v252, 0
      %v419 = vsel %vm336, %v253, 0
      %v422 = vsel %vm336, %v254, 0
      %v425 = vsel %vm336, %v255, 0
      %v428 = vsel %vm336, %v256, 0
      %v431 = vsel %vm336, %v257, 0
      %v434 = vsel %vm336, %v258, 0
      %v437 = vsel %vm336, %v259, 0
      %v440 = vsel %vm336, %v260, 0
      %v443 = vsel %vm336, %v261, 0
      %v446 = vsel %vm336, %v262, 0
      %v449 = vsel %vm336, %v263, 0
      %v452 = vsel %vm336, %v264, 0
      %v455 = vsel %vm336, %v265, 0
      %v458 = vsel %vm336, %v266, 0
      %v461 = vsel %vm336, %v267, 0
      %v464 = vsel %vm336, %v268, 0
      %v467 = vsel %vm336, %v269, 0
      %v470 = vsel %vm336, %v270, 0
      %v473 = vsel %vm336, %v271, 0
      %v476 = vsel %vm336, %v272, 0
      %v479 = vsel %vm336, %v273, 0
      %v482 = vsel %vm336, %v274, 0
      %v485 = vsel %vm336, %v275, 0
      %v488 = vsel %vm336, %v276, 0
      %v491 = vsel %vm336, %v277, 0
      %v494 = vsel %vm336, %v278, 0
      %v497 = vsel %vm336, %v279, 0
      %v500 = vsel %vm336, %v280, 0
      %v503 = vsel %vm336, %v281, 0
      %v506 = vsel %vm336, %v282, 0
      %v509 = vsel %vm336, %v283, 0
      %v512 = vsel %vm336, %v284, 0
      %v515 = vsel %vm336, %v285, 0
      %v518 = vsel %vm336, %v286, 0
      %v521 = vsel %vm336, %v287, 0
      %v524 = vsel %vm336, %v288, 0
      %v527 = vsel %vm336, %v289, 0
      %v530 = vsel %vm336, %v290, 0
      %v533 = vsel %vm336, %v291, 0
      %v536 = vsel %vm336, %v292, 0
      %v539 = vsel %vm336, %v293, 0
      %v542 = vsel %vm336, %v294, 0
      %v545 = vsel %vm336, %v295, 0
      %v548 = vsel %vm336, %v296, 0
      %v551 = vsel %vm336, %v297, 0
      %v554 = vsel %vm336, %v298, 0
      %v557 = vsel %vm336, %v299, 0
      %v560 = vsel %vm336, %v300, 0
      %v563 = vsel %vm336, %v301, 0
      %v566 = vsel %vm336, %v302, 0
      %v569 = vsel %vm336, %v303, 0
      %v572 = vsel %vm336, %v304, 0
      %v575 = vsel %vm336, %v305, 0
      %v578 = vsel %vm336, %v306, 0
      %v581 = vsel %vm336, %v307, 0
      %v584 = vsel %vm336, %v308, 0
      %v587 = vsel %vm336, %v309, 0
      %v590 = vsel %vm336, %v310, 0
      %v593 = vsel %vm336, %v311, 0
      %v596 = vsel %vm336, %v312, 0
      %v599 = vsel %vm336, %v313, 0
      %v602 = vsel %vm336, %v314, 0
      %v605 = vsel %vm336, %v315, 0
      %v608 = vsel %vm336, %v316, 0
      %v611 = vsel %vm336, %v317, 0
      %v614 = vsel %vm336, %v318, 0
      %v617 = vsel %vm336, %v319, 0
      %v620 = vsel %vm336, %v320, 0
      %v623 = vsel %vm336, %v321, 0
      %v626 = vsel %vm336, %v322, 0
      %v629 = vsel %vm336, %v323, 0
      %v632 = vsel %vm336, %v324, 0
      %v635 = vsel %vm336, %v325, 0
      %vm637 = vcmask 1042432
      %v639 = vsel %vm637, %v335, 0
      %641 = vmatpush.msra.mxu0 0.0
      %642 = vmatpush.msra.mxu0 0.0
      %643 = vmatpush.msra.mxu0 0.0
      %644 = vmatpush.msra.mxu0 0.0
      %645 = vmatpush.msra.mxu0 0.0
      %646 = vmatpush.msra.mxu0 0.0
      %647 = vmatpush.msra.mxu0 %v639
      %648 = vmatpush.msra.mxu0 %v334
      %649 = vmatpush.msra.mxu0 %v333
      %650 = vmatpush.msra.mxu0 %v332
      %651 = vmatpush.msra.mxu0 %v331
      %652 = vmatpush.msra.mxu0 %v330
      %653 = vmatpush.msra.mxu0 %v329
      %654 = vmatpush.msra.mxu0 %v328
      %655 = vmatpush.msra.mxu0 %v327
      %656 = vmatpush.msra.mxu0 %v326
      %657 = vmatmul.f32.gmra.mxu0 %v338
      %v658 = vpop.f32.mrf.mxu0
      %v659 = vadd.f32 0.0, %v658
      %660 = vmatmul.f32.gmra.mxu0 %v341
      %v661 = vpop.f32.mrf.mxu0
      %v662 = vadd.f32 0.0, %v661
      %663 = vmatmul.f32.gmra.mxu0 %v344
      %v664 = vpop.f32.mrf.mxu0
      %v665 = vadd.f32 0.0, %v664
      %666 = vmatmul.f32.gmra.mxu0 %v347
      %v667 = vpop.f32.mrf.mxu0
      %v668 = vadd.f32 0.0, %v667
      %669 = vmatmul.f32.gmra.mxu0 %v350
      %v670 = vpop.f32.mrf.mxu0
      %v671 = vadd.f32 0.0, %v670
      %672 = vmatmul.f32.gmra.mxu0 %v353
      %v673 = vpop.f32.mrf.mxu0
      %v674 = vadd.f32 0.0, %v673
      %675 = vmatmul.f32.gmra.mxu0 %v356
      %v676 = vpop.f32.mrf.mxu0
      %v677 = vadd.f32 0.0, %v676
      %678 = vmatmul.f32.gmra.mxu0 %v359
      %v679 = vpop.f32.mrf.mxu0
      %v680 = vadd.f32 0.0, %v679
      %681 = vmatmul.f32.gmra.mxu0 %v362
      %v682 = vpop.f32.mrf.mxu0
      %v683 = vadd.f32 0.0, %v682
      %684 = vmatmul.f32.gmra.mxu0 %v365
      %v685 = vpop.f32.mrf.mxu0
      %v686 = vadd.f32 0.0, %v685
      %687 = vmatmul.f32.gmra.mxu0 %v368
      %v688 = vpop.f32.mrf.mxu0
      %v689 = vadd.f32 0.0, %v688
      %690 = vmatmul.f32.gmra.mxu0 %v371
      %v691 = vpop.f32.mrf.mxu0
      %v692 = vadd.f32 0.0, %v691
      %693 = vmatmul.f32.gmra.mxu0 %v374
      %v694 = vpop.f32.mrf.mxu0
      %v695 = vadd.f32 0.0, %v694
      %696 = vmatmul.f32.gmra.mxu0 %v377
      %v697 = vpop.f32.mrf.mxu0
      %v698 = vadd.f32 0.0, %v697
      %699 = vmatmul.f32.gmra.mxu0 %v380
      %v700 = vpop.f32.mrf.mxu0
      %v701 = vadd.f32 0.0, %v700
      %702 = vmatmul.f32.gmra.mxu0 %v383
      %v703 = vpop.f32.mrf.mxu0
      %v704 = vadd.f32 0.0, %v703
      %705 = vmatmul.f32.gmra.mxu0 %v386
      %v706 = vpop.f32.mrf.mxu0
      %v707 = vadd.f32 0.0, %v706
      %708 = vmatmul.f32.gmra.mxu0 %v389
      %v709 = vpop.f32.mrf.mxu0
      %v710 = vadd.f32 0.0, %v709
      %711 = vmatmul.f32.gmra.mxu0 %v392
      %v712 = vpop.f32.mrf.mxu0
      %v713 = vadd.f32 0.0, %v712
      %714 = vmatmul.f32.gmra.mxu0 %v395
      %v715 = vpop.f32.mrf.mxu0
      %v716 = vadd.f32 0.0, %v715
      %717 = vmatmul.f32.gmra.mxu0 %v398
      %v718 = vpop.f32.mrf.mxu0
      %v719 = vadd.f32 0.0, %v718
      %720 = vmatmul.f32.gmra.mxu0 %v401
      %v721 = vpop.f32.mrf.mxu0
      %v722 = vadd.f32 0.0, %v721
      %723 = vmatmul.f32.gmra.mxu0 %v404
      %v724 = vpop.f32.mrf.mxu0
      %v725 = vadd.f32 0.0, %v724
      %726 = vmatmul.f32.gmra.mxu0 %v407
      %v727 = vpop.f32.mrf.mxu0
      %v728 = vadd.f32 0.0, %v727
      %729 = vmatmul.f32.gmra.mxu0 %v410
      %v730 = vpop.f32.mrf.mxu0
      %v731 = vadd.f32 0.0, %v730
      %732 = vmatmul.f32.gmra.mxu0 %v413
      %v733 = vpop.f32.mrf.mxu0
      %v734 = vadd.f32 0.0, %v733
      %735 = vmatmul.f32.gmra.mxu0 %v416
      %v736 = vpop.f32.mrf.mxu0
      %v737 = vadd.f32 0.0, %v736
      %738 = vmatmul.f32.gmra.mxu0 %v419
      %v739 = vpop.f32.mrf.mxu0
      %v740 = vadd.f32 0.0, %v739
      %741 = vmatmul.f32.gmra.mxu0 %v422
      %v742 = vpop.f32.mrf.mxu0
      %v743 = vadd.f32 0.0, %v742
      %744 = vmatmul.f32.gmra.mxu0 %v425
      %v745 = vpop.f32.mrf.mxu0
      %v746 = vadd.f32 0.0, %v745
      %747 = vmatmul.f32.gmra.mxu0 %v428
      %v748 = vpop.f32.mrf.mxu0
      %v749 = vadd.f32 0.0, %v748
      %750 = vmatmul.f32.gmra.mxu0 %v431
      %v751 = vpop.f32.mrf.mxu0
      %v752 = vadd.f32 0.0, %v751
      %753 = vmatmul.f32.gmra.mxu0 %v434
      %v754 = vpop.f32.mrf.mxu0
      %v755 = vadd.f32 0.0, %v754
      %756 = vmatmul.f32.gmra.mxu0 %v437
      %v757 = vpop.f32.mrf.mxu0
      %v758 = vadd.f32 0.0, %v757
      %759 = vmatmul.f32.gmra.mxu0 %v440
      %v760 = vpop.f32.mrf.mxu0
      %v761 = vadd.f32 0.0, %v760
      %762 = vmatmul.f32.gmra.mxu0 %v443
      %v763 = vpop.f32.mrf.mxu0
      %v764 = vadd.f32 0.0, %v763
      %765 = vmatmul.f32.gmra.mxu0 %v446
      %v766 = vpop.f32.mrf.mxu0
      %v767 = vadd.f32 0.0, %v766
      %768 = vmatmul.f32.gmra.mxu0 %v449
      %v769 = vpop.f32.mrf.mxu0
      %v770 = vadd.f32 0.0, %v769
      %771 = vmatmul.f32.gmra.mxu0 %v452
      %v772 = vpop.f32.mrf.mxu0
      %v773 = vadd.f32 0.0, %v772
      %774 = vmatmul.f32.gmra.mxu0 %v455
      %v775 = vpop.f32.mrf.mxu0
      %v776 = vadd.f32 0.0, %v775
      %777 = vmatmul.f32.gmra.mxu0 %v458
      %v778 = vpop.f32.mrf.mxu0
      %v779 = vadd.f32 0.0, %v778
      %780 = vmatmul.f32.gmra.mxu0 %v461
      %v781 = vpop.f32.mrf.mxu0
      %v782 = vadd.f32 0.0, %v781
      %783 = vmatmul.f32.gmra.mxu0 %v464
      %v784 = vpop.f32.mrf.mxu0
      %v785 = vadd.f32 0.0, %v784
      %786 = vmatmul.f32.gmra.mxu0 %v467
      %v787 = vpop.f32.mrf.mxu0
      %v788 = vadd.f32 0.0, %v787
      %789 = vmatmul.f32.gmra.mxu0 %v470
      %v790 = vpop.f32.mrf.mxu0
      %v791 = vadd.f32 0.0, %v790
      %792 = vmatmul.f32.gmra.mxu0 %v473
      %v793 = vpop.f32.mrf.mxu0
      %v794 = vadd.f32 0.0, %v793
      %795 = vmatmul.f32.gmra.mxu0 %v476
      %v796 = vpop.f32.mrf.mxu0
      %v797 = vadd.f32 0.0, %v796
      %798 = vmatmul.f32.gmra.mxu0 %v479
      %v799 = vpop.f32.mrf.mxu0
      %v800 = vadd.f32 0.0, %v799
      %801 = vmatmul.f32.gmra.mxu0 %v482
      %v802 = vpop.f32.mrf.mxu0
      %v803 = vadd.f32 0.0, %v802
      %804 = vmatmul.f32.gmra.mxu0 %v485
      %v805 = vpop.f32.mrf.mxu0
      %v806 = vadd.f32 0.0, %v805
      %807 = vmatmul.f32.gmra.mxu0 %v488
      %v808 = vpop.f32.mrf.mxu0
      %v809 = vadd.f32 0.0, %v808
      %810 = vmatmul.f32.gmra.mxu0 %v491
      %v811 = vpop.f32.mrf.mxu0
      %v812 = vadd.f32 0.0, %v811
      %813 = vmatmul.f32.gmra.mxu0 %v494
      %v814 = vpop.f32.mrf.mxu0
      %v815 = vadd.f32 0.0, %v814
      %816 = vmatmul.f32.gmra.mxu0 %v497
      %v817 = vpop.f32.mrf.mxu0
      %v818 = vadd.f32 0.0, %v817
      %819 = vmatmul.f32.gmra.mxu0 %v500
      %v820 = vpop.f32.mrf.mxu0
      %v821 = vadd.f32 0.0, %v820
      %822 = vmatmul.f32.gmra.mxu0 %v503
      %v823 = vpop.f32.mrf.mxu0
      %v824 = vadd.f32 0.0, %v823
      %825 = vmatmul.f32.gmra.mxu0 %v506
      %v826 = vpop.f32.mrf.mxu0
      %v827 = vadd.f32 0.0, %v826
      %828 = vmatmul.f32.gmra.mxu0 %v509
      %v829 = vpop.f32.mrf.mxu0
      %v830 = vadd.f32 0.0, %v829
      %831 = vmatmul.f32.gmra.mxu0 %v512
      %v832 = vpop.f32.mrf.mxu0
      %v833 = vadd.f32 0.0, %v832
      %834 = vmatmul.f32.gmra.mxu0 %v515
      %v835 = vpop.f32.mrf.mxu0
      %v836 = vadd.f32 0.0, %v835
      %837 = vmatmul.f32.gmra.mxu0 %v518
      %v838 = vpop.f32.mrf.mxu0
      %v839 = vadd.f32 0.0, %v838
      %840 = vmatmul.f32.gmra.mxu0 %v521
      %v841 = vpop.f32.mrf.mxu0
      %v842 = vadd.f32 0.0, %v841
      %843 = vmatmul.f32.gmra.mxu0 %v524
      %v844 = vpop.f32.mrf.mxu0
      %v845 = vadd.f32 0.0, %v844
      %846 = vmatmul.f32.gmra.mxu0 %v527
      %v847 = vpop.f32.mrf.mxu0
      %v848 = vadd.f32 0.0, %v847
      %849 = vmatmul.f32.gmra.mxu0 %v530
      %v850 = vpop.f32.mrf.mxu0
      %v851 = vadd.f32 0.0, %v850
      %852 = vmatmul.f32.gmra.mxu0 %v533
      %v853 = vpop.f32.mrf.mxu0
      %v854 = vadd.f32 0.0, %v853
      %855 = vmatmul.f32.gmra.mxu0 %v536
      %v856 = vpop.f32.mrf.mxu0
      %v857 = vadd.f32 0.0, %v856
      %858 = vmatmul.f32.gmra.mxu0 %v539
      %v859 = vpop.f32.mrf.mxu0
      %v860 = vadd.f32 0.0, %v859
      %861 = vmatmul.f32.gmra.mxu0 %v542
      %v862 = vpop.f32.mrf.mxu0
      %v863 = vadd.f32 0.0, %v862
      %864 = vmatmul.f32.gmra.mxu0 %v545
      %v865 = vpop.f32.mrf.mxu0
      %v866 = vadd.f32 0.0, %v865
      %867 = vmatmul.f32.gmra.mxu0 %v548
      %v868 = vpop.f32.mrf.mxu0
      %v869 = vadd.f32 0.0, %v868
      %870 = vmatmul.f32.gmra.mxu0 %v551
      %v871 = vpop.f32.mrf.mxu0
      %v872 = vadd.f32 0.0, %v871
      %873 = vmatmul.f32.gmra.mxu0 %v554
      %v874 = vpop.f32.mrf.mxu0
      %v875 = vadd.f32 0.0, %v874
      %876 = vmatmul.f32.gmra.mxu0 %v557
      %v877 = vpop.f32.mrf.mxu0
      %v878 = vadd.f32 0.0, %v877
      %879 = vmatmul.f32.gmra.mxu0 %v560
      %v880 = vpop.f32.mrf.mxu0
      %v881 = vadd.f32 0.0, %v880
      %882 = vmatmul.f32.gmra.mxu0 %v563
      %v883 = vpop.f32.mrf.mxu0
      %v884 = vadd.f32 0.0, %v883
      %885 = vmatmul.f32.gmra.mxu0 %v566
      %v886 = vpop.f32.mrf.mxu0
      %v887 = vadd.f32 0.0, %v886
      %888 = vmatmul.f32.gmra.mxu0 %v569
      %v889 = vpop.f32.mrf.mxu0
      %v890 = vadd.f32 0.0, %v889
      %891 = vmatmul.f32.gmra.mxu0 %v572
      %v892 = vpop.f32.mrf.mxu0
      %v893 = vadd.f32 0.0, %v892
      %894 = vmatmul.f32.gmra.mxu0 %v575
      %v895 = vpop.f32.mrf.mxu0
      %v896 = vadd.f32 0.0, %v895
      %897 = vmatmul.f32.gmra.mxu0 %v578
      %v898 = vpop.f32.mrf.mxu0
      %v899 = vadd.f32 0.0, %v898
      %900 = vmatmul.f32.gmra.mxu0 %v581
      %v901 = vpop.f32.mrf.mxu0
      %v902 = vadd.f32 0.0, %v901
      %903 = vmatmul.f32.gmra.mxu0 %v584
      %v904 = vpop.f32.mrf.mxu0
      %v905 = vadd.f32 0.0, %v904
      %906 = vmatmul.f32.gmra.mxu0 %v587
      %v907 = vpop.f32.mrf.mxu0
      %v908 = vadd.f32 0.0, %v907
      %909 = vmatmul.f32.gmra.mxu0 %v590
      %v910 = vpop.f32.mrf.mxu0
      %v911 = vadd.f32 0.0, %v910
      %912 = vmatmul.f32.gmra.mxu0 %v593
      %v913 = vpop.f32.mrf.mxu0
      %v914 = vadd.f32 0.0, %v913
      %915 = vmatmul.f32.gmra.mxu0 %v596
      %v916 = vpop.f32.mrf.mxu0
      %v917 = vadd.f32 0.0, %v916
      %918 = vmatmul.f32.gmra.mxu0 %v599
      %v919 = vpop.f32.mrf.mxu0
      %v920 = vadd.f32 0.0, %v919
      %921 = vmatmul.f32.gmra.mxu0 %v602
      %v922 = vpop.f32.mrf.mxu0
      %v923 = vadd.f32 0.0, %v922
      %924 = vmatmul.f32.gmra.mxu0 %v605
      %v925 = vpop.f32.mrf.mxu0
      %v926 = vadd.f32 0.0, %v925
      %927 = vmatmul.f32.gmra.mxu0 %v608
      %v928 = vpop.f32.mrf.mxu0
      %v929 = vadd.f32 0.0, %v928
      %930 = vmatmul.f32.gmra.mxu0 %v611
      %v931 = vpop.f32.mrf.mxu0
      %v932 = vadd.f32 0.0, %v931
      %933 = vmatmul.f32.gmra.mxu0 %v614
      %v934 = vpop.f32.mrf.mxu0
      %v935 = vadd.f32 0.0, %v934
      %936 = vmatmul.f32.gmra.mxu0 %v617
      %v937 = vpop.f32.mrf.mxu0
      %v938 = vadd.f32 0.0, %v937
      %939 = vmatmul.f32.gmra.mxu0 %v620
      %v940 = vpop.f32.mrf.mxu0
      %v941 = vadd.f32 0.0, %v940
      %942 = vmatmul.f32.gmra.mxu0 %v623
      %v943 = vpop.f32.mrf.mxu0
      %v944 = vadd.f32 0.0, %v943
      %945 = vmatmul.f32.gmra.mxu0 %v626
      %v946 = vpop.f32.mrf.mxu0
      %v947 = vadd.f32 0.0, %v946
      %948 = vmatmul.f32.gmra.mxu0 %v629
      %v949 = vpop.f32.mrf.mxu0
      %v950 = vadd.f32 0.0, %v949
      %951 = vmatmul.f32.gmra.mxu0 %v632
      %v952 = vpop.f32.mrf.mxu0
      %v953 = vadd.f32 0.0, %v952
      %954 = vmatmul.f32.gmra.mxu0 %v635
      %v955 = vpop.f32.mrf.mxu0
      %v956 = vadd.f32 0.0, %v955
      %957 = vdwg.mxu0
      %vm958 = vcmask 523264
      %959 = vst.msk [vmem:[#allocation2] sm:$0xff] %vm958, %v659
      %960 = vst.msk [vmem:[#allocation2 + $0x8] sm:$0xff] %vm958, %v662
      %961 = vst.msk [vmem:[#allocation2 + $0x10] sm:$0xff] %vm958, %v665
      %962 = vst.msk [vmem:[#allocation2 + $0x18] sm:$0xff] %vm958, %v668
      %963 = vst.msk [vmem:[#allocation2 + $0x20] sm:$0xff] %vm958, %v671
      %964 = vst.msk [vmem:[#allocation2 + $0x28] sm:$0xff] %vm958, %v674
      %965 = vst.msk [vmem:[#allocation2 + $0x30] sm:$0xff] %vm958, %v677
      %966 = vst.msk [vmem:[#allocation2 + $0x38] sm:$0xff] %vm958, %v680
      %967 = vst.msk [vmem:[#allocation2 + $0x40] sm:$0xff] %vm958, %v683
      %968 = vst.msk [vmem:[#allocation2 + $0x48] sm:$0xff] %vm958, %v686
      %969 = vst.msk [vmem:[#allocation2 + $0x50] sm:$0xff] %vm958, %v689
      %970 = vst.msk [vmem:[#allocation2 + $0x58] sm:$0xff] %vm958, %v692
      %971 = vst.msk [vmem:[#allocation2 + $0x60] sm:$0xff] %vm958, %v695
      %972 = vst.msk [vmem:[#allocation2 + $0x68] sm:$0xff] %vm958, %v698
      %973 = vst.msk [vmem:[#allocation2 + $0x70] sm:$0xff] %vm958, %v701
      %974 = vst.msk [vmem:[#allocation2 + $0x78] sm:$0xff] %vm958, %v704
      %975 = vst.msk [vmem:[#allocation2 + $0x80] sm:$0xff] %vm958, %v707
      %976 = vst.msk [vmem:[#allocation2 + $0x88] sm:$0xff] %vm958, %v710
      %977 = vst.msk [vmem:[#allocation2 + $0x90] sm:$0xff] %vm958, %v713
      %978 = vst.msk [vmem:[#allocation2 + $0x98] sm:$0xff] %vm958, %v716
      %979 = vst.msk [vmem:[#allocation2 + $0xa0] sm:$0xff] %vm958, %v719
      %980 = vst.msk [vmem:[#allocation2 + $0xa8] sm:$0xff] %vm958, %v722
      %981 = vst.msk [vmem:[#allocation2 + $0xb0] sm:$0xff] %vm958, %v725
      %982 = vst.msk [vmem:[#allocation2 + $0xb8] sm:$0xff] %vm958, %v728
      %983 = vst.msk [vmem:[#allocation2 + $0xc0] sm:$0xff] %vm958, %v731
      %984 = vst.msk [vmem:[#allocation2 + $0xc8] sm:$0xff] %vm958, %v734
      %985 = vst.msk [vmem:[#allocation2 + $0xd0] sm:$0xff] %vm958, %v737
      %986 = vst.msk [vmem:[#allocation2 + $0xd8] sm:$0xff] %vm958, %v740
      %987 = vst.msk [vmem:[#allocation2 + $0xe0] sm:$0xff] %vm958, %v743
      %988 = vst.msk [vmem:[#allocation2 + $0xe8] sm:$0xff] %vm958, %v746
      %989 = vst.msk [vmem:[#allocation2 + $0xf0] sm:$0xff] %vm958, %v749
      %990 = vst.msk [vmem:[#allocation2 + $0xf8] sm:$0xff] %vm958, %v752
      %991 = vst.msk [vmem:[#allocation2 + $0x100] sm:$0xff] %vm958, %v755
      %992 = vst.msk [vmem:[#allocation2 + $0x108] sm:$0xff] %vm958, %v758
      %993 = vst.msk [vmem:[#allocation2 + $0x110] sm:$0xff] %vm958, %v761
      %994 = vst.msk [vmem:[#allocation2 + $0x118] sm:$0xff] %vm958, %v764
      %995 = vst.msk [vmem:[#allocation2 + $0x120] sm:$0xff] %vm958, %v767
      %996 = vst.msk [vmem:[#allocation2 + $0x128] sm:$0xff] %vm958, %v770
      %997 = vst.msk [vmem:[#allocation2 + $0x130] sm:$0xff] %vm958, %v773
      %998 = vst.msk [vmem:[#allocation2 + $0x138] sm:$0xff] %vm958, %v776
      %999 = vst.msk [vmem:[#allocation2 + $0x140] sm:$0xff] %vm958, %v779
      %1000 = vst.msk [vmem:[#allocation2 + $0x148] sm:$0xff] %vm958, %v782
      %1001 = vst.msk [vmem:[#allocation2 + $0x150] sm:$0xff] %vm958, %v785
      %1002 = vst.msk [vmem:[#allocation2 + $0x158] sm:$0xff] %vm958, %v788
      %1003 = vst.msk [vmem:[#allocation2 + $0x160] sm:$0xff] %vm958, %v791
      %1004 = vst.msk [vmem:[#allocation2 + $0x168] sm:$0xff] %vm958, %v794
      %1005 = vst.msk [vmem:[#allocation2 + $0x170] sm:$0xff] %vm958, %v797
      %1006 = vst.msk [vmem:[#allocation2 + $0x178] sm:$0xff] %vm958, %v800
      %1007 = vst.msk [vmem:[#allocation2 + $0x180] sm:$0xff] %vm958, %v803
      %1008 = vst.msk [vmem:[#allocation2 + $0x188] sm:$0xff] %vm958, %v806
      %1009 = vst.msk [vmem:[#allocation2 + $0x190] sm:$0xff] %vm958, %v809
      %1010 = vst.msk [vmem:[#allocation2 + $0x198] sm:$0xff] %vm958, %v812
      %1011 = vst.msk [vmem:[#allocation2 + $0x1a0] sm:$0xff] %vm958, %v815
      %1012 = vst.msk [vmem:[#allocation2 + $0x1a8] sm:$0xff] %vm958, %v818
      %1013 = vst.msk [vmem:[#allocation2 + $0x1b0] sm:$0xff] %vm958, %v821
      %1014 = vst.msk [vmem:[#allocation2 + $0x1b8] sm:$0xff] %vm958, %v824
      %1015 = vst.msk [vmem:[#allocation2 + $0x1c0] sm:$0xff] %vm958, %v827
      %1016 = vst.msk [vmem:[#allocation2 + $0x1c8] sm:$0xff] %vm958, %v830
      %1017 = vst.msk [vmem:[#allocation2 + $0x1d0] sm:$0xff] %vm958, %v833
      %1018 = vst.msk [vmem:[#allocation2 + $0x1d8] sm:$0xff] %vm958, %v836
      %1019 = vst.msk [vmem:[#allocation2 + $0x1e0] sm:$0xff] %vm958, %v839
      %1020 = vst.msk [vmem:[#allocation2 + $0x1e8] sm:$0xff] %vm958, %v842
      %1021 = vst.msk [vmem:[#allocation2 + $0x1f0] sm:$0xff] %vm958, %v845
      %1022 = vst.msk [vmem:[#allocation2 + $0x1f8] sm:$0xff] %vm958, %v848
      %1023 = vst.msk [vmem:[#allocation2 + $0x200] sm:$0xff] %vm958, %v851
      %1024 = vst.msk [vmem:[#allocation2 + $0x208] sm:$0xff] %vm958, %v854
      %1025 = vst.msk [vmem:[#allocation2 + $0x210] sm:$0xff] %vm958, %v857
      %1026 = vst.msk [vmem:[#allocation2 + $0x218] sm:$0xff] %vm958, %v860
      %1027 = vst.msk [vmem:[#allocation2 + $0x220] sm:$0xff] %vm958, %v863
      %1028 = vst.msk [vmem:[#allocation2 + $0x228] sm:$0xff] %vm958, %v866
      %1029 = vst.msk [vmem:[#allocation2 + $0x230] sm:$0xff] %vm958, %v869
      %1030 = vst.msk [vmem:[#allocation2 + $0x238] sm:$0xff] %vm958, %v872
      %1031 = vst.msk [vmem:[#allocation2 + $0x240] sm:$0xff] %vm958, %v875
      %1032 = vst.msk [vmem:[#allocation2 + $0x248] sm:$0xff] %vm958, %v878
      %1033 = vst.msk [vmem:[#allocation2 + $0x250] sm:$0xff] %vm958, %v881
      %1034 = vst.msk [vmem:[#allocation2 + $0x258] sm:$0xff] %vm958, %v884
      %1035 = vst.msk [vmem:[#allocation2 + $0x260] sm:$0xff] %vm958, %v887
      %1036 = vst.msk [vmem:[#allocation2 + $0x268] sm:$0xff] %vm958, %v890
      %1037 = vst.msk [vmem:[#allocation2 + $0x270] sm:$0xff] %vm958, %v893
      %1038 = vst.msk [vmem:[#allocation2 + $0x278] sm:$0xff] %vm958, %v896
      %1039 = vst.msk [vmem:[#allocation2 + $0x280] sm:$0xff] %vm958, %v899
      %1040 = vst.msk [vmem:[#allocation2 + $0x288] sm:$0xff] %vm958, %v902
      %1041 = vst.msk [vmem:[#allocation2 + $0x290] sm:$0xff] %vm958, %v905
      %1042 = vst.msk [vmem:[#allocation2 + $0x298] sm:$0xff] %vm958, %v908
      %1043 = vst.msk [vmem:[#allocation2 + $0x2a0] sm:$0xff] %vm958, %v911
      %1044 = vst.msk [vmem:[#allocation2 + $0x2a8] sm:$0xff] %vm958, %v914
      %1045 = vst.msk [vmem:[#allocation2 + $0x2b0] sm:$0xff] %vm958, %v917
      %1046 = vst.msk [vmem:[#allocation2 + $0x2b8] sm:$0xff] %vm958, %v920
      %1047 = vst.msk [vmem:[#allocation2 + $0x2c0] sm:$0xff] %vm958, %v923
      %1048 = vst.msk [vmem:[#allocation2 + $0x2c8] sm:$0xff] %vm958, %v926
      %1049 = vst.msk [vmem:[#allocation2 + $0x2d0] sm:$0xff] %vm958, %v929
      %1050 = vst.msk [vmem:[#allocation2 + $0x2d8] sm:$0xff] %vm958, %v932
      %1051 = vst.msk [vmem:[#allocation2 + $0x2e0] sm:$0xff] %vm958, %v935
      %1052 = vst.msk [vmem:[#allocation2 + $0x2e8] sm:$0xff] %vm958, %v938
      %1053 = vst.msk [vmem:[#allocation2 + $0x2f0] sm:$0xff] %vm958, %v941
      %1054 = vst.msk [vmem:[#allocation2 + $0x2f8] sm:$0xff] %vm958, %v944
      %1055 = vst.msk [vmem:[#allocation2 + $0x300] sm:$0xff] %vm958, %v947
      %1056 = vst.msk [vmem:[#allocation2 + $0x308] sm:$0xff] %vm958, %v950
      %1057 = vst.msk [vmem:[#allocation2 + $0x310] sm:$0xff] %vm958, %v953
      %1058 = vst.msk [vmem:[#allocation2 + $0x318] sm:$0xff] %vm958, %v956
      %v1059 = vld [vmem:[#allocation2] sm:$0xff]
      %v1060 = vld [vmem:[#allocation2 + $0x8] sm:$0xff]
      %v1061 = vld [vmem:[#allocation2 + $0x10] sm:$0xff]
      %v1062 = vld [vmem:[#allocation2 + $0x18] sm:$0xff]
      %v1063 = vld [vmem:[#allocation2 + $0x20] sm:$0xff]
      %v1064 = vld [vmem:[#allocation2 + $0x28] sm:$0xff]
      %v1065 = vld [vmem:[#allocation2 + $0x30] sm:$0xff]
      %v1066 = vld [vmem:[#allocation2 + $0x38] sm:$0xff]
      %v1067 = vld [vmem:[#allocation2 + $0x40] sm:$0xff]
      %v1068 = vld [vmem:[#allocation2 + $0x48] sm:$0xff]
      %v1069 = vld [vmem:[#allocation2 + $0x50] sm:$0xff]
      %v1070 = vld [vmem:[#allocation2 + $0x58] sm:$0xff]
      %v1071 = vld [vmem:[#allocation2 + $0x60] sm:$0xff]
      %v1072 = vld [vmem:[#allocation2 + $0x68] sm:$0xff]
      %v1073 = vld [vmem:[#allocation2 + $0x70] sm:$0xff]
      %v1074 = vld [vmem:[#allocation2 + $0x78] sm:$0xff]
      %v1075 = vld [vmem:[#allocation2 + $0x80] sm:$0xff]
      %v1076 = vld [vmem:[#allocation2 + $0x88] sm:$0xff]
      %v1077 = vld [vmem:[#allocation2 + $0x90] sm:$0xff]
      %v1078 = vld [vmem:[#allocation2 + $0x98] sm:$0xff]
      %v1079 = vld [vmem:[#allocation2 + $0xa0] sm:$0xff]
      %v1080 = vld [vmem:[#allocation2 + $0xa8] sm:$0xff]
      %v1081 = vld [vmem:[#allocation2 + $0xb0] sm:$0xff]
      %v1082 = vld [vmem:[#allocation2 + $0xb8] sm:$0xff]
      %v1083 = vld [vmem:[#allocation2 + $0xc0] sm:$0xf]
      %v1084 = vld [vmem:[#allocation2 + $0xc8] sm:$0xff]
      %v1085 = vld [vmem:[#allocation2 + $0xd0] sm:$0xff]
      %v1086 = vld [vmem:[#allocation2 + $0xd8] sm:$0xff]
      %v1087 = vld [vmem:[#allocation2 + $0xe0] sm:$0xff]
      %v1088 = vld [vmem:[#allocation2 + $0xe8] sm:$0xff]
      %v1089 = vld [vmem:[#allocation2 + $0xf0] sm:$0xff]
      %v1090 = vld [vmem:[#allocation2 + $0xf8] sm:$0xff]
      %v1091 = vld [vmem:[#allocation2 + $0x100] sm:$0xff]
      %v1092 = vld [vmem:[#allocation2 + $0x108] sm:$0xff]
      %v1093 = vld [vmem:[#allocation2 + $0x110] sm:$0xff]
      %v1094 = vld [vmem:[#allocation2 + $0x118] sm:$0xff]
      %v1095 = vld [vmem:[#allocation2 + $0x120] sm:$0xff]
      %v1096 = vld [vmem:[#allocation2 + $0x128] sm:$0xff]
      %v1097 = vld [vmem:[#allocation2 + $0x130] sm:$0xff]
      %v1098 = vld [vmem:[#allocation2 + $0x138] sm:$0xff]
      %v1099 = vld [vmem:[#allocation2 + $0x140] sm:$0xff]
      %v1100 = vld [vmem:[#allocation2 + $0x148] sm:$0xff]
      %v1101 = vld [vmem:[#allocation2 + $0x150] sm:$0xff]
      %v1102 = vld [vmem:[#allocation2 + $0x158] sm:$0xff]
      %v1103 = vld [vmem:[#allocation2 + $0x160] sm:$0xff]
      %v1104 = vld [vmem:[#allocation2 + $0x168] sm:$0xff]
      %v1105 = vld [vmem:[#allocation2 + $0x170] sm:$0xff]
      %v1106 = vld [vmem:[#allocation2 + $0x178] sm:$0xff]
      %v1107 = vld [vmem:[#allocation2 + $0x180] sm:$0xff]
      %v1108 = vld [vmem:[#allocation2 + $0x188] sm:$0xf]
      %v1109 = vmax.f32 %v1059, %v1084
      %v1110 = vmax.f32 %v1060, %v1085
      %v1111 = vmax.f32 %v1061, %v1086
      %v1112 = vmax.f32 %v1062, %v1087
      %v1113 = vmax.f32 %v1063, %v1088
      %v1114 = vmax.f32 %v1064, %v1089
      %v1115 = vmax.f32 %v1065, %v1090
      %v1116 = vmax.f32 %v1066, %v1091
      %v1117 = vmax.f32 %v1067, %v1092
      %v1118 = vmax.f32 %v1068, %v1093
      %v1119 = vmax.f32 %v1069, %v1094
      %v1120 = vmax.f32 %v1070, %v1095
      %v1121 = vmax.f32 %v1071, %v1096
      %v1122 = vmax.f32 %v1072, %v1097
      %v1123 = vmax.f32 %v1073, %v1098
      %v1124 = vmax.f32 %v1074, %v1099
      %v1125 = vmax.f32 %v1075, %v1100
      %v1126 = vmax.f32 %v1076, %v1101
      %v1127 = vmax.f32 %v1077, %v1102
      %v1128 = vmax.f32 %v1078, %v1103
      %v1129 = vmax.f32 %v1079, %v1104
      %v1130 = vmax.f32 %v1080, %v1105
      %v1131 = vmax.f32 %v1081, %v1106
      %v1132 = vmax.f32 %v1082, %v1107
      %v1133 = vmax.f32 %v1083, %v1108
      %v1134 = vld [vmem:[#allocation2 + $0x190] sm:$0xff]
      %v1135 = vld [vmem:[#allocation2 + $0x198] sm:$0xff]
      %v1136 = vld [vmem:[#allocation2 + $0x1a0] sm:$0xff]
      %v1137 = vld [vmem:[#allocation2 + $0x1a8] sm:$0xff]
      %v1138 = vld [vmem:[#allocation2 + $0x1b0] sm:$0xff]
      %v1139 = vld [vmem:[#allocation2 + $0x1b8] sm:$0xff]
      %v1140 = vld [vmem:[#allocation2 + $0x1c0] sm:$0xff]
      %v1141 = vld [vmem:[#allocation2 + $0x1c8] sm:$0xff]
      %v1142 = vld [vmem:[#allocation2 + $0x1d0] sm:$0xff]
      %v1143 = vld [vmem:[#allocation2 + $0x1d8] sm:$0xff]
      %v1144 = vld [vmem:[#allocation2 + $0x1e0] sm:$0xff]
      %v1145 = vld [vmem:[#allocation2 + $0x1e8] sm:$0xff]
      %v1146 = vld [vmem:[#allocation2 + $0x1f0] sm:$0xff]
      %v1147 = vld [vmem:[#allocation2 + $0x1f8] sm:$0xff]
      %v1148 = vld [vmem:[#allocation2 + $0x200] sm:$0xff]
      %v1149 = vld [vmem:[#allocation2 + $0x208] sm:$0xff]
      %v1150 = vld [vmem:[#allocation2 + $0x210] sm:$0xff]
      %v1151 = vld [vmem:[#allocation2 + $0x218] sm:$0xff]
      %v1152 = vld [vmem:[#allocation2 + $0x220] sm:$0xff]
      %v1153 = vld [vmem:[#allocation2 + $0x228] sm:$0xff]
      %v1154 = vld [vmem:[#allocation2 + $0x230] sm:$0xff]
      %v1155 = vld [vmem:[#allocation2 + $0x238] sm:$0xff]
      %v1156 = vld [vmem:[#allocation2 + $0x240] sm:$0xff]
      %v1157 = vld [vmem:[#allocation2 + $0x248] sm:$0xff]
      %v1158 = vld [vmem:[#allocation2 + $0x250] sm:$0xf]
      %v1159 = vld [vmem:[#allocation2 + $0x258] sm:$0xff]
      %v1160 = vld [vmem:[#allocation2 + $0x260] sm:$0xff]
      %v1161 = vld [vmem:[#allocation2 + $0x268] sm:$0xff]
      %v1162 = vld [vmem:[#allocation2 + $0x270] sm:$0xff]
      %v1163 = vld [vmem:[#allocation2 + $0x278] sm:$0xff]
      %v1164 = vld [vmem:[#allocation2 + $0x280] sm:$0xff]
      %v1165 = vld [vmem:[#allocation2 + $0x288] sm:$0xff]
      %v1166 = vld [vmem:[#allocation2 + $0x290] sm:$0xff]
      %v1167 = vld [vmem:[#allocation2 + $0x298] sm:$0xff]
      %v1168 = vld [vmem:[#allocation2 + $0x2a0] sm:$0xff]
      %v1169 = vld [vmem:[#allocation2 + $0x2a8] sm:$0xff]
      %v1170 = vld [vmem:[#allocation2 + $0x2b0] sm:$0xff]
      %v1171 = vld [vmem:[#allocation2 + $0x2b8] sm:$0xff]
      %v1172 = vld [vmem:[#allocation2 + $0x2c0] sm:$0xff]
      %v1173 = vld [vmem:[#allocation2 + $0x2c8] sm:$0xff]
      %v1174 = vld [vmem:[#allocation2 + $0x2d0] sm:$0xff]
      %v1175 = vld [vmem:[#allocation2 + $0x2d8] sm:$0xff]
      %v1176 = vld [vmem:[#allocation2 + $0x2e0] sm:$0xff]
      %v1177 = vld [vmem:[#allocation2 + $0x2e8] sm:$0xff]
      %v1178 = vld [vmem:[#allocation2 + $0x2f0] sm:$0xff]
      %v1179 = vld [vmem:[#allocation2 + $0x2f8] sm:$0xff]
      %v1180 = vld [vmem:[#allocation2 + $0x300] sm:$0xff]
      %v1181 = vld [vmem:[#allocation2 + $0x308] sm:$0xff]
      %v1182 = vld [vmem:[#allocation2 + $0x310] sm:$0xff]
      %v1183 = vld [vmem:[#allocation2 + $0x318] sm:$0xf]
      %v1184 = vmax.f32 %v1134, %v1159
      %v1185 = vmax.f32 %v1135, %v1160
      %v1186 = vmax.f32 %v1136, %v1161
      %v1187 = vmax.f32 %v1137, %v1162
      %v1188 = vmax.f32 %v1138, %v1163
      %v1189 = vmax.f32 %v1139, %v1164
      %v1190 = vmax.f32 %v1140, %v1165
      %v1191 = vmax.f32 %v1141, %v1166
      %v1192 = vmax.f32 %v1142, %v1167
      %v1193 = vmax.f32 %v1143, %v1168
      %v1194 = vmax.f32 %v1144, %v1169
      %v1195 = vmax.f32 %v1145, %v1170
      %v1196 = vmax.f32 %v1146, %v1171
      %v1197 = vmax.f32 %v1147, %v1172
      %v1198 = vmax.f32 %v1148, %v1173
      %v1199 = vmax.f32 %v1149, %v1174
      %v1200 = vmax.f32 %v1150, %v1175
      %v1201 = vmax.f32 %v1151, %v1176
      %v1202 = vmax.f32 %v1152, %v1177
      %v1203 = vmax.f32 %v1153, %v1178
      %v1204 = vmax.f32 %v1154, %v1179
      %v1205 = vmax.f32 %v1155, %v1180
      %v1206 = vmax.f32 %v1156, %v1181
      %v1207 = vmax.f32 %v1157, %v1182
      %v1208 = vmax.f32 %v1158, %v1183
      %v1209 = vmax.f32 %v1109, %v1184
      %v1210 = vmax.f32 %v1110, %v1185
      %v1211 = vmax.f32 %v1111, %v1186
      %v1212 = vmax.f32 %v1112, %v1187
      %v1213 = vmax.f32 %v1113, %v1188
      %v1214 = vmax.f32 %v1114, %v1189
      %v1215 = vmax.f32 %v1115, %v1190
      %v1216 = vmax.f32 %v1116, %v1191
      %v1217 = vmax.f32 %v1117, %v1192
      %v1218 = vmax.f32 %v1118, %v1193
      %v1219 = vmax.f32 %v1119, %v1194
      %v1220 = vmax.f32 %v1120, %v1195
      %v1221 = vmax.f32 %v1121, %v1196
      %v1222 = vmax.f32 %v1122, %v1197
      %v1223 = vmax.f32 %v1123, %v1198
      %v1224 = vmax.f32 %v1124, %v1199
      %v1225 = vmax.f32 %v1125, %v1200
      %v1226 = vmax.f32 %v1126, %v1201
      %v1227 = vmax.f32 %v1127, %v1202
      %v1228 = vmax.f32 %v1128, %v1203
      %v1229 = vmax.f32 %v1129, %v1204
      %v1230 = vmax.f32 %v1130, %v1205
      %v1231 = vmax.f32 %v1131, %v1206
      %v1232 = vmax.f32 %v1132, %v1207
      %v1233 = vmax.f32 %v1133, %v1208
      %v1234 = vld [vmem:[%s2] sm:$0x1]
      %v1236 = vperm.slane %v1234, 0
      %v1238 = vadd.f32 %v1209, %v1236
      %v1239 = vadd.f32 %v1210, %v1236
      %v1240 = vadd.f32 %v1211, %v1236
      %v1241 = vadd.f32 %v1212, %v1236
      %v1242 = vadd.f32 %v1213, %v1236
      %v1243 = vadd.f32 %v1214, %v1236
      %v1244 = vadd.f32 %v1215, %v1236
      %v1245 = vadd.f32 %v1216, %v1236
      %v1246 = vadd.f32 %v1217, %v1236
      %v1247 = vadd.f32 %v1218, %v1236
      %v1248 = vadd.f32 %v1219, %v1236
      %v1249 = vadd.f32 %v1220, %v1236
      %v1250 = vadd.f32 %v1221, %v1236
      %v1251 = vadd.f32 %v1222, %v1236
      %v1252 = vadd.f32 %v1223, %v1236
      %v1253 = vadd.f32 %v1224, %v1236
      %v1254 = vadd.f32 %v1225, %v1236
      %v1255 = vadd.f32 %v1226, %v1236
      %v1256 = vadd.f32 %v1227, %v1236
      %v1257 = vadd.f32 %v1228, %v1236
      %v1258 = vadd.f32 %v1229, %v1236
      %v1259 = vadd.f32 %v1230, %v1236
      %v1260 = vadd.f32 %v1231, %v1236
      %v1261 = vadd.f32 %v1232, %v1236
      %v1262 = vadd.f32 %v1233, %v1236
      %v1263 = vmax.f32 %v1238, 0.0
      %v1264 = vmax.f32 %v1239, 0.0
      %v1265 = vmax.f32 %v1240, 0.0
      %v1266 = vmax.f32 %v1241, 0.0
      %v1267 = vmax.f32 %v1242, 0.0
      %v1268 = vmax.f32 %v1243, 0.0
      %v1269 = vmax.f32 %v1244, 0.0
      %v1270 = vmax.f32 %v1245, 0.0
      %v1271 = vmax.f32 %v1246, 0.0
      %v1272 = vmax.f32 %v1247, 0.0
      %v1273 = vmax.f32 %v1248, 0.0
      %v1274 = vmax.f32 %v1249, 0.0
      %v1275 = vmax.f32 %v1250, 0.0
      %v1276 = vmax.f32 %v1251, 0.0
      %v1277 = vmax.f32 %v1252, 0.0
      %v1278 = vmax.f32 %v1253, 0.0
      %v1279 = vmax.f32 %v1254, 0.0
      %v1280 = vmax.f32 %v1255, 0.0
      %v1281 = vmax.f32 %v1256, 0.0
      %v1282 = vmax.f32 %v1257, 0.0
      %v1283 = vmax.f32 %v1258, 0.0
      %v1284 = vmax.f32 %v1259, 0.0
      %v1285 = vmax.f32 %v1260, 0.0
      %v1286 = vmax.f32 %v1261, 0.0
      %v1287 = vmax.f32 %v1262, 0.0
      %v1288 = vpack.c.bf16 %v1263, %v1263
      %v1289 = vpack.c.bf16 %v1264, %v1264
      %v1290 = vpack.c.bf16 %v1265, %v1265
      %v1291 = vpack.c.bf16 %v1266, %v1266
      %v1292 = vpack.c.bf16 %v1267, %v1267
      %v1293 = vpack.c.bf16 %v1268, %v1268
      %v1294 = vpack.c.bf16 %v1269, %v1269
      %v1295 = vpack.c.bf16 %v1270, %v1270
      %v1296 = vpack.c.bf16 %v1271, %v1271
      %v1297 = vpack.c.bf16 %v1272, %v1272
      %v1298 = vpack.c.bf16 %v1273, %v1273
      %v1299 = vpack.c.bf16 %v1274, %v1274
      %v1300 = vpack.c.bf16 %v1275, %v1275
      %v1301 = vpack.c.bf16 %v1276, %v1276
      %v1302 = vpack.c.bf16 %v1277, %v1277
      %v1303 = vpack.c.bf16 %v1278, %v1278
      %v1304 = vpack.c.bf16 %v1279, %v1279
      %v1305 = vpack.c.bf16 %v1280, %v1280
      %v1306 = vpack.c.bf16 %v1281, %v1281
      %v1307 = vpack.c.bf16 %v1282, %v1282
      %v1308 = vpack.c.bf16 %v1283, %v1283
      %v1309 = vpack.c.bf16 %v1284, %v1284
      %v1310 = vpack.c.bf16 %v1285, %v1285
      %v1311 = vpack.c.bf16 %v1286, %v1286
      %v1312 = vpack.c.bf16 %v1287, %v1287
      %vm1313 = vcmask 519168
      %1314 = vst.msk [vmem:[#allocation3] sm:$0xf] %vm1313, %v1288
      %1315 = vst.msk [vmem:[#allocation3 + $0x4] sm:$0xf] %vm1313, %v1289
      %1316 = vst.msk [vmem:[#allocation3 + $0x8] sm:$0xf] %vm1313, %v1290
      %1317 = vst.msk [vmem:[#allocation3 + $0xc] sm:$0xf] %vm1313, %v1291
      %1318 = vst.msk [vmem:[#allocation3 + $0x10] sm:$0xf] %vm1313, %v1292
      %1319 = vst.msk [vmem:[#allocation3 + $0x14] sm:$0xf] %vm1313, %v1293
      %1320 = vst.msk [vmem:[#allocation3 + $0x18] sm:$0xf] %vm1313, %v1294
      %1321 = vst.msk [vmem:[#allocation3 + $0x1c] sm:$0xf] %vm1313, %v1295
      %1322 = vst.msk [vmem:[#allocation3 + $0x20] sm:$0xf] %vm1313, %v1296
      %1323 = vst.msk [vmem:[#allocation3 + $0x24] sm:$0xf] %vm1313, %v1297
      %1324 = vst.msk [vmem:[#allocation3 + $0x28] sm:$0xf] %vm1313, %v1298
      %1325 = vst.msk [vmem:[#allocation3 + $0x2c] sm:$0xf] %vm1313, %v1299
      %1326 = vst.msk [vmem:[#allocation3 + $0x30] sm:$0xf] %vm1313, %v1300
      %1327 = vst.msk [vmem:[#allocation3 + $0x34] sm:$0xf] %vm1313, %v1301
      %1328 = vst.msk [vmem:[#allocation3 + $0x38] sm:$0xf] %vm1313, %v1302
      %1329 = vst.msk [vmem:[#allocation3 + $0x3c] sm:$0xf] %vm1313, %v1303
      %1330 = vst.msk [vmem:[#allocation3 + $0x40] sm:$0xf] %vm1313, %v1304
      %1331 = vst.msk [vmem:[#allocation3 + $0x44] sm:$0xf] %vm1313, %v1305
      %1332 = vst.msk [vmem:[#allocation3 + $0x48] sm:$0xf] %vm1313, %v1306
      %1333 = vst.msk [vmem:[#allocation3 + $0x4c] sm:$0xf] %vm1313, %v1307
      %1334 = vst.msk [vmem:[#allocation3 + $0x50] sm:$0xf] %vm1313, %v1308
      %1335 = vst.msk [vmem:[#allocation3 + $0x54] sm:$0xf] %vm1313, %v1309
      %1336 = vst.msk [vmem:[#allocation3 + $0x58] sm:$0xf] %vm1313, %v1310
      %1337 = vst.msk [vmem:[#allocation3 + $0x5c] sm:$0xf] %vm1313, %v1311
      %vm1338 = vcmask 517120
      %1339 = vst.msk [vmem:[#allocation3 + $0x60] sm:$0x3] %vm1338, %v1312
      %v1340 = vld [vmem:[#allocation3] sm:$0xf]
      %v1341 = vld [vmem:[#allocation3 + $0x4] sm:$0xf]
      %v1342 = vld [vmem:[#allocation3 + $0x8] sm:$0xf]
      %v1343 = vld [vmem:[#allocation3 + $0xc] sm:$0xf]
      %v1344 = vld [vmem:[#allocation3 + $0x10] sm:$0xf]
      %v1345 = vld [vmem:[#allocation3 + $0x14] sm:$0xf]
      %v1346 = vld [vmem:[#allocation3 + $0x18] sm:$0xf]
      %v1347 = vld [vmem:[#allocation3 + $0x1c] sm:$0xf]
      %v1348 = vld [vmem:[#allocation3 + $0x20] sm:$0xf]
      %v1349 = vld [vmem:[#allocation3 + $0x24] sm:$0xf]
      %v1350 = vld [vmem:[#allocation3 + $0x28] sm:$0xf]
      %v1351 = vld [vmem:[#allocation3 + $0x2c] sm:$0xf]
      %v1352 = vld [vmem:[#allocation3 + $0x30] sm:$0xf]
      %v1353 = vld [vmem:[#allocation3 + $0x34] sm:$0xf]
      %v1354 = vld [vmem:[#allocation3 + $0x38] sm:$0xf]
      %v1355 = vld [vmem:[#allocation3 + $0x3c] sm:$0xf]
      %v1356 = vld [vmem:[#allocation3 + $0x40] sm:$0xf]
      %v1357 = vld [vmem:[#allocation3 + $0x44] sm:$0xf]
      %v1358 = vld [vmem:[#allocation3 + $0x48] sm:$0xf]
      %v1359 = vld [vmem:[#allocation3 + $0x4c] sm:$0xf]
      %v1360 = vld [vmem:[#allocation3 + $0x50] sm:$0xf]
      %v1361 = vld [vmem:[#allocation3 + $0x54] sm:$0xf]
      %v1362 = vld [vmem:[#allocation3 + $0x58] sm:$0xf]
      %v1363 = vld [vmem:[#allocation3 + $0x5c] sm:$0xf]
      %1364 = vst.msk [vmem:[#allocation4] sm:$0xf] %vm1313, %v1340
      %1365 = vst.msk [vmem:[#allocation4 + $0xc] sm:$0xf] %vm1313, %v1341
      %1366 = vst.msk [vmem:[#allocation4 + $0x18] sm:$0xf] %vm1313, %v1342
      %1367 = vst.msk [vmem:[#allocation4 + $0x24] sm:$0xf] %vm1313, %v1343
      %1368 = vst.msk [vmem:[#allocation4 + $0x30] sm:$0xf] %vm1313, %v1344
      %1369 = vst.msk [vmem:[#allocation4 + $0x3c] sm:$0xf] %vm1313, %v1345
      %1370 = vst.msk [vmem:[#allocation4 + $0x48] sm:$0xf] %vm1313, %v1346
      %1371 = vst.msk [vmem:[#allocation4 + $0x54] sm:$0xf] %vm1313, %v1347
      %1372 = vst.msk [vmem:[#allocation4 + $0x60] sm:$0xf] %vm1313, %v1348
      %1373 = vst.msk [vmem:[#allocation4 + $0x6c] sm:$0xf] %vm1313, %v1349
      %1374 = vst.msk [vmem:[#allocation4 + $0x78] sm:$0xf] %vm1313, %v1350
      %1375 = vst.msk [vmem:[#allocation4 + $0x84] sm:$0xf] %vm1313, %v1351
      %1376 = vst.msk [vmem:[#allocation4 + $0x90] sm:$0xf] %vm1313, %v1352
      %1377 = vst.msk [vmem:[#allocation4 + $0x9c] sm:$0xf] %vm1313, %v1353
      %1378 = vst.msk [vmem:[#allocation4 + $0xa8] sm:$0xf] %vm1313, %v1354
      %1379 = vst.msk [vmem:[#allocation4 + $0xb4] sm:$0xf] %vm1313, %v1355
      %1380 = vst.msk [vmem:[#allocation4 + $0xc0] sm:$0xf] %vm1313, %v1356
      %1381 = vst.msk [vmem:[#allocation4 + $0xcc] sm:$0xf] %vm1313, %v1357
      %1382 = vst.msk [vmem:[#allocation4 + $0xd8] sm:$0xf] %vm1313, %v1358
      %1383 = vst.msk [vmem:[#allocation4 + $0xe4] sm:$0xf] %vm1313, %v1359
      %1384 = vst.msk [vmem:[#allocation4 + $0xf0] sm:$0xf] %vm1313, %v1360
      %1385 = vst.msk [vmem:[#allocation4 + $0xfc] sm:$0xf] %vm1313, %v1361
      %1386 = vst.msk [vmem:[#allocation4 + $0x108] sm:$0xf] %vm1313, %v1362
      %1387 = vst.msk [vmem:[#allocation4 + $0x114] sm:$0xf] %vm1313, %v1363
      %v1388 = vld [vmem:[#allocation3] sm:$0xf]
      %v1389 = vld [vmem:[#allocation3 + $0x4] sm:$0xf]
      %v1390 = vld [vmem:[#allocation3 + $0x8] sm:$0xf]
      %v1391 = vld [vmem:[#allocation3 + $0xc] sm:$0xf]
      %v1392 = vld [vmem:[#allocation3 + $0x10] sm:$0xf]
      %v1393 = vld [vmem:[#allocation3 + $0x14] sm:$0xf]
      %v1394 = vld [vmem:[#allocation3 + $0x18] sm:$0xf]
      %v1395 = vld [vmem:[#allocation3 + $0x1c] sm:$0xf]
      %v1396 = vld [vmem:[#allocation3 + $0x20] sm:$0xf]
      %v1397 = vld [vmem:[#allocation3 + $0x24] sm:$0xf]
      %v1398 = vld [vmem:[#allocation3 + $0x28] sm:$0xf]
      %v1399 = vld [vmem:[#allocation3 + $0x2c] sm:$0xf]
      %v1400 = vld [vmem:[#allocation3 + $0x30] sm:$0xf]
      %v1401 = vld [vmem:[#allocation3 + $0x34] sm:$0xf]
      %v1402 = vld [vmem:[#allocation3 + $0x38] sm:$0xf]
      %v1403 = vld [vmem:[#allocation3 + $0x3c] sm:$0xf]
      %v1404 = vld [vmem:[#allocation3 + $0x40] sm:$0xf]
      %v1405 = vld [vmem:[#allocation3 + $0x44] sm:$0xf]
      %v1406 = vld [vmem:[#allocation3 + $0x48] sm:$0xf]
      %v1407 = vld [vmem:[#allocation3 + $0x4c] sm:$0xf]
      %v1408 = vld [vmem:[#allocation3 + $0x50] sm:$0xf]
      %v1409 = vld [vmem:[#allocation3 + $0x54] sm:$0xf]
      %v1410 = vld [vmem:[#allocation3 + $0x58] sm:$0xf]
      %v1411 = vld [vmem:[#allocation3 + $0x5c] sm:$0xf]
      %v1412 = vld [vmem:[#allocation3 + $0x60] sm:$0x1]
      %vm1413 = vsmask.f32 3328
      %vm1414 = vsmask.f32 7440
      %vm1415 = vmor %vm1413, %vm1414
      %v1417 = vshrl.u32 %v1388, 16
      %v1419 = vrot.slane %v1417, 4
      %v1420 = vshll.u32 %v1388, 16
      %v1422 = vrot.slane %v1420, 5
      %v1423 = vor.u32 %v1419, %v1422
      %v1424 = vrot.slane %v1423, 4
      %v1426 = vshll.u32 %v1389, 16
      %v1428 = vrot.slane %v1426, 5
      %v1429 = vsel %vm1415, %v1424, %v1428
      %v1430 = vshrl.u32 %v1389, 16
      %v1432 = vrot.slane %v1430, 4
      %v1433 = vor.u32 %v1432, %v1428
      %v1434 = vrot.slane %v1433, 4
      %v1436 = vshll.u32 %v1390, 16
      %v1438 = vrot.slane %v1436, 5
      %v1439 = vsel %vm1415, %v1434, %v1438
      %v1440 = vshrl.u32 %v1390, 16
      %v1442 = vrot.slane %v1440, 4
      %v1443 = vor.u32 %v1442, %v1438
      %v1444 = vrot.slane %v1443, 4
      %v1446 = vshll.u32 %v1391, 16
      %v1448 = vrot.slane %v1446, 5
      %v1449 = vsel %vm1415, %v1444, %v1448
      %v1450 = vshrl.u32 %v1391, 16
      %v1452 = vrot.slane %v1450, 4
      %v1453 = vor.u32 %v1452, %v1448
      %v1454 = vrot.slane %v1453, 4
      %v1456 = vshll.u32 %v1392, 16
      %v1458 = vrot.slane %v1456, 5
      %v1459 = vsel %vm1415, %v1454, %v1458
      %v1460 = vshrl.u32 %v1392, 16
      %v1462 = vrot.slane %v1460, 4
      %v1463 = vor.u32 %v1462, %v1458
      %v1464 = vrot.slane %v1463, 4
      %v1466 = vshll.u32 %v1393, 16
      %v1468 = vrot.slane %v1466, 5
      %v1469 = vsel %vm1415, %v1464, %v1468
      %v1470 = vshrl.u32 %v1393, 16
      %v1472 = vrot.slane %v1470, 4
      %v1473 = vor.u32 %v1472, %v1468
      %v1474 = vrot.slane %v1473, 4
      %v1476 = vshll.u32 %v1394, 16
      %v1478 = vrot.slane %v1476, 5
      %v1479 = vsel %vm1415, %v1474, %v1478
      %v1480 = vshrl.u32 %v1394, 16
      %v1482 = vrot.slane %v1480, 4
      %v1483 = vor.u32 %v1482, %v1478
      %v1484 = vrot.slane %v1483, 4
      %v1486 = vshll.u32 %v1395, 16
      %v1488 = vrot.slane %v1486, 5
      %v1489 = vsel %vm1415, %v1484, %v1488
      %v1490 = vshrl.u32 %v1395, 16
      %v1492 = vrot.slane %v1490, 4
      %v1493 = vor.u32 %v1492, %v1488
      %v1494 = vrot.slane %v1493, 4
      %v1496 = vshll.u32 %v1396, 16
      %v1498 = vrot.slane %v1496, 5
      %v1499 = vsel %vm1415, %v1494, %v1498
      %v1500 = vshrl.u32 %v1396, 16
      %v1502 = vrot.slane %v1500, 4
      %v1503 = vor.u32 %v1502, %v1498
      %v1504 = vrot.slane %v1503, 4
      %v1506 = vshll.u32 %v1397, 16
      %v1508 = vrot.slane %v1506, 5
      %v1509 = vsel %vm1415, %v1504, %v1508
      %v1510 = vshrl.u32 %v1397, 16
      %v1512 = vrot.slane %v1510, 4
      %v1513 = vor.u32 %v1512, %v1508
      %v1514 = vrot.slane %v1513, 4
      %v1516 = vshll.u32 %v1398, 16
      %v1518 = vrot.slane %v1516, 5
      %v1519 = vsel %vm1415, %v1514, %v1518
      %v1520 = vshrl.u32 %v1398, 16
      %v1522 = vrot.slane %v1520, 4
      %v1523 = vor.u32 %v1522, %v1518
      %v1524 = vrot.slane %v1523, 4
      %v1526 = vshll.u32 %v1399, 16
      %v1528 = vrot.slane %v1526, 5
      %v1529 = vsel %vm1415, %v1524, %v1528
      %v1530 = vshrl.u32 %v1399, 16
      %v1532 = vrot.slane %v1530, 4
      %v1533 = vor.u32 %v1532, %v1528
      %v1534 = vrot.slane %v1533, 4
      %v1536 = vshll.u32 %v1400, 16
      %v1538 = vrot.slane %v1536, 5
      %v1539 = vsel %vm1415, %v1534, %v1538
      %v1540 = vshrl.u32 %v1400, 16
      %v1542 = vrot.slane %v1540, 4
      %v1543 = vor.u32 %v1542, %v1538
      %v1544 = vrot.slane %v1543, 4
      %v1546 = vshll.u32 %v1401, 16
      %v1548 = vrot.slane %v1546, 5
      %v1549 = vsel %vm1415, %v1544, %v1548
      %v1550 = vshrl.u32 %v1401, 16
      %v1552 = vrot.slane %v1550, 4
      %v1553 = vor.u32 %v1552, %v1548
      %v1554 = vrot.slane %v1553, 4
      %v1556 = vshll.u32 %v1402, 16
      %v1558 = vrot.slane %v1556, 5
      %v1559 = vsel %vm1415, %v1554, %v1558
      %v1560 = vshrl.u32 %v1402, 16
      %v1562 = vrot.slane %v1560, 4
      %v1563 = vor.u32 %v1562, %v1558
      %v1564 = vrot.slane %v1563, 4
      %v1566 = vshll.u32 %v1403, 16
      %v1568 = vrot.slane %v1566, 5
      %v1569 = vsel %vm1415, %v1564, %v1568
      %v1570 = vshrl.u32 %v1403, 16
      %v1572 = vrot.slane %v1570, 4
      %v1573 = vor.u32 %v1572, %v1568
      %v1574 = vrot.slane %v1573, 4
      %v1576 = vshll.u32 %v1404, 16
      %v1578 = vrot.slane %v1576, 5
      %v1579 = vsel %vm1415, %v1574, %v1578
      %v1580 = vshrl.u32 %v1404, 16
      %v1582 = vrot.slane %v1580, 4
      %v1583 = vor.u32 %v1582, %v1578
      %v1584 = vrot.slane %v1583, 4
      %v1586 = vshll.u32 %v1405, 16
      %v1588 = vrot.slane %v1586, 5
      %v1589 = vsel %vm1415, %v1584, %v1588
      %v1590 = vshrl.u32 %v1405, 16
      %v1592 = vrot.slane %v1590, 4
      %v1593 = vor.u32 %v1592, %v1588
      %v1594 = vrot.slane %v1593, 4
      %v1596 = vshll.u32 %v1406, 16
      %v1598 = vrot.slane %v1596, 5
      %v1599 = vsel %vm1415, %v1594, %v1598
      %v1600 = vshrl.u32 %v1406, 16
      %v1602 = vrot.slane %v1600, 4
      %v1603 = vor.u32 %v1602, %v1598
      %v1604 = vrot.slane %v1603, 4
      %v1606 = vshll.u32 %v1407, 16
      %v1608 = vrot.slane %v1606, 5
      %v1609 = vsel %vm1415, %v1604, %v1608
      %v1610 = vshrl.u32 %v1407, 16
      %v1612 = vrot.slane %v1610, 4
      %v1613 = vor.u32 %v1612, %v1608
      %v1614 = vrot.slane %v1613, 4
      %v1616 = vshll.u32 %v1408, 16
      %v1618 = vrot.slane %v1616, 5
      %v1619 = vsel %vm1415, %v1614, %v1618
      %v1620 = vshrl.u32 %v1408, 16
      %v1622 = vrot.slane %v1620, 4
      %v1623 = vor.u32 %v1622, %v1618
      %v1624 = vrot.slane %v1623, 4
      %v1626 = vshll.u32 %v1409, 16
      %v1628 = vrot.slane %v1626, 5
      %v1629 = vsel %vm1415, %v1624, %v1628
      %v1630 = vshrl.u32 %v1409, 16
      %v1632 = vrot.slane %v1630, 4
      %v1633 = vor.u32 %v1632, %v1628
      %v1634 = vrot.slane %v1633, 4
      %v1636 = vshll.u32 %v1410, 16
      %v1638 = vrot.slane %v1636, 5
      %v1639 = vsel %vm1415, %v1634, %v1638
      %v1640 = vshrl.u32 %v1410, 16
      %v1642 = vrot.slane %v1640, 4
      %v1643 = vor.u32 %v1642, %v1638
      %v1644 = vrot.slane %v1643, 4
      %v1646 = vshll.u32 %v1411, 16
      %v1648 = vrot.slane %v1646, 5
      %v1649 = vsel %vm1415, %v1644, %v1648
      %v1650 = vshrl.u32 %v1411, 16
      %v1652 = vrot.slane %v1650, 4
      %v1653 = vor.u32 %v1652, %v1648
      %v1654 = vrot.slane %v1653, 4
      %v1656 = vshll.u32 %v1412, 16
      %v1658 = vrot.slane %v1656, 5
      %v1659 = vsel %vm1415, %v1654, %v1658
      %1660 = vrot.lane.b32.xlu0 %v1429, 64
      %v1661 = vpop.permute.xlu0 %1660
      %1662 = vrot.lane.b32.xlu0 %v1439, 64
      %v1663 = vpop.permute.xlu0 %1662
      %1664 = vrot.lane.b32.xlu0 %v1449, 64
      %v1665 = vpop.permute.xlu0 %1664
      %1666 = vrot.lane.b32.xlu0 %v1459, 64
      %v1667 = vpop.permute.xlu0 %1666
      %1668 = vrot.lane.b32.xlu0 %v1469, 64
      %v1669 = vpop.permute.xlu0 %1668
      %1670 = vrot.lane.b32.xlu0 %v1479, 64
      %v1671 = vpop.permute.xlu0 %1670
      %1672 = vrot.lane.b32.xlu0 %v1489, 64
      %v1673 = vpop.permute.xlu0 %1672
      %1674 = vrot.lane.b32.xlu0 %v1499, 64
      %v1675 = vpop.permute.xlu0 %1674
      %1676 = vrot.lane.b32.xlu0 %v1509, 64
      %v1677 = vpop.permute.xlu0 %1676
      %1678 = vrot.lane.b32.xlu0 %v1519, 64
      %v1679 = vpop.permute.xlu0 %1678
      %1680 = vrot.lane.b32.xlu0 %v1529, 64
      %v1681 = vpop.permute.xlu0 %1680
      %1682 = vrot.lane.b32.xlu0 %v1539, 64
      %v1683 = vpop.permute.xlu0 %1682
      %1684 = vrot.lane.b32.xlu0 %v1549, 64
      %v1685 = vpop.permute.xlu0 %1684
      %1686 = vrot.lane.b32.xlu0 %v1559, 64
      %v1687 = vpop.permute.xlu0 %1686
      %1688 = vrot.lane.b32.xlu0 %v1569, 64
      %v1689 = vpop.permute.xlu0 %1688
      %1690 = vrot.lane.b32.xlu0 %v1579, 64
      %v1691 = vpop.permute.xlu0 %1690
      %1692 = vrot.lane.b32.xlu0 %v1589, 64
      %v1693 = vpop.permute.xlu0 %1692
      %1694 = vrot.lane.b32.xlu0 %v1599, 64
      %v1695 = vpop.permute.xlu0 %1694
      %1696 = vrot.lane.b32.xlu0 %v1609, 64
      %v1697 = vpop.permute.xlu0 %1696
      %1698 = vrot.lane.b32.xlu0 %v1619, 64
      %v1699 = vpop.permute.xlu0 %1698
      %1700 = vrot.lane.b32.xlu0 %v1629, 64
      %v1701 = vpop.permute.xlu0 %1700
      %1702 = vrot.lane.b32.xlu0 %v1639, 64
      %v1703 = vpop.permute.xlu0 %1702
      %1704 = vrot.lane.b32.xlu0 %v1649, 64
      %v1705 = vpop.permute.xlu0 %1704
      %1706 = vrot.lane.b32.xlu0 %v1659, 64
      %v1707 = vpop.permute.xlu0 %1706
      %vm1732 = vcmask 1043968
      %1733 = vst.msk [vmem:[#allocation4] sm:$0xf] %vm1732, %v1661
      %1734 = vst.msk [vmem:[#allocation4 + $0xc] sm:$0xf] %vm1732, %v1663
      %1735 = vst.msk [vmem:[#allocation4 + $0x18] sm:$0xf] %vm1732, %v1665
      %1736 = vst.msk [vmem:[#allocation4 + $0x24] sm:$0xf] %vm1732, %v1667
      %1737 = vst.msk [vmem:[#allocation4 + $0x30] sm:$0xf] %vm1732, %v1669
      %1738 = vst.msk [vmem:[#allocation4 + $0x3c] sm:$0xf] %vm1732, %v1671
      %1739 = vst.msk [vmem:[#allocation4 + $0x48] sm:$0xf] %vm1732, %v1673
      %1740 = vst.msk [vmem:[#allocation4 + $0x54] sm:$0xf] %vm1732, %v1675
      %1741 = vst.msk [vmem:[#allocation4 + $0x60] sm:$0xf] %vm1732, %v1677
      %1742 = vst.msk [vmem:[#allocation4 + $0x6c] sm:$0xf] %vm1732, %v1679
      %1743 = vst.msk [vmem:[#allocation4 + $0x78] sm:$0xf] %vm1732, %v1681
      %1744 = vst.msk [vmem:[#allocation4 + $0x84] sm:$0xf] %vm1732, %v1683
      %1745 = vst.msk [vmem:[#allocation4 + $0x90] sm:$0xf] %vm1732, %v1685
      %1746 = vst.msk [vmem:[#allocation4 + $0x9c] sm:$0xf] %vm1732, %v1687
      %1747 = vst.msk [vmem:[#allocation4 + $0xa8] sm:$0xf] %vm1732, %v1689
      %1748 = vst.msk [vmem:[#allocation4 + $0xb4] sm:$0xf] %vm1732, %v1691
      %1749 = vst.msk [vmem:[#allocation4 + $0xc0] sm:$0xf] %vm1732, %v1693
      %1750 = vst.msk [vmem:[#allocation4 + $0xcc] sm:$0xf] %vm1732, %v1695
      %1751 = vst.msk [vmem:[#allocation4 + $0xd8] sm:$0xf] %vm1732, %v1697
      %1752 = vst.msk [vmem:[#allocation4 + $0xe4] sm:$0xf] %vm1732, %v1699
      %1753 = vst.msk [vmem:[#allocation4 + $0xf0] sm:$0xf] %vm1732, %v1701
      %1754 = vst.msk [vmem:[#allocation4 + $0xfc] sm:$0xf] %vm1732, %v1703
      %1755 = vst.msk [vmem:[#allocation4 + $0x108] sm:$0xf] %vm1732, %v1705
      %1756 = vst.msk [vmem:[#allocation4 + $0x114] sm:$0xf] %vm1732, %v1707
      %v1757 = vld [vmem:[#allocation3] sm:$0xe]
      %v1758 = vld [vmem:[#allocation3 + $0x4] sm:$0xf]
      %v1759 = vld [vmem:[#allocation3 + $0x8] sm:$0xf]
      %v1760 = vld [vmem:[#allocation3 + $0xc] sm:$0xf]
      %v1761 = vld [vmem:[#allocation3 + $0x10] sm:$0xf]
      %v1762 = vld [vmem:[#allocation3 + $0x14] sm:$0xf]
      %v1763 = vld [vmem:[#allocation3 + $0x18] sm:$0xf]
      %v1764 = vld [vmem:[#allocation3 + $0x1c] sm:$0xf]
      %v1765 = vld [vmem:[#allocation3 + $0x20] sm:$0xf]
      %v1766 = vld [vmem:[#allocation3 + $0x24] sm:$0xf]
      %v1767 = vld [vmem:[#allocation3 + $0x28] sm:$0xf]
      %v1768 = vld [vmem:[#allocation3 + $0x2c] sm:$0xf]
      %v1769 = vld [vmem:[#allocation3 + $0x30] sm:$0xf]
      %v1770 = vld [vmem:[#allocation3 + $0x34] sm:$0xf]
      %v1771 = vld [vmem:[#allocation3 + $0x38] sm:$0xf]
      %v1772 = vld [vmem:[#allocation3 + $0x3c] sm:$0xf]
      %v1773 = vld [vmem:[#allocation3 + $0x40] sm:$0xf]
      %v1774 = vld [vmem:[#allocation3 + $0x44] sm:$0xf]
      %v1775 = vld [vmem:[#allocation3 + $0x48] sm:$0xf]
      %v1776 = vld [vmem:[#allocation3 + $0x4c] sm:$0xf]
      %v1777 = vld [vmem:[#allocation3 + $0x50] sm:$0xf]
      %v1778 = vld [vmem:[#allocation3 + $0x54] sm:$0xf]
      %v1779 = vld [vmem:[#allocation3 + $0x58] sm:$0xf]
      %v1780 = vld [vmem:[#allocation3 + $0x5c] sm:$0xf]
      %v1781 = vld [vmem:[#allocation3 + $0x60] sm:$0x1]
      %vm1807 = vcmask 1042432
      %vm1808 = vcmask 1046532
      %vm1809 = vmor %vm1807, %vm1808
      %v1810 = vrot.slane %v1757, 5
      %v1811 = vrot.slane %v1810, 4
      %v1812 = vrot.slane %v1758, 5
      %v1813 = vsel %vm1809, %v1811, %v1812
      %v1814 = vrot.slane %v1812, 4
      %v1815 = vrot.slane %v1759, 5
      %v1816 = vsel %vm1809, %v1814, %v1815
      %v1817 = vrot.slane %v1815, 4
      %v1818 = vrot.slane %v1760, 5
      %v1819 = vsel %vm1809, %v1817, %v1818
      %v1820 = vrot.slane %v1818, 4
      %v1821 = vrot.slane %v1761, 5
      %v1822 = vsel %vm1809, %v1820, %v1821
      %v1823 = vrot.slane %v1821, 4
      %v1824 = vrot.slane %v1762, 5
      %v1825 = vsel %vm1809, %v1823, %v1824
      %v1826 = vrot.slane %v1824, 4
      %v1827 = vrot.slane %v1763, 5
      %v1828 = vsel %vm1809, %v1826, %v1827
      %v1829 = vrot.slane %v1827, 4
      %v1830 = vrot.slane %v1764, 5
      %v1831 = vsel %vm1809, %v1829, %v1830
      %v1832 = vrot.slane %v1830, 4
      %v1833 = vrot.slane %v1765, 5
      %v1834 = vsel %vm1809, %v1832, %v1833
      %v1835 = vrot.slane %v1833, 4
      %v1836 = vrot.slane %v1766, 5
      %v1837 = vsel %vm1809, %v1835, %v1836
      %v1838 = vrot.slane %v1836, 4
      %v1839 = vrot.slane %v1767, 5
      %v1840 = vsel %vm1809, %v1838, %v1839
      %v1841 = vrot.slane %v1839, 4
      %v1842 = vrot.slane %v1768, 5
      %v1843 = vsel %vm1809, %v1841, %v1842
      %v1844 = vrot.slane %v1842, 4
      %v1845 = vrot.slane %v1769, 5
      %v1846 = vsel %vm1809, %v1844, %v1845
      %v1847 = vrot.slane %v1845, 4
      %v1848 = vrot.slane %v1770, 5
      %v1849 = vsel %vm1809, %v1847, %v1848
      %v1850 = vrot.slane %v1848, 4
      %v1851 = vrot.slane %v1771, 5
      %v1852 = vsel %vm1809, %v1850, %v1851
      %v1853 = vrot.slane %v1851, 4
      %v1854 = vrot.slane %v1772, 5
      %v1855 = vsel %vm1809, %v1853, %v1854
      %v1856 = vrot.slane %v1854, 4
      %v1857 = vrot.slane %v1773, 5
      %v1858 = vsel %vm1809, %v1856, %v1857
      %v1859 = vrot.slane %v1857, 4
      %v1860 = vrot.slane %v1774, 5
      %v1861 = vsel %vm1809, %v1859, %v1860
      %v1862 = vrot.slane %v1860, 4
      %v1863 = vrot.slane %v1775, 5
      %v1864 = vsel %vm1809, %v1862, %v1863
      %v1865 = vrot.slane %v1863, 4
      %v1866 = vrot.slane %v1776, 5
      %v1867 = vsel %vm1809, %v1865, %v1866
      %v1868 = vrot.slane %v1866, 4
      %v1869 = vrot.slane %v1777, 5
      %v1870 = vsel %vm1809, %v1868, %v1869
      %v1871 = vrot.slane %v1869, 4
      %v1872 = vrot.slane %v1778, 5
      %v1873 = vsel %vm1809, %v1871, %v1872
      %v1874 = vrot.slane %v1872, 4
      %v1875 = vrot.slane %v1779, 5
      %v1876 = vsel %vm1809, %v1874, %v1875
      %v1877 = vrot.slane %v1875, 4
      %v1878 = vrot.slane %v1780, 5
      %v1879 = vsel %vm1809, %v1877, %v1878
      %v1880 = vrot.slane %v1878, 4
      %v1881 = vrot.slane %v1781, 5
      %v1882 = vsel %vm1809, %v1880, %v1881
      %1907 = vst.msk [vmem:[#allocation4 + $0x4] sm:$0xf] %vm1313, %v1813
      %1908 = vst.msk [vmem:[#allocation4 + $0x10] sm:$0xf] %vm1313, %v1816
      %1909 = vst.msk [vmem:[#allocation4 + $0x1c] sm:$0xf] %vm1313, %v1819
      %1910 = vst.msk [vmem:[#allocation4 + $0x28] sm:$0xf] %vm1313, %v1822
      %1911 = vst.msk [vmem:[#allocation4 + $0x34] sm:$0xf] %vm1313, %v1825
      %1912 = vst.msk [vmem:[#allocation4 + $0x40] sm:$0xf] %vm1313, %v1828
      %1913 = vst.msk [vmem:[#allocation4 + $0x4c] sm:$0xf] %vm1313, %v1831
      %1914 = vst.msk [vmem:[#allocation4 + $0x58] sm:$0xf] %vm1313, %v1834
      %1915 = vst.msk [vmem:[#allocation4 + $0x64] sm:$0xf] %vm1313, %v1837
      %1916 = vst.msk [vmem:[#allocation4 + $0x70] sm:$0xf] %vm1313, %v1840
      %1917 = vst.msk [vmem:[#allocation4 + $0x7c] sm:$0xf] %vm1313, %v1843
      %1918 = vst.msk [vmem:[#allocation4 + $0x88] sm:$0xf] %vm1313, %v1846
      %1919 = vst.msk [vmem:[#allocation4 + $0x94] sm:$0xf] %vm1313, %v1849
      %1920 = vst.msk [vmem:[#allocation4 + $0xa0] sm:$0xf] %vm1313, %v1852
      %1921 = vst.msk [vmem:[#allocation4 + $0xac] sm:$0xf] %vm1313, %v1855
      %1922 = vst.msk [vmem:[#allocation4 + $0xb8] sm:$0xf] %vm1313, %v1858
      %1923 = vst.msk [vmem:[#allocation4 + $0xc4] sm:$0xf] %vm1313, %v1861
      %1924 = vst.msk [vmem:[#allocation4 + $0xd0] sm:$0xf] %vm1313, %v1864
      %1925 = vst.msk [vmem:[#allocation4 + $0xdc] sm:$0xf] %vm1313, %v1867
      %1926 = vst.msk [vmem:[#allocation4 + $0xe8] sm:$0xf] %vm1313, %v1870
      %1927 = vst.msk [vmem:[#allocation4 + $0xf4] sm:$0xf] %vm1313, %v1873
      %1928 = vst.msk [vmem:[#allocation4 + $0x100] sm:$0xf] %vm1313, %v1876
      %1929 = vst.msk [vmem:[#allocation4 + $0x10c] sm:$0xf] %vm1313, %v1879
      %1930 = vst.msk [vmem:[#allocation4 + $0x118] sm:$0xf] %vm1313, %v1882
      %v1931 = vld [vmem:[#allocation3] sm:$0xe]
      %v1932 = vld [vmem:[#allocation3 + $0x4] sm:$0xf]
      %v1933 = vld [vmem:[#allocation3 + $0x8] sm:$0xf]
      %v1934 = vld [vmem:[#allocation3 + $0xc] sm:$0xf]
      %v1935 = vld [vmem:[#allocation3 + $0x10] sm:$0xf]
      %v1936 = vld [vmem:[#allocation3 + $0x14] sm:$0xf]
      %v1937 = vld [vmem:[#allocation3 + $0x18] sm:$0xf]
      %v1938 = vld [vmem:[#allocation3 + $0x1c] sm:$0xf]
      %v1939 = vld [vmem:[#allocation3 + $0x20] sm:$0xf]
      %v1940 = vld [vmem:[#allocation3 + $0x24] sm:$0xf]
      %v1941 = vld [vmem:[#allocation3 + $0x28] sm:$0xf]
      %v1942 = vld [vmem:[#allocation3 + $0x2c] sm:$0xf]
      %v1943 = vld [vmem:[#allocation3 + $0x30] sm:$0xf]
      %v1944 = vld [vmem:[#allocation3 + $0x34] sm:$0xf]
      %v1945 = vld [vmem:[#allocation3 + $0x38] sm:$0xf]
      %v1946 = vld [vmem:[#allocation3 + $0x3c] sm:$0xf]
      %v1947 = vld [vmem:[#allocation3 + $0x40] sm:$0xf]
      %v1948 = vld [vmem:[#allocation3 + $0x44] sm:$0xf]
      %v1949 = vld [vmem:[#allocation3 + $0x48] sm:$0xf]
      %v1950 = vld [vmem:[#allocation3 + $0x4c] sm:$0xf]
      %v1951 = vld [vmem:[#allocation3 + $0x50] sm:$0xf]
      %v1952 = vld [vmem:[#allocation3 + $0x54] sm:$0xf]
      %v1953 = vld [vmem:[#allocation3 + $0x58] sm:$0xf]
      %v1954 = vld [vmem:[#allocation3 + $0x5c] sm:$0xf]
      %v1955 = vld [vmem:[#allocation3 + $0x60] sm:$0x3]
      %vm1956 = vsmask.f32 2304
      %vm1957 = vsmask.f32 6416
      %vm1958 = vmor %vm1956, %vm1957
      %v1960 = vshrl.u32 %v1931, 16
      %v1962 = vrot.slane %v1960, 5
      %v1963 = vshll.u32 %v1931, 16
      %v1965 = vrot.slane %v1963, 6
      %v1966 = vor.u32 %v1962, %v1965
      %v1967 = vrot.slane %v1966, 4
      %v1969 = vshrl.u32 %v1932, 16
      %v1971 = vrot.slane %v1969, 5
      %v1972 = vshll.u32 %v1932, 16
      %v1974 = vrot.slane %v1972, 6
      %v1975 = vor.u32 %v1971, %v1974
      %v1976 = vsel %vm1958, %v1967, %v1975
      %v1977 = vrot.slane %v1975, 4
      %v1979 = vshrl.u32 %v1933, 16
      %v1981 = vrot.slane %v1979, 5
      %v1982 = vshll.u32 %v1933, 16
      %v1984 = vrot.slane %v1982, 6
      %v1985 = vor.u32 %v1981, %v1984
      %v1986 = vsel %vm1958, %v1977, %v1985
      %v1987 = vrot.slane %v1985, 4
      %v1989 = vshrl.u32 %v1934, 16
      %v1991 = vrot.slane %v1989, 5
      %v1992 = vshll.u32 %v1934, 16
      %v1994 = vrot.slane %v1992, 6
      %v1995 = vor.u32 %v1991, %v1994
      %v1996 = vsel %vm1958, %v1987, %v1995
      %v1997 = vrot.slane %v1995, 4
      %v1999 = vshrl.u32 %v1935, 16
      %v2001 = vrot.slane %v1999, 5
      %v2002 = vshll.u32 %v1935, 16
      %v2004 = vrot.slane %v2002, 6
      %v2005 = vor.u32 %v2001, %v2004
      %v2006 = vsel %vm1958, %v1997, %v2005
      %v2007 = vrot.slane %v2005, 4
      %v2009 = vshrl.u32 %v1936, 16
      %v2011 = vrot.slane %v2009, 5
      %v2012 = vshll.u32 %v1936, 16
      %v2014 = vrot.slane %v2012, 6
      %v2015 = vor.u32 %v2011, %v2014
      %v2016 = vsel %vm1958, %v2007, %v2015
      %v2017 = vrot.slane %v2015, 4
      %v2019 = vshrl.u32 %v1937, 16
      %v2021 = vrot.slane %v2019, 5
      %v2022 = vshll.u32 %v1937, 16
      %v2024 = vrot.slane %v2022, 6
      %v2025 = vor.u32 %v2021, %v2024
      %v2026 = vsel %vm1958, %v2017, %v2025
      %v2027 = vrot.slane %v2025, 4
      %v2029 = vshrl.u32 %v1938, 16
      %v2031 = vrot.slane %v2029, 5
      %v2032 = vshll.u32 %v1938, 16
      %v2034 = vrot.slane %v2032, 6
      %v2035 = vor.u32 %v2031, %v2034
      %v2036 = vsel %vm1958, %v2027, %v2035
      %v2037 = vrot.slane %v2035, 4
      %v2039 = vshrl.u32 %v1939, 16
      %v2041 = vrot.slane %v2039, 5
      %v2042 = vshll.u32 %v1939, 16
      %v2044 = vrot.slane %v2042, 6
      %v2045 = vor.u32 %v2041, %v2044
      %v2046 = vsel %vm1958, %v2037, %v2045
      %v2047 = vrot.slane %v2045, 4
      %v2049 = vshrl.u32 %v1940, 16
      %v2051 = vrot.slane %v2049, 5
      %v2052 = vshll.u32 %v1940, 16
      %v2054 = vrot.slane %v2052, 6
      %v2055 = vor.u32 %v2051, %v2054
      %v2056 = vsel %vm1958, %v2047, %v2055
      %v2057 = vrot.slane %v2055, 4
      %v2059 = vshrl.u32 %v1941, 16
      %v2061 = vrot.slane %v2059, 5
      %v2062 = vshll.u32 %v1941, 16
      %v2064 = vrot.slane %v2062, 6
      %v2065 = vor.u32 %v2061, %v2064
      %v2066 = vsel %vm1958, %v2057, %v2065
      %v2067 = vrot.slane %v2065, 4
      %v2069 = vshrl.u32 %v1942, 16
      %v2071 = vrot.slane %v2069, 5
      %v2072 = vshll.u32 %v1942, 16
      %v2074 = vrot.slane %v2072, 6
      %v2075 = vor.u32 %v2071, %v2074
      %v2076 = vsel %vm1958, %v2067, %v2075
      %v2077 = vrot.slane %v2075, 4
      %v2079 = vshrl.u32 %v1943, 16
      %v2081 = vrot.slane %v2079, 5
      %v2082 = vshll.u32 %v1943, 16
      %v2084 = vrot.slane %v2082, 6
      %v2085 = vor.u32 %v2081, %v2084
      %v2086 = vsel %vm1958, %v2077, %v2085
      %v2087 = vrot.slane %v2085, 4
      %v2089 = vshrl.u32 %v1944, 16
      %v2091 = vrot.slane %v2089, 5
      %v2092 = vshll.u32 %v1944, 16
      %v2094 = vrot.slane %v2092, 6
      %v2095 = vor.u32 %v2091, %v2094
      %v2096 = vsel %vm1958, %v2087, %v2095
      %v2097 = vrot.slane %v2095, 4
      %v2099 = vshrl.u32 %v1945, 16
      %v2101 = vrot.slane %v2099, 5
      %v2102 = vshll.u32 %v1945, 16
      %v2104 = vrot.slane %v2102, 6
      %v2105 = vor.u32 %v2101, %v2104
      %v2106 = vsel %vm1958, %v2097, %v2105
      %v2107 = vrot.slane %v2105, 4
      %v2109 = vshrl.u32 %v1946, 16
      %v2111 = vrot.slane %v2109, 5
      %v2112 = vshll.u32 %v1946, 16
      %v2114 = vrot.slane %v2112, 6
      %v2115 = vor.u32 %v2111, %v2114
      %v2116 = vsel %vm1958, %v2107, %v2115
      %v2117 = vrot.slane %v2115, 4
      %v2119 = vshrl.u32 %v1947, 16
      %v2121 = vrot.slane %v2119, 5
      %v2122 = vshll.u32 %v1947, 16
      %v2124 = vrot.slane %v2122, 6
      %v2125 = vor.u32 %v2121, %v2124
      %v2126 = vsel %vm1958, %v2117, %v2125
      %v2127 = vrot.slane %v2125, 4
      %v2129 = vshrl.u32 %v1948, 16
      %v2131 = vrot.slane %v2129, 5
      %v2132 = vshll.u32 %v1948, 16
      %v2134 = vrot.slane %v2132, 6
      %v2135 = vor.u32 %v2131, %v2134
      %v2136 = vsel %vm1958, %v2127, %v2135
      %v2137 = vrot.slane %v2135, 4
      %v2139 = vshrl.u32 %v1949, 16
      %v2141 = vrot.slane %v2139, 5
      %v2142 = vshll.u32 %v1949, 16
      %v2144 = vrot.slane %v2142, 6
      %v2145 = vor.u32 %v2141, %v2144
      %v2146 = vsel %vm1958, %v2137, %v2145
      %v2147 = vrot.slane %v2145, 4
      %v2149 = vshrl.u32 %v1950, 16
      %v2151 = vrot.slane %v2149, 5
      %v2152 = vshll.u32 %v1950, 16
      %v2154 = vrot.slane %v2152, 6
      %v2155 = vor.u32 %v2151, %v2154
      %v2156 = vsel %vm1958, %v2147, %v2155
      %v2157 = vrot.slane %v2155, 4
      %v2159 = vshrl.u32 %v1951, 16
      %v2161 = vrot.slane %v2159, 5
      %v2162 = vshll.u32 %v1951, 16
      %v2164 = vrot.slane %v2162, 6
      %v2165 = vor.u32 %v2161, %v2164
      %v2166 = vsel %vm1958, %v2157, %v2165
      %v2167 = vrot.slane %v2165, 4
      %v2169 = vshrl.u32 %v1952, 16
      %v2171 = vrot.slane %v2169, 5
      %v2172 = vshll.u32 %v1952, 16
      %v2174 = vrot.slane %v2172, 6
      %v2175 = vor.u32 %v2171, %v2174
      %v2176 = vsel %vm1958, %v2167, %v2175
      %v2177 = vrot.slane %v2175, 4
      %v2179 = vshrl.u32 %v1953, 16
      %v2181 = vrot.slane %v2179, 5
      %v2182 = vshll.u32 %v1953, 16
      %v2184 = vrot.slane %v2182, 6
      %v2185 = vor.u32 %v2181, %v2184
      %v2186 = vsel %vm1958, %v2177, %v2185
      %v2187 = vrot.slane %v2185, 4
      %v2189 = vshrl.u32 %v1954, 16
      %v2191 = vrot.slane %v2189, 5
      %v2192 = vshll.u32 %v1954, 16
      %v2194 = vrot.slane %v2192, 6
      %v2195 = vor.u32 %v2191, %v2194
      %v2196 = vsel %vm1958, %v2187, %v2195
      %v2197 = vrot.slane %v2195, 4
      %v2199 = vshrl.u32 %v1955, 16
      %v2201 = vrot.slane %v2199, 5
      %v2202 = vshll.u32 %v1955, 16
      %v2204 = vrot.slane %v2202, 6
      %v2205 = vor.u32 %v2201, %v2204
      %v2206 = vsel %vm1958, %v2197, %v2205
      %2207 = vrot.lane.b32.xlu0 %v1976, 64
      %v2208 = vpop.permute.xlu0 %2207
      %2209 = vrot.lane.b32.xlu0 %v1986, 64
      %v2210 = vpop.permute.xlu0 %2209
      %2211 = vrot.lane.b32.xlu0 %v1996, 64
      %v2212 = vpop.permute.xlu0 %2211
      %2213 = vrot.lane.b32.xlu0 %v2006, 64
      %v2214 = vpop.permute.xlu0 %2213
      %2215 = vrot.lane.b32.xlu0 %v2016, 64
      %v2216 = vpop.permute.xlu0 %2215
      %2217 = vrot.lane.b32.xlu0 %v2026, 64
      %v2218 = vpop.permute.xlu0 %2217
      %2219 = vrot.lane.b32.xlu0 %v2036, 64
      %v2220 = vpop.permute.xlu0 %2219
      %2221 = vrot.lane.b32.xlu0 %v2046, 64
      %v2222 = vpop.permute.xlu0 %2221
      %2223 = vrot.lane.b32.xlu0 %v2056, 64
      %v2224 = vpop.permute.xlu0 %2223
      %2225 = vrot.lane.b32.xlu0 %v2066, 64
      %v2226 = vpop.permute.xlu0 %2225
      %2227 = vrot.lane.b32.xlu0 %v2076, 64
      %v2228 = vpop.permute.xlu0 %2227
      %2229 = vrot.lane.b32.xlu0 %v2086, 64
      %v2230 = vpop.permute.xlu0 %2229
      %2231 = vrot.lane.b32.xlu0 %v2096, 64
      %v2232 = vpop.permute.xlu0 %2231
      %2233 = vrot.lane.b32.xlu0 %v2106, 64
      %v2234 = vpop.permute.xlu0 %2233
      %2235 = vrot.lane.b32.xlu0 %v2116, 64
      %v2236 = vpop.permute.xlu0 %2235
      %2237 = vrot.lane.b32.xlu0 %v2126, 64
      %v2238 = vpop.permute.xlu0 %2237
      %2239 = vrot.lane.b32.xlu0 %v2136, 64
      %v2240 = vpop.permute.xlu0 %2239
      %2241 = vrot.lane.b32.xlu0 %v2146, 64
      %v2242 = vpop.permute.xlu0 %2241
      %2243 = vrot.lane.b32.xlu0 %v2156, 64
      %v2244 = vpop.permute.xlu0 %2243
      %2245 = vrot.lane.b32.xlu0 %v2166, 64
      %v2246 = vpop.permute.xlu0 %2245
      %2247 = vrot.lane.b32.xlu0 %v2176, 64
      %v2248 = vpop.permute.xlu0 %2247
      %2249 = vrot.lane.b32.xlu0 %v2186, 64
      %v2250 = vpop.permute.xlu0 %2249
      %2251 = vrot.lane.b32.xlu0 %v2196, 64
      %v2252 = vpop.permute.xlu0 %2251
      %2253 = vrot.lane.b32.xlu0 %v2206, 64
      %v2254 = vpop.permute.xlu0 %2253
      %2279 = vst.msk [vmem:[#allocation4 + $0x4] sm:$0xf] %vm1732, %v2208
      %2280 = vst.msk [vmem:[#allocation4 + $0x10] sm:$0xf] %vm1732, %v2210
      %2281 = vst.msk [vmem:[#allocation4 + $0x1c] sm:$0xf] %vm1732, %v2212
      %2282 = vst.msk [vmem:[#allocation4 + $0x28] sm:$0xf] %vm1732, %v2214
      %2283 = vst.msk [vmem:[#allocation4 + $0x34] sm:$0xf] %vm1732, %v2216
      %2284 = vst.msk [vmem:[#allocation4 + $0x40] sm:$0xf] %vm1732, %v2218
      %2285 = vst.msk [vmem:[#allocation4 + $0x4c] sm:$0xf] %vm1732, %v2220
      %2286 = vst.msk [vmem:[#allocation4 + $0x58] sm:$0xf] %vm1732, %v2222
      %2287 = vst.msk [vmem:[#allocation4 + $0x64] sm:$0xf] %vm1732, %v2224
      %2288 = vst.msk [vmem:[#allocation4 + $0x70] sm:$0xf] %vm1732, %v2226
      %2289 = vst.msk [vmem:[#allocation4 + $0x7c] sm:$0xf] %vm1732, %v2228
      %2290 = vst.msk [vmem:[#allocation4 + $0x88] sm:$0xf] %vm1732, %v2230
      %2291 = vst.msk [vmem:[#allocation4 + $0x94] sm:$0xf] %vm1732, %v2232
      %2292 = vst.msk [vmem:[#allocation4 + $0xa0] sm:$0xf] %vm1732, %v2234
      %2293 = vst.msk [vmem:[#allocation4 + $0xac] sm:$0xf] %vm1732, %v2236
      %2294 = vst.msk [vmem:[#allocation4 + $0xb8] sm:$0xf] %vm1732, %v2238
      %2295 = vst.msk [vmem:[#allocation4 + $0xc4] sm:$0xf] %vm1732, %v2240
      %2296 = vst.msk [vmem:[#allocation4 + $0xd0] sm:$0xf] %vm1732, %v2242
      %2297 = vst.msk [vmem:[#allocation4 + $0xdc] sm:$0xf] %vm1732, %v2244
      %2298 = vst.msk [vmem:[#allocation4 + $0xe8] sm:$0xf] %vm1732, %v2246
      %2299 = vst.msk [vmem:[#allocation4 + $0xf4] sm:$0xf] %vm1732, %v2248
      %2300 = vst.msk [vmem:[#allocation4 + $0x100] sm:$0xf] %vm1732, %v2250
      %2301 = vst.msk [vmem:[#allocation4 + $0x10c] sm:$0xf] %vm1732, %v2252
      %2302 = vst.msk [vmem:[#allocation4 + $0x118] sm:$0xf] %vm1732, %v2254
      %v2303 = vld [vmem:[#allocation3] sm:$0xc]
      %v2304 = vld [vmem:[#allocation3 + $0x4] sm:$0xf]
      %v2305 = vld [vmem:[#allocation3 + $0x8] sm:$0xf]
      %v2306 = vld [vmem:[#allocation3 + $0xc] sm:$0xf]
      %v2307 = vld [vmem:[#allocation3 + $0x10] sm:$0xf]
      %v2308 = vld [vmem:[#allocation3 + $0x14] sm:$0xf]
      %v2309 = vld [vmem:[#allocation3 + $0x18] sm:$0xf]
      %v2310 = vld [vmem:[#allocation3 + $0x1c] sm:$0xf]
      %v2311 = vld [vmem:[#allocation3 + $0x20] sm:$0xf]
      %v2312 = vld [vmem:[#allocation3 + $0x24] sm:$0xf]
      %v2313 = vld [vmem:[#allocation3 + $0x28] sm:$0xf]
      %v2314 = vld [vmem:[#allocation3 + $0x2c] sm:$0xf]
      %v2315 = vld [vmem:[#allocation3 + $0x30] sm:$0xf]
      %v2316 = vld [vmem:[#allocation3 + $0x34] sm:$0xf]
      %v2317 = vld [vmem:[#allocation3 + $0x38] sm:$0xf]
      %v2318 = vld [vmem:[#allocation3 + $0x3c] sm:$0xf]
      %v2319 = vld [vmem:[#allocation3 + $0x40] sm:$0xf]
      %v2320 = vld [vmem:[#allocation3 + $0x44] sm:$0xf]
      %v2321 = vld [vmem:[#allocation3 + $0x48] sm:$0xf]
      %v2322 = vld [vmem:[#allocation3 + $0x4c] sm:$0xf]
      %v2323 = vld [vmem:[#allocation3 + $0x50] sm:$0xf]
      %v2324 = vld [vmem:[#allocation3 + $0x54] sm:$0xf]
      %v2325 = vld [vmem:[#allocation3 + $0x58] sm:$0xf]
      %v2326 = vld [vmem:[#allocation3 + $0x5c] sm:$0xf]
      %v2327 = vld [vmem:[#allocation3 + $0x60] sm:$0x3]
      %vm2353 = vcmask 1041408
      %vm2354 = vcmask 1045508
      %vm2355 = vmor %vm2353, %vm2354
      %v2356 = vrot.slane %v2303, 6
      %v2357 = vrot.slane %v2356, 4
      %v2358 = vrot.slane %v2304, 6
      %v2359 = vsel %vm2355, %v2357, %v2358
      %v2360 = vrot.slane %v2358, 4
      %v2361 = vrot.slane %v2305, 6
      %v2362 = vsel %vm2355, %v2360, %v2361
      %v2363 = vrot.slane %v2361, 4
      %v2364 = vrot.slane %v2306, 6
      %v2365 = vsel %vm2355, %v2363, %v2364
      %v2366 = vrot.slane %v2364, 4
      %v2367 = vrot.slane %v2307, 6
      %v2368 = vsel %vm2355, %v2366, %v2367
      %v2369 = vrot.slane %v2367, 4
      %v2370 = vrot.slane %v2308, 6
      %v2371 = vsel %vm2355, %v2369, %v2370
      %v2372 = vrot.slane %v2370, 4
      %v2373 = vrot.slane %v2309, 6
      %v2374 = vsel %vm2355, %v2372, %v2373
      %v2375 = vrot.slane %v2373, 4
      %v2376 = vrot.slane %v2310, 6
      %v2377 = vsel %vm2355, %v2375, %v2376
      %v2378 = vrot.slane %v2376, 4
      %v2379 = vrot.slane %v2311, 6
      %v2380 = vsel %vm2355, %v2378, %v2379
      %v2381 = vrot.slane %v2379, 4
      %v2382 = vrot.slane %v2312, 6
      %v2383 = vsel %vm2355, %v2381, %v2382
      %v2384 = vrot.slane %v2382, 4
      %v2385 = vrot.slane %v2313, 6
      %v2386 = vsel %vm2355, %v2384, %v2385
      %v2387 = vrot.slane %v2385, 4
      %v2388 = vrot.slane %v2314, 6
      %v2389 = vsel %vm2355, %v2387, %v2388
      %v2390 = vrot.slane %v2388, 4
      %v2391 = vrot.slane %v2315, 6
      %v2392 = vsel %vm2355, %v2390, %v2391
      %v2393 = vrot.slane %v2391, 4
      %v2394 = vrot.slane %v2316, 6
      %v2395 = vsel %vm2355, %v2393, %v2394
      %v2396 = vrot.slane %v2394, 4
      %v2397 = vrot.slane %v2317, 6
      %v2398 = vsel %vm2355, %v2396, %v2397
      %v2399 = vrot.slane %v2397, 4
      %v2400 = vrot.slane %v2318, 6
      %v2401 = vsel %vm2355, %v2399, %v2400
      %v2402 = vrot.slane %v2400, 4
      %v2403 = vrot.slane %v2319, 6
      %v2404 = vsel %vm2355, %v2402, %v2403
      %v2405 = vrot.slane %v2403, 4
      %v2406 = vrot.slane %v2320, 6
      %v2407 = vsel %vm2355, %v2405, %v2406
      %v2408 = vrot.slane %v2406, 4
      %v2409 = vrot.slane %v2321, 6
      %v2410 = vsel %vm2355, %v2408, %v2409
      %v2411 = vrot.slane %v2409, 4
      %v2412 = vrot.slane %v2322, 6
      %v2413 = vsel %vm2355, %v2411, %v2412
      %v2414 = vrot.slane %v2412, 4
      %v2415 = vrot.slane %v2323, 6
      %v2416 = vsel %vm2355, %v2414, %v2415
      %v2417 = vrot.slane %v2415, 4
      %v2418 = vrot.slane %v2324, 6
      %v2419 = vsel %vm2355, %v2417, %v2418
      %v2420 = vrot.slane %v2418, 4
      %v2421 = vrot.slane %v2325, 6
      %v2422 = vsel %vm2355, %v2420, %v2421
      %v2423 = vrot.slane %v2421, 4
      %v2424 = vrot.slane %v2326, 6
      %v2425 = vsel %vm2355, %v2423, %v2424
      %v2426 = vrot.slane %v2424, 4
      %v2427 = vrot.slane %v2327, 6
      %v2428 = vsel %vm2355, %v2426, %v2427
      %2453 = vst.msk [vmem:[#allocation4 + $0x8] sm:$0xf] %vm1313, %v2359
      %2454 = vst.msk [vmem:[#allocation4 + $0x14] sm:$0xf] %vm1313, %v2362
      %2455 = vst.msk [vmem:[#allocation4 + $0x20] sm:$0xf] %vm1313, %v2365
      %2456 = vst.msk [vmem:[#allocation4 + $0x2c] sm:$0xf] %vm1313, %v2368
      %2457 = vst.msk [vmem:[#allocation4 + $0x38] sm:$0xf] %vm1313, %v2371
      %2458 = vst.msk [vmem:[#allocation4 + $0x44] sm:$0xf] %vm1313, %v2374
      %2459 = vst.msk [vmem:[#allocation4 + $0x50] sm:$0xf] %vm1313, %v2377
      %2460 = vst.msk [vmem:[#allocation4 + $0x5c] sm:$0xf] %vm1313, %v2380
      %2461 = vst.msk [vmem:[#allocation4 + $0x68] sm:$0xf] %vm1313, %v2383
      %2462 = vst.msk [vmem:[#allocation4 + $0x74] sm:$0xf] %vm1313, %v2386
      %2463 = vst.msk [vmem:[#allocation4 + $0x80] sm:$0xf] %vm1313, %v2389
      %2464 = vst.msk [vmem:[#allocation4 + $0x8c] sm:$0xf] %vm1313, %v2392
      %2465 = vst.msk [vmem:[#allocation4 + $0x98] sm:$0xf] %vm1313, %v2395
      %2466 = vst.msk [vmem:[#allocation4 + $0xa4] sm:$0xf] %vm1313, %v2398
      %2467 = vst.msk [vmem:[#allocation4 + $0xb0] sm:$0xf] %vm1313, %v2401
      %2468 = vst.msk [vmem:[#allocation4 + $0xbc] sm:$0xf] %vm1313, %v2404
      %2469 = vst.msk [vmem:[#allocation4 + $0xc8] sm:$0xf] %vm1313, %v2407
      %2470 = vst.msk [vmem:[#allocation4 + $0xd4] sm:$0xf] %vm1313, %v2410
      %2471 = vst.msk [vmem:[#allocation4 + $0xe0] sm:$0xf] %vm1313, %v2413
      %2472 = vst.msk [vmem:[#allocation4 + $0xec] sm:$0xf] %vm1313, %v2416
      %2473 = vst.msk [vmem:[#allocation4 + $0xf8] sm:$0xf] %vm1313, %v2419
      %2474 = vst.msk [vmem:[#allocation4 + $0x104] sm:$0xf] %vm1313, %v2422
      %2475 = vst.msk [vmem:[#allocation4 + $0x110] sm:$0xf] %vm1313, %v2425
      %2476 = vst.msk [vmem:[#allocation4 + $0x11c] sm:$0xf] %vm1313, %v2428
      %v2477 = vld [vmem:[#allocation4] sm:$0xff]
      %v2478 = vld [vmem:[#allocation4 + $0x8] sm:$0xf]
      %v2479 = vld [vmem:[#allocation4 + $0xc] sm:$0xff]
      %v2480 = vld [vmem:[#allocation4 + $0x14] sm:$0xf]
      %v2481 = vld [vmem:[#allocation4 + $0x18] sm:$0xff]
      %v2482 = vld [vmem:[#allocation4 + $0x20] sm:$0xf]
      %v2483 = vld [vmem:[#allocation4 + $0x24] sm:$0xff]
      %v2484 = vld [vmem:[#allocation4 + $0x2c] sm:$0xf]
      %v2485 = vld [vmem:[#allocation4 + $0x30] sm:$0xff]
      %v2486 = vld [vmem:[#allocation4 + $0x38] sm:$0xf]
      %v2487 = vld [vmem:[#allocation4 + $0x3c] sm:$0xff]
      %v2488 = vld [vmem:[#allocation4 + $0x44] sm:$0xf]
      %v2489 = vld [vmem:[#allocation4 + $0x48] sm:$0xff]
      %v2490 = vld [vmem:[#allocation4 + $0x50] sm:$0xf]
      %v2491 = vld [vmem:[#allocation4 + $0x54] sm:$0xff]
      %v2492 = vld [vmem:[#allocation4 + $0x5c] sm:$0xf]
      %v2493 = vld [vmem:[#allocation4 + $0x60] sm:$0xff]
      %v2494 = vld [vmem:[#allocation4 + $0x68] sm:$0xf]
      %v2495 = vld [vmem:[#allocation4 + $0x6c] sm:$0xff]
      %v2496 = vld [vmem:[#allocation4 + $0x74] sm:$0xf]
      %v2497 = vld [vmem:[#allocation4 + $0x78] sm:$0xff]
      %v2498 = vld [vmem:[#allocation4 + $0x80] sm:$0xf]
      %v2499 = vld [vmem:[#allocation4 + $0x84] sm:$0xff]
      %v2500 = vld [vmem:[#allocation4 + $0x8c] sm:$0xf]
      %v2501 = vld [vmem:[#allocation4 + $0x90] sm:$0xff]
      %v2502 = vld [vmem:[#allocation4 + $0x98] sm:$0xf]
      %v2503 = vld [vmem:[#allocation4 + $0x9c] sm:$0xff]
      %v2504 = vld [vmem:[#allocation4 + $0xa4] sm:$0xf]
      %v2505 = vld [vmem:[#allocation4 + $0xa8] sm:$0xff]
      %v2506 = vld [vmem:[#allocation4 + $0xb0] sm:$0xf]
      %v2507 = vld [vmem:[#allocation4 + $0xb4] sm:$0xff]
      %v2508 = vld [vmem:[#allocation4 + $0xbc] sm:$0xf]
      %v2509 = vld [vmem:[#allocation4 + $0xc0] sm:$0xff]
      %v2510 = vld [vmem:[#allocation4 + $0xc8] sm:$0xf]
      %v2511 = vld [vmem:[%s3] sm:$0xf]
      %v2512 = vld [vmem:[%s3 + $0x4] sm:$0xf]
      %v2513 = vld [vmem:[%s3 + $0x8] sm:$0xf]
      %v2514 = vld [vmem:[%s3 + $0xc] sm:$0xf]
      %v2515 = vld [vmem:[%s3 + $0x10] sm:$0xf]
      %v2516 = vld [vmem:[%s3 + $0x14] sm:$0xf]
      %v2517 = vld [vmem:[%s3 + $0x18] sm:$0xf]
      %v2518 = vld [vmem:[%s3 + $0x1c] sm:$0xf]
      %v2519 = vld [vmem:[%s3 + $0x20] sm:$0xf]
      %v2520 = vld [vmem:[%s3 + $0x24] sm:$0xf]
      %v2521 = vld [vmem:[%s3 + $0x28] sm:$0xf]
      %v2522 = vld [vmem:[%s3 + $0x2c] sm:$0xf]
      %v2523 = vld [vmem:[%s3 + $0x30] sm:$0xf]
      %v2524 = vld [vmem:[%s3 + $0x34] sm:$0xf]
      %v2525 = vld [vmem:[%s3 + $0x38] sm:$0xf]
      %v2526 = vld [vmem:[%s3 + $0x3c] sm:$0xf]
      %v2527 = vld [vmem:[%s3 + $0x40] sm:$0xf]
      %v2528 = vld [vmem:[%s3 + $0x44] sm:$0xf]
      %v2529 = vld [vmem:[%s3 + $0x48] sm:$0xf]
      %v2530 = vld [vmem:[%s3 + $0x4c] sm:$0xf]
      %v2531 = vld [vmem:[%s3 + $0x50] sm:$0xf]
      %v2532 = vld [vmem:[%s3 + $0x54] sm:$0xf]
      %v2533 = vld [vmem:[%s3 + $0x58] sm:$0xf]
      %v2534 = vld [vmem:[%s3 + $0x5c] sm:$0xf]
      %v2535 = vld [vmem:[%s3 + $0x60] sm:$0xf]
      %v2536 = vld [vmem:[%s3 + $0x64] sm:$0xf]
      %v2537 = vld [vmem:[%s3 + $0x68] sm:$0xf]
      %v2538 = vld [vmem:[%s3 + $0x6c] sm:$0xf]
      %v2539 = vld [vmem:[%s3 + $0x70] sm:$0xf]
      %v2540 = vld [vmem:[%s3 + $0x74] sm:$0xf]
      %v2541 = vld [vmem:[%s3 + $0x78] sm:$0xf]
      %v2542 = vld [vmem:[%s3 + $0x7c] sm:$0xf]
      %v2543 = vld [vmem:[%s3 + $0x80] sm:$0xf]
      %v2544 = vld [vmem:[%s3 + $0x84] sm:$0xf]
      %v2545 = vld [vmem:[%s3 + $0x88] sm:$0xf]
      %v2546 = vld [vmem:[%s3 + $0x8c] sm:$0xf]
      %v2547 = vld [vmem:[%s3 + $0x90] sm:$0xf]
      %v2548 = vld [vmem:[%s3 + $0x94] sm:$0xf]
      %v2549 = vld [vmem:[%s3 + $0x98] sm:$0xf]
      %v2550 = vld [vmem:[%s3 + $0x9c] sm:$0xf]
      %v2551 = vld [vmem:[#allocation4 + $0xc] sm:$0x88]
      %v2552 = vld [vmem:[#allocation4 + $0x14] sm:$0x8]
      %v2553 = vld [vmem:[#allocation4 + $0xcc] sm:$0xff]
      %v2554 = vld [vmem:[#allocation4 + $0xd4] sm:$0xf]
      %v2555 = vld [vmem:[#allocation4 + $0xd8] sm:$0x77]
      %v2556 = vld [vmem:[#allocation4 + $0xe0] sm:$0x7]
      %s2557 = scalar_lea.vmem %s3, 160
      %v2558 = vld [vmem:[%s2557] sm:$0xf]
      %v2559 = vld [vmem:[%s2557 + $0x4] sm:$0xf]
      %v2560 = vld [vmem:[%s2557 + $0x8] sm:$0xf]
      %v2561 = vld [vmem:[%s2557 + $0xc] sm:$0xf]
      %v2562 = vld [vmem:[%s2557 + $0x10] sm:$0xf]
      %v2563 = vld [vmem:[%s2557 + $0x14] sm:$0xf]
      %v2564 = vld [vmem:[%s2557 + $0x18] sm:$0xf]
      %v2565 = vld [vmem:[%s2557 + $0x1c] sm:$0xf]
      %v2566 = vld [vmem:[%s2557 + $0x20] sm:$0xf]
      %v2567 = vld [vmem:[%s2557 + $0x24] sm:$0xf]
      %v2568 = vld [vmem:[%s2557 + $0x28] sm:$0xf]
      %v2569 = vld [vmem:[%s2557 + $0x2c] sm:$0xf]
      %v2570 = vld [vmem:[%s2557 + $0x30] sm:$0xf]
      %v2571 = vld [vmem:[%s2557 + $0x34] sm:$0xf]
      %v2572 = vld [vmem:[%s2557 + $0x38] sm:$0xf]
      %v2573 = vld [vmem:[%s2557 + $0x3c] sm:$0xf]
      %v2574 = vld [vmem:[%s2557 + $0x40] sm:$0xf]
      %v2575 = vld [vmem:[%s2557 + $0x44] sm:$0xf]
      %v2576 = vld [vmem:[%s2557 + $0x48] sm:$0xf]
      %v2577 = vld [vmem:[%s2557 + $0x4c] sm:$0xf]
      %v2578 = vld [vmem:[%s2557 + $0x50] sm:$0xf]
      %v2579 = vld [vmem:[%s2557 + $0x54] sm:$0xf]
      %v2580 = vld [vmem:[%s2557 + $0x58] sm:$0xf]
      %v2581 = vld [vmem:[%s2557 + $0x5c] sm:$0xf]
      %v2582 = vld [vmem:[%s2557 + $0x60] sm:$0xf]
      %v2583 = vld [vmem:[%s2557 + $0x64] sm:$0xf]
      %v2584 = vld [vmem:[%s2557 + $0x68] sm:$0xf]
      %v2585 = vld [vmem:[%s2557 + $0x6c] sm:$0xf]
      %v2586 = vld [vmem:[%s2557 + $0x70] sm:$0xf]
      %v2587 = vld [vmem:[%s2557 + $0x74] sm:$0xf]
      %v2588 = vld [vmem:[%s2557 + $0x78] sm:$0xf]
      %v2589 = vld [vmem:[%s2557 + $0x7c] sm:$0xf]
      %v2590 = vld [vmem:[%s2557 + $0x80] sm:$0xf]
      %v2591 = vld [vmem:[%s2557 + $0x84] sm:$0xf]
      %v2592 = vld [vmem:[%s2557 + $0x88] sm:$0xf]
      %v2593 = vld [vmem:[%s2557 + $0x8c] sm:$0xf]
      %v2594 = vld [vmem:[%s2557 + $0x90] sm:$0xf]
      %v2595 = vld [vmem:[%s2557 + $0x94] sm:$0xf]
      %v2596 = vld [vmem:[%s2557 + $0x98] sm:$0xf]
      %v2597 = vld [vmem:[%s2557 + $0x9c] sm:$0xf]
      %v2634 = vunpack.c.l.b16 %v2551
      %v2635 = vunpack.c.h.b16 %v2551
      %v2636 = vunpack.c.l.b16 %v2552
      %v2637 = vunpack.c.l.b16 %v2481
      %v2638 = vunpack.c.h.b16 %v2481
      %v2639 = vunpack.c.l.b16 %v2482
      %v2640 = vunpack.c.l.b16 %v2483
      %v2641 = vunpack.c.h.b16 %v2483
      %v2642 = vunpack.c.l.b16 %v2484
      %v2643 = vunpack.c.l.b16 %v2485
      %v2644 = vunpack.c.h.b16 %v2485
      %v2645 = vunpack.c.l.b16 %v2486
      %v2646 = vunpack.c.l.b16 %v2487
      %v2647 = vunpack.c.h.b16 %v2487
      %v2648 = vunpack.c.l.b16 %v2488
      %v2649 = vunpack.c.l.b16 %v2489
      %v2650 = vunpack.c.h.b16 %v2489
      %v2651 = vunpack.c.l.b16 %v2490
      %v2652 = vunpack.c.l.b16 %v2491
      %v2653 = vunpack.c.h.b16 %v2491
      %v2654 = vunpack.c.l.b16 %v2492
      %v2655 = vunpack.c.l.b16 %v2493
      %v2656 = vunpack.c.h.b16 %v2493
      %v2657 = vunpack.c.l.b16 %v2494
      %v2658 = vunpack.c.l.b16 %v2495
      %v2659 = vunpack.c.h.b16 %v2495
      %v2660 = vunpack.c.l.b16 %v2496
      %v2661 = vunpack.c.l.b16 %v2497
      %v2662 = vunpack.c.h.b16 %v2497
      %v2663 = vunpack.c.l.b16 %v2498
      %v2664 = vunpack.c.l.b16 %v2499
      %v2665 = vunpack.c.h.b16 %v2499
      %v2666 = vunpack.c.l.b16 %v2500
      %v2667 = vunpack.c.l.b16 %v2501
      %v2668 = vunpack.c.h.b16 %v2501
      %v2669 = vunpack.c.l.b16 %v2502
      %v2670 = vunpack.c.l.b16 %v2503
      %v2671 = vunpack.c.h.b16 %v2503
      %v2672 = vunpack.c.l.b16 %v2504
      %v2673 = vunpack.c.l.b16 %v2505
      %v2674 = vunpack.c.h.b16 %v2505
      %v2675 = vunpack.c.l.b16 %v2506
      %v2676 = vunpack.c.l.b16 %v2507
      %v2677 = vunpack.c.h.b16 %v2507
      %v2678 = vunpack.c.l.b16 %v2508
      %v2679 = vunpack.c.l.b16 %v2509
      %v2680 = vunpack.c.h.b16 %v2509
      %v2681 = vunpack.c.l.b16 %v2510
      %v2682 = vunpack.c.l.b16 %v2553
      %v2683 = vunpack.c.h.b16 %v2553
      %v2684 = vunpack.c.l.b16 %v2554
      %v2685 = vunpack.c.l.b16 %v2555
      %v2686 = vunpack.c.h.b16 %v2555
      %v2687 = vunpack.c.l.b16 %v2556
      %v2688 = vpack.c.b16 %v2637, %v2634
      %v2689 = vpack.c.b16 %v2638, %v2635
      %v2690 = vpack.c.b16 %v2639, %v2636
      %v2691 = vpack.c.b16 %v2643, %v2640
      %v2692 = vpack.c.b16 %v2644, %v2641
      %v2693 = vpack.c.b16 %v2645, %v2642
      %v2694 = vpack.c.b16 %v2649, %v2646
      %v2695 = vpack.c.b16 %v2650, %v2647
      %v2696 = vpack.c.b16 %v2651, %v2648
      %v2697 = vpack.c.b16 %v2655, %v2652
      %v2698 = vpack.c.b16 %v2656, %v2653
      %v2699 = vpack.c.b16 %v2657, %v2654
      %v2700 = vpack.c.b16 %v2661, %v2658
      %v2701 = vpack.c.b16 %v2662, %v2659
      %v2702 = vpack.c.b16 %v2663, %v2660
      %v2703 = vpack.c.b16 %v2667, %v2664
      %v2704 = vpack.c.b16 %v2668, %v2665
      %v2705 = vpack.c.b16 %v2669, %v2666
      %v2706 = vpack.c.b16 %v2673, %v2670
      %v2707 = vpack.c.b16 %v2674, %v2671
      %v2708 = vpack.c.b16 %v2675, %v2672
      %v2709 = vpack.c.b16 %v2679, %v2676
      %v2710 = vpack.c.b16 %v2680, %v2677
      %v2711 = vpack.c.b16 %v2681, %v2678
      %v2712 = vpack.c.b16 %v2685, %v2682
      %v2713 = vpack.c.b16 %v2686, %v2683
      %v2714 = vpack.c.b16 %v2687, %v2684
      %vm2715 = vcmask 1044480
      %v2716 = vrot.slane %v2688, 3
      %v2717 = vrot.slane %v2691, 3
      %v2718 = vsel %vm2715, %v2716, %v2717
      %v2719 = vrot.slane %v2689, 3
      %v2720 = vrot.slane %v2692, 3
      %v2721 = vsel %vm2715, %v2719, %v2720
      %v2722 = vrot.slane %v2690, 3
      %v2723 = vrot.slane %v2693, 3
      %v2724 = vsel %vm2715, %v2722, %v2723
      %v2725 = vrot.slane %v2694, 3
      %v2726 = vsel %vm2715, %v2717, %v2725
      %v2727 = vrot.slane %v2695, 3
      %v2728 = vsel %vm2715, %v2720, %v2727
      %v2729 = vrot.slane %v2696, 3
      %v2730 = vsel %vm2715, %v2723, %v2729
      %v2731 = vrot.slane %v2697, 3
      %v2732 = vsel %vm2715, %v2725, %v2731
      %v2733 = vrot.slane %v2698, 3
      %v2734 = vsel %vm2715, %v2727, %v2733
      %v2735 = vrot.slane %v2699, 3
      %v2736 = vsel %vm2715, %v2729, %v2735
      %v2737 = vrot.slane %v2700, 3
      %v2738 = vsel %vm2715, %v2731, %v2737
      %v2739 = vrot.slane %v2701, 3
      %v2740 = vsel %vm2715, %v2733, %v2739
      %v2741 = vrot.slane %v2702, 3
      %v2742 = vsel %vm2715, %v2735, %v2741
      %v2743 = vrot.slane %v2703, 3
      %v2744 = vsel %vm2715, %v2737, %v2743
      %v2745 = vrot.slane %v2704, 3
      %v2746 = vsel %vm2715, %v2739, %v2745
      %v2747 = vrot.slane %v2705, 3
      %v2748 = vsel %vm2715, %v2741, %v2747
      %v2749 = vrot.slane %v2706, 3
      %v2750 = vsel %vm2715, %v2743, %v2749
      %v2751 = vrot.slane %v2707, 3
      %v2752 = vsel %vm2715, %v2745, %v2751
      %v2753 = vrot.slane %v2708, 3
      %v2754 = vsel %vm2715, %v2747, %v2753
      %v2755 = vrot.slane %v2709, 3
      %v2756 = vsel %vm2715, %v2749, %v2755
      %v2757 = vrot.slane %v2710, 3
      %v2758 = vsel %vm2715, %v2751, %v2757
      %v2759 = vrot.slane %v2711, 3
      %v2760 = vsel %vm2715, %v2753, %v2759
      %v2761 = vrot.slane %v2712, 3
      %v2762 = vsel %vm2715, %v2755, %v2761
      %v2763 = vrot.slane %v2713, 3
      %v2764 = vsel %vm2715, %v2757, %v2763
      %v2765 = vrot.slane %v2714, 3
      %v2766 = vsel %vm2715, %v2759, %v2765
      %v2825 = vunpack.c.l.b16 %v2558
      %v2826 = vunpack.c.l.b16 %v2559
      %v2827 = vunpack.c.l.b16 %v2560
      %v2828 = vunpack.c.l.b16 %v2561
      %v2829 = vunpack.c.l.b16 %v2562
      %v2830 = vunpack.c.l.b16 %v2563
      %v2831 = vunpack.c.l.b16 %v2564
      %v2832 = vunpack.c.l.b16 %v2565
      %v2833 = vunpack.c.l.b16 %v2566
      %v2834 = vunpack.c.l.b16 %v2567
      %v2835 = vunpack.c.l.b16 %v2568
      %v2836 = vunpack.c.l.b16 %v2569
      %v2837 = vunpack.c.l.b16 %v2570
      %v2838 = vunpack.c.l.b16 %v2571
      %v2839 = vunpack.c.l.b16 %v2572
      %v2840 = vunpack.c.l.b16 %v2573
      %v2841 = vunpack.c.l.b16 %v2574
      %v2842 = vunpack.c.l.b16 %v2575
      %v2843 = vunpack.c.l.b16 %v2576
      %v2844 = vunpack.c.l.b16 %v2577
      %v2845 = vunpack.c.l.b16 %v2578
      %v2846 = vunpack.c.l.b16 %v2579
      %v2847 = vunpack.c.l.b16 %v2580
      %v2848 = vunpack.c.l.b16 %v2581
      %v2849 = vunpack.c.l.b16 %v2582
      %v2850 = vunpack.c.l.b16 %v2583
      %v2851 = vunpack.c.l.b16 %v2584
      %v2852 = vunpack.c.l.b16 %v2585
      %v2853 = vunpack.c.l.b16 %v2586
      %v2854 = vunpack.c.l.b16 %v2587
      %v2855 = vunpack.c.l.b16 %v2588
      %v2856 = vunpack.c.l.b16 %v2589
      %v2857 = vunpack.c.l.b16 %v2590
      %v2858 = vunpack.c.l.b16 %v2591
      %v2859 = vunpack.c.l.b16 %v2592
      %v2860 = vunpack.c.l.b16 %v2593
      %v2861 = vunpack.c.l.b16 %v2594
      %v2862 = vunpack.c.l.b16 %v2595
      %v2863 = vunpack.c.l.b16 %v2596
      %v2864 = vunpack.c.l.b16 %v2597
      %v2865 = vpack.c.b16 %v2826, %v2825
      %v2866 = vpack.c.b16 %v2828, %v2827
      %v2867 = vpack.c.b16 %v2830, %v2829
      %v2868 = vpack.c.b16 %v2832, %v2831
      %v2869 = vpack.c.b16 %v2834, %v2833
      %v2870 = vpack.c.b16 %v2836, %v2835
      %v2871 = vpack.c.b16 %v2838, %v2837
      %v2872 = vpack.c.b16 %v2840, %v2839
      %v2873 = vpack.c.b16 %v2842, %v2841
      %v2874 = vpack.c.b16 %v2844, %v2843
      %v2875 = vpack.c.b16 %v2846, %v2845
      %v2876 = vpack.c.b16 %v2848, %v2847
      %v2877 = vpack.c.b16 %v2850, %v2849
      %v2878 = vpack.c.b16 %v2852, %v2851
      %v2879 = vpack.c.b16 %v2854, %v2853
      %v2880 = vpack.c.b16 %v2856, %v2855
      %v2881 = vpack.c.b16 %v2858, %v2857
      %v2882 = vpack.c.b16 %v2860, %v2859
      %v2883 = vpack.c.b16 %v2862, %v2861
      %v2884 = vpack.c.b16 %v2864, %v2863
      %v2906 = vsel %vm958, %v2724, 0
      %v2909 = vsel %vm958, %v2730, 0
      %v2912 = vsel %vm958, %v2736, 0
      %v2915 = vsel %vm958, %v2742, 0
      %v2918 = vsel %vm958, %v2748, 0
      %v2921 = vsel %vm958, %v2754, 0
      %v2924 = vsel %vm958, %v2760, 0
      %v2927 = vsel %vm958, %v2766, 0
      %v2930 = vsel %vm958, %v2765, 0
      %2932 = vmatpush.bf16.msra.mxu0 %v2872
      %2933 = vmatpush.bf16.msra.mxu0 %v2871
      %2934 = vmatpush.bf16.msra.mxu0 %v2870
      %2935 = vmatpush.bf16.msra.mxu0 %v2869
      %2936 = vmatpush.bf16.msra.mxu0 %v2868
      %2937 = vmatpush.bf16.msra.mxu0 %v2867
      %2938 = vmatpush.bf16.msra.mxu0 %v2866
      %2939 = vmatpush.bf16.msra.mxu0 %v2865
      %2940 = vmatmul.bf16.gmra.mxu0 %v2718
      %v2941 = vpop.f32.mrf.mxu0
      %v2942 = vadd.f32 0.0, %v2941
      %v2943 = vpop.f32.mrf.mxu0
      %v2944 = vadd.f32 0.0, %v2943
      %2945 = vmatmul.bf16.gmra.mxu0 %v2726
      %v2946 = vpop.f32.mrf.mxu0
      %v2947 = vadd.f32 0.0, %v2946
      %v2948 = vpop.f32.mrf.mxu0
      %v2949 = vadd.f32 0.0, %v2948
      %2950 = vmatmul.bf16.gmra.mxu0 %v2732
      %v2951 = vpop.f32.mrf.mxu0
      %v2952 = vadd.f32 0.0, %v2951
      %v2953 = vpop.f32.mrf.mxu0
      %v2954 = vadd.f32 0.0, %v2953
      %2955 = vmatmul.bf16.gmra.mxu0 %v2738
      %v2956 = vpop.f32.mrf.mxu0
      %v2957 = vadd.f32 0.0, %v2956
      %v2958 = vpop.f32.mrf.mxu0
      %v2959 = vadd.f32 0.0, %v2958
      %2960 = vmatmul.bf16.gmra.mxu0 %v2744
      %v2961 = vpop.f32.mrf.mxu0
      %v2962 = vadd.f32 0.0, %v2961
      %v2963 = vpop.f32.mrf.mxu0
      %v2964 = vadd.f32 0.0, %v2963
      %2965 = vmatmul.bf16.gmra.mxu0 %v2750
      %v2966 = vpop.f32.mrf.mxu0
      %v2967 = vadd.f32 0.0, %v2966
      %v2968 = vpop.f32.mrf.mxu0
      %v2969 = vadd.f32 0.0, %v2968
      %2970 = vmatmul.bf16.gmra.mxu0 %v2756
      %v2971 = vpop.f32.mrf.mxu0
      %v2972 = vadd.f32 0.0, %v2971
      %v2973 = vpop.f32.mrf.mxu0
      %v2974 = vadd.f32 0.0, %v2973
      %2975 = vmatmul.bf16.gmra.mxu0 %v2762
      %v2976 = vpop.f32.mrf.mxu0
      %v2977 = vadd.f32 0.0, %v2976
      %v2978 = vpop.f32.mrf.mxu0
      %v2979 = vadd.f32 0.0, %v2978
      %2980 = vmatmul.bf16.gmra.mxu0 %v2761
      %v2981 = vpop.f32.mrf.mxu0
      %v2982 = vadd.f32 0.0, %v2981
      %v2983 = vpop.f32.mrf.mxu0
      %2984 = vdwg.mxu0
      %2985 = vmatpush.bf16.msra.mxu0 %v2880
      %2986 = vmatpush.bf16.msra.mxu0 %v2879
      %2987 = vmatpush.bf16.msra.mxu0 %v2878
      %2988 = vmatpush.bf16.msra.mxu0 %v2877
      %2989 = vmatpush.bf16.msra.mxu0 %v2876
      %2990 = vmatpush.bf16.msra.mxu0 %v2875
      %2991 = vmatpush.bf16.msra.mxu0 %v2874
      %2992 = vmatpush.bf16.msra.mxu0 %v2873
      %2993 = vmatmul.bf16.gmra.mxu0 %v2721
      %v2994 = vpop.f32.mrf.mxu0
      %v2995 = vadd.f32 %v2942, %v2994
      %v2996 = vpop.f32.mrf.mxu0
      %v2997 = vadd.f32 %v2944, %v2996
      %2998 = vmatmul.bf16.gmra.mxu0 %v2728
      %v2999 = vpop.f32.mrf.mxu0
      %v3000 = vadd.f32 %v2947, %v2999
      %v3001 = vpop.f32.mrf.mxu0
      %v3002 = vadd.f32 %v2949, %v3001
      %3003 = vmatmul.bf16.gmra.mxu0 %v2734
      %v3004 = vpop.f32.mrf.mxu0
      %v3005 = vadd.f32 %v2952, %v3004
      %v3006 = vpop.f32.mrf.mxu0
      %v3007 = vadd.f32 %v2954, %v3006
      %3008 = vmatmul.bf16.gmra.mxu0 %v2740
      %v3009 = vpop.f32.mrf.mxu0
      %v3010 = vadd.f32 %v2957, %v3009
      %v3011 = vpop.f32.mrf.mxu0
      %v3012 = vadd.f32 %v2959, %v3011
      %3013 = vmatmul.bf16.gmra.mxu0 %v2746
      %v3014 = vpop.f32.mrf.mxu0
      %v3015 = vadd.f32 %v2962, %v3014
      %v3016 = vpop.f32.mrf.mxu0
      %v3017 = vadd.f32 %v2964, %v3016
      %3018 = vmatmul.bf16.gmra.mxu0 %v2752
      %v3019 = vpop.f32.mrf.mxu0
      %v3020 = vadd.f32 %v2967, %v3019
      %v3021 = vpop.f32.mrf.mxu0
      %v3022 = vadd.f32 %v2969, %v3021
      %3023 = vmatmul.bf16.gmra.mxu0 %v2758
      %v3024 = vpop.f32.mrf.mxu0
      %v3025 = vadd.f32 %v2972, %v3024
      %v3026 = vpop.f32.mrf.mxu0
      %v3027 = vadd.f32 %v2974, %v3026
      %3028 = vmatmul.bf16.gmra.mxu0 %v2764
      %v3029 = vpop.f32.mrf.mxu0
      %v3030 = vadd.f32 %v2977, %v3029
      %v3031 = vpop.f32.mrf.mxu0
      %v3032 = vadd.f32 %v2979, %v3031
      %3033 = vmatmul.bf16.gmra.mxu0 %v2763
      %v3034 = vpop.f32.mrf.mxu0
      %v3035 = vadd.f32 %v2982, %v3034
      %v3036 = vpop.f32.mrf.mxu0
      %3037 = vdwg.mxu0
      %3038 = vmatpush.bf16.msra.mxu0 0
      %3039 = vmatpush.bf16.msra.mxu0 0
      %3040 = vmatpush.bf16.msra.mxu0 0
      %3041 = vmatpush.bf16.msra.mxu0 0
      %3042 = vmatpush.bf16.msra.mxu0 %v2884
      %3043 = vmatpush.bf16.msra.mxu0 %v2883
      %3044 = vmatpush.bf16.msra.mxu0 %v2882
      %3045 = vmatpush.bf16.msra.mxu0 %v2881
      %3046 = vmatmul.bf16.gmra.mxu0 %v2906
      %v3047 = vpop.f32.mrf.mxu0
      %v3048 = vadd.f32 %v2995, %v3047
      %v3049 = vpop.f32.mrf.mxu0
      %v3050 = vadd.f32 %v2997, %v3049
      %3051 = vmatmul.bf16.gmra.mxu0 %v2909
      %v3052 = vpop.f32.mrf.mxu0
      %v3053 = vadd.f32 %v3000, %v3052
      %v3054 = vpop.f32.mrf.mxu0
      %v3055 = vadd.f32 %v3002, %v3054
      %3056 = vmatmul.bf16.gmra.mxu0 %v2912
      %v3057 = vpop.f32.mrf.mxu0
      %v3058 = vadd.f32 %v3005, %v3057
      %v3059 = vpop.f32.mrf.mxu0
      %v3060 = vadd.f32 %v3007, %v3059
      %3061 = vmatmul.bf16.gmra.mxu0 %v2915
      %v3062 = vpop.f32.mrf.mxu0
      %v3063 = vadd.f32 %v3010, %v3062
      %v3064 = vpop.f32.mrf.mxu0
      %v3065 = vadd.f32 %v3012, %v3064
      %3066 = vmatmul.bf16.gmra.mxu0 %v2918
      %v3067 = vpop.f32.mrf.mxu0
      %v3068 = vadd.f32 %v3015, %v3067
      %v3069 = vpop.f32.mrf.mxu0
      %v3070 = vadd.f32 %v3017, %v3069
      %3071 = vmatmul.bf16.gmra.mxu0 %v2921
      %v3072 = vpop.f32.mrf.mxu0
      %v3073 = vadd.f32 %v3020, %v3072
      %v3074 = vpop.f32.mrf.mxu0
      %v3075 = vadd.f32 %v3022, %v3074
      %3076 = vmatmul.bf16.gmra.mxu0 %v2924
      %v3077 = vpop.f32.mrf.mxu0
      %v3078 = vadd.f32 %v3025, %v3077
      %v3079 = vpop.f32.mrf.mxu0
      %v3080 = vadd.f32 %v3027, %v3079
      %3081 = vmatmul.bf16.gmra.mxu0 %v2927
      %v3082 = vpop.f32.mrf.mxu0
      %v3083 = vadd.f32 %v3030, %v3082
      %v3084 = vpop.f32.mrf.mxu0
      %v3085 = vadd.f32 %v3032, %v3084
      %3086 = vmatmul.bf16.gmra.mxu0 %v2930
      %v3087 = vpop.f32.mrf.mxu0
      %v3088 = vadd.f32 %v3035, %v3087
      %v3089 = vpop.f32.mrf.mxu0
      %3090 = vdwg.mxu0
      %v3095 = vunpack.c.l.b16 %v2477
      %v3096 = vunpack.c.h.b16 %v2477
      %v3097 = vunpack.c.l.b16 %v2478
      %v3098 = vunpack.c.l.b16 %v2479
      %v3099 = vunpack.c.h.b16 %v2479
      %v3100 = vunpack.c.l.b16 %v2480
      %v3101 = vpack.c.b16 %v3098, %v3095
      %v3102 = vpack.c.b16 %v3099, %v3096
      %v3103 = vpack.c.b16 %v3100, %v3097
      %v3104 = vpack.c.b16 %v2640, %v2637
      %v3105 = vpack.c.b16 %v2641, %v2638
      %v3106 = vpack.c.b16 %v2642, %v2639
      %v3107 = vpack.c.b16 %v2646, %v2643
      %v3108 = vpack.c.b16 %v2647, %v2644
      %v3109 = vpack.c.b16 %v2648, %v2645
      %v3110 = vpack.c.b16 %v2652, %v2649
      %v3111 = vpack.c.b16 %v2653, %v2650
      %v3112 = vpack.c.b16 %v2654, %v2651
      %v3113 = vpack.c.b16 %v2658, %v2655
      %v3114 = vpack.c.b16 %v2659, %v2656
      %v3115 = vpack.c.b16 %v2660, %v2657
      %v3116 = vpack.c.b16 %v2664, %v2661
      %v3117 = vpack.c.b16 %v2665, %v2662
      %v3118 = vpack.c.b16 %v2666, %v2663
      %v3119 = vpack.c.b16 %v2670, %v2667
      %v3120 = vpack.c.b16 %v2671, %v2668
      %v3121 = vpack.c.b16 %v2672, %v2669
      %v3122 = vpack.c.b16 %v2676, %v2673
      %v3123 = vpack.c.b16 %v2677, %v2674
      %v3124 = vpack.c.b16 %v2678, %v2675
      %v3125 = vpack.c.b16 %v2679, %v2679
      %v3126 = vpack.c.b16 %v2680, %v2680
      %v3127 = vpack.c.b16 %v2681, %v2681
      %v3186 = vunpack.c.l.b16 %v2511
      %v3187 = vunpack.c.l.b16 %v2512
      %v3188 = vunpack.c.l.b16 %v2513
      %v3189 = vunpack.c.l.b16 %v2514
      %v3190 = vunpack.c.l.b16 %v2515
      %v3191 = vunpack.c.l.b16 %v2516
      %v3192 = vunpack.c.l.b16 %v2517
      %v3193 = vunpack.c.l.b16 %v2518
      %v3194 = vunpack.c.l.b16 %v2519
      %v3195 = vunpack.c.l.b16 %v2520
      %v3196 = vunpack.c.l.b16 %v2521
      %v3197 = vunpack.c.l.b16 %v2522
      %v3198 = vunpack.c.l.b16 %v2523
      %v3199 = vunpack.c.l.b16 %v2524
      %v3200 = vunpack.c.l.b16 %v2525
      %v3201 = vunpack.c.l.b16 %v2526
      %v3202 = vunpack.c.l.b16 %v2527
      %v3203 = vunpack.c.l.b16 %v2528
      %v3204 = vunpack.c.l.b16 %v2529
      %v3205 = vunpack.c.l.b16 %v2530
      %v3206 = vunpack.c.l.b16 %v2531
      %v3207 = vunpack.c.l.b16 %v2532
      %v3208 = vunpack.c.l.b16 %v2533
      %v3209 = vunpack.c.l.b16 %v2534
      %v3210 = vunpack.c.l.b16 %v2535
      %v3211 = vunpack.c.l.b16 %v2536
      %v3212 = vunpack.c.l.b16 %v2537
      %v3213 = vunpack.c.l.b16 %v2538
      %v3214 = vunpack.c.l.b16 %v2539
      %v3215 = vunpack.c.l.b16 %v2540
      %v3216 = vunpack.c.l.b16 %v2541
      %v3217 = vunpack.c.l.b16 %v2542
      %v3218 = vunpack.c.l.b16 %v2543
      %v3219 = vunpack.c.l.b16 %v2544
      %v3220 = vunpack.c.l.b16 %v2545
      %v3221 = vunpack.c.l.b16 %v2546
      %v3222 = vunpack.c.l.b16 %v2547
      %v3223 = vunpack.c.l.b16 %v2548
      %v3224 = vunpack.c.l.b16 %v2549
      %v3225 = vunpack.c.l.b16 %v2550
      %v3226 = vpack.c.b16 %v3187, %v3186
      %v3227 = vpack.c.b16 %v3189, %v3188
      %v3228 = vpack.c.b16 %v3191, %v3190
      %v3229 = vpack.c.b16 %v3193, %v3192
      %v3230 = vpack.c.b16 %v3195, %v3194
      %v3231 = vpack.c.b16 %v3197, %v3196
      %v3232 = vpack.c.b16 %v3199, %v3198
      %v3233 = vpack.c.b16 %v3201, %v3200
      %v3234 = vpack.c.b16 %v3203, %v3202
      %v3235 = vpack.c.b16 %v3205, %v3204
      %v3236 = vpack.c.b16 %v3207, %v3206
      %v3237 = vpack.c.b16 %v3209, %v3208
      %v3238 = vpack.c.b16 %v3211, %v3210
      %v3239 = vpack.c.b16 %v3213, %v3212
      %v3240 = vpack.c.b16 %v3215, %v3214
      %v3241 = vpack.c.b16 %v3217, %v3216
      %v3242 = vpack.c.b16 %v3219, %v3218
      %v3243 = vpack.c.b16 %v3221, %v3220
      %v3244 = vpack.c.b16 %v3223, %v3222
      %v3245 = vpack.c.b16 %v3225, %v3224
      %v3267 = vsel %vm958, %v3103, 0
      %v3270 = vsel %vm958, %v3106, 0
      %v3273 = vsel %vm958, %v3109, 0
      %v3276 = vsel %vm958, %v3112, 0
      %v3279 = vsel %vm958, %v3115, 0
      %v3282 = vsel %vm958, %v3118, 0
      %v3285 = vsel %vm958, %v3121, 0
      %v3288 = vsel %vm958, %v3124, 0
      %v3291 = vsel %vm958, %v3127, 0
      %3293 = vmatpush.bf16.msra.mxu0 %v3233
      %3294 = vmatpush.bf16.msra.mxu0 %v3232
      %3295 = vmatpush.bf16.msra.mxu0 %v3231
      %3296 = vmatpush.bf16.msra.mxu0 %v3230
      %3297 = vmatpush.bf16.msra.mxu0 %v3229
      %3298 = vmatpush.bf16.msra.mxu0 %v3228
      %3299 = vmatpush.bf16.msra.mxu0 %v3227
      %3300 = vmatpush.bf16.msra.mxu0 %v3226
      %3301 = vmatmul.bf16.gmra.mxu0 %v3101
      %v3302 = vpop.f32.mrf.mxu0
      %v3303 = vadd.f32 %v3048, %v3302
      %v3304 = vpop.f32.mrf.mxu0
      %v3305 = vadd.f32 %v3050, %v3304
      %3306 = vmatmul.bf16.gmra.mxu0 %v3104
      %v3307 = vpop.f32.mrf.mxu0
      %v3308 = vadd.f32 %v3053, %v3307
      %v3309 = vpop.f32.mrf.mxu0
      %v3310 = vadd.f32 %v3055, %v3309
      %3311 = vmatmul.bf16.gmra.mxu0 %v3107
      %v3312 = vpop.f32.mrf.mxu0
      %v3313 = vadd.f32 %v3058, %v3312
      %v3314 = vpop.f32.mrf.mxu0
      %v3315 = vadd.f32 %v3060, %v3314
      %3316 = vmatmul.bf16.gmra.mxu0 %v3110
      %v3317 = vpop.f32.mrf.mxu0
      %v3318 = vadd.f32 %v3063, %v3317
      %v3319 = vpop.f32.mrf.mxu0
      %v3320 = vadd.f32 %v3065, %v3319
      %3321 = vmatmul.bf16.gmra.mxu0 %v3113
      %v3322 = vpop.f32.mrf.mxu0
      %v3323 = vadd.f32 %v3068, %v3322
      %v3324 = vpop.f32.mrf.mxu0
      %v3325 = vadd.f32 %v3070, %v3324
      %3326 = vmatmul.bf16.gmra.mxu0 %v3116
      %v3327 = vpop.f32.mrf.mxu0
      %v3328 = vadd.f32 %v3073, %v3327
      %v3329 = vpop.f32.mrf.mxu0
      %v3330 = vadd.f32 %v3075, %v3329
      %3331 = vmatmul.bf16.gmra.mxu0 %v3119
      %v3332 = vpop.f32.mrf.mxu0
      %v3333 = vadd.f32 %v3078, %v3332
      %v3334 = vpop.f32.mrf.mxu0
      %v3335 = vadd.f32 %v3080, %v3334
      %3336 = vmatmul.bf16.gmra.mxu0 %v3122
      %v3337 = vpop.f32.mrf.mxu0
      %v3338 = vadd.f32 %v3083, %v3337
      %v3339 = vpop.f32.mrf.mxu0
      %v3340 = vadd.f32 %v3085, %v3339
      %3341 = vmatmul.bf16.gmra.mxu0 %v3125
      %v3342 = vpop.f32.mrf.mxu0
      %v3343 = vadd.f32 %v3088, %v3342
      %v3344 = vpop.f32.mrf.mxu0
      %3345 = vdwg.mxu0
      %3346 = vmatpush.bf16.msra.mxu0 %v3241
      %3347 = vmatpush.bf16.msra.mxu0 %v3240
      %3348 = vmatpush.bf16.msra.mxu0 %v3239
      %3349 = vmatpush.bf16.msra.mxu0 %v3238
      %3350 = vmatpush.bf16.msra.mxu0 %v3237
      %3351 = vmatpush.bf16.msra.mxu0 %v3236
      %3352 = vmatpush.bf16.msra.mxu0 %v3235
      %3353 = vmatpush.bf16.msra.mxu0 %v3234
      %3354 = vmatmul.bf16.gmra.mxu0 %v3102
      %v3355 = vpop.f32.mrf.mxu0
      %v3356 = vadd.f32 %v3303, %v3355
      %v3357 = vpop.f32.mrf.mxu0
      %v3358 = vadd.f32 %v3305, %v3357
      %3359 = vmatmul.bf16.gmra.mxu0 %v3105
      %v3360 = vpop.f32.mrf.mxu0
      %v3361 = vadd.f32 %v3308, %v3360
      %v3362 = vpop.f32.mrf.mxu0
      %v3363 = vadd.f32 %v3310, %v3362
      %3364 = vmatmul.bf16.gmra.mxu0 %v3108
      %v3365 = vpop.f32.mrf.mxu0
      %v3366 = vadd.f32 %v3313, %v3365
      %v3367 = vpop.f32.mrf.mxu0
      %v3368 = vadd.f32 %v3315, %v3367
      %3369 = vmatmul.bf16.gmra.mxu0 %v3111
      %v3370 = vpop.f32.mrf.mxu0
      %v3371 = vadd.f32 %v3318, %v3370
      %v3372 = vpop.f32.mrf.mxu0
      %v3373 = vadd.f32 %v3320, %v3372
      %3374 = vmatmul.bf16.gmra.mxu0 %v3114
      %v3375 = vpop.f32.mrf.mxu0
      %v3376 = vadd.f32 %v3323, %v3375
      %v3377 = vpop.f32.mrf.mxu0
      %v3378 = vadd.f32 %v3325, %v3377
      %3379 = vmatmul.bf16.gmra.mxu0 %v3117
      %v3380 = vpop.f32.mrf.mxu0
      %v3381 = vadd.f32 %v3328, %v3380
      %v3382 = vpop.f32.mrf.mxu0
      %v3383 = vadd.f32 %v3330, %v3382
      %3384 = vmatmul.bf16.gmra.mxu0 %v3120
      %v3385 = vpop.f32.mrf.mxu0
      %v3386 = vadd.f32 %v3333, %v3385
      %v3387 = vpop.f32.mrf.mxu0
      %v3388 = vadd.f32 %v3335, %v3387
      %3389 = vmatmul.bf16.gmra.mxu0 %v3123
      %v3390 = vpop.f32.mrf.mxu0
      %v3391 = vadd.f32 %v3338, %v3390
      %v3392 = vpop.f32.mrf.mxu0
      %v3393 = vadd.f32 %v3340, %v3392
      %3394 = vmatmul.bf16.gmra.mxu0 %v3126
      %v3395 = vpop.f32.mrf.mxu0
      %v3396 = vadd.f32 %v3343, %v3395
      %v3397 = vpop.f32.mrf.mxu0
      %3398 = vdwg.mxu0
      %3399 = vmatpush.bf16.msra.mxu0 0
      %3400 = vmatpush.bf16.msra.mxu0 0
      %3401 = vmatpush.bf16.msra.mxu0 0
      %3402 = vmatpush.bf16.msra.mxu0 0
      %3403 = vmatpush.bf16.msra.mxu0 %v3245
      %3404 = vmatpush.bf16.msra.mxu0 %v3244
      %3405 = vmatpush.bf16.msra.mxu0 %v3243
      %3406 = vmatpush.bf16.msra.mxu0 %v3242
      %3407 = vmatmul.bf16.gmra.mxu0 %v3267
      %v3408 = vpop.f32.mrf.mxu0
      %v3409 = vadd.f32 %v3356, %v3408
      %v3410 = vpop.f32.mrf.mxu0
      %v3411 = vadd.f32 %v3358, %v3410
      %3412 = vmatmul.bf16.gmra.mxu0 %v3270
      %v3413 = vpop.f32.mrf.mxu0
      %v3414 = vadd.f32 %v3361, %v3413
      %v3415 = vpop.f32.mrf.mxu0
      %v3416 = vadd.f32 %v3363, %v3415
      %3417 = vmatmul.bf16.gmra.mxu0 %v3273
      %v3418 = vpop.f32.mrf.mxu0
      %v3419 = vadd.f32 %v3366, %v3418
      %v3420 = vpop.f32.mrf.mxu0
      %v3421 = vadd.f32 %v3368, %v3420
      %3422 = vmatmul.bf16.gmra.mxu0 %v3276
      %v3423 = vpop.f32.mrf.mxu0
      %v3424 = vadd.f32 %v3371, %v3423
      %v3425 = vpop.f32.mrf.mxu0
      %v3426 = vadd.f32 %v3373, %v3425
      %3427 = vmatmul.bf16.gmra.mxu0 %v3279
      %v3428 = vpop.f32.mrf.mxu0
      %v3429 = vadd.f32 %v3376, %v3428
      %v3430 = vpop.f32.mrf.mxu0
      %v3431 = vadd.f32 %v3378, %v3430
      %3432 = vmatmul.bf16.gmra.mxu0 %v3282
      %v3433 = vpop.f32.mrf.mxu0
      %v3434 = vadd.f32 %v3381, %v3433
      %v3435 = vpop.f32.mrf.mxu0
      %v3436 = vadd.f32 %v3383, %v3435
      %3437 = vmatmul.bf16.gmra.mxu0 %v3285
      %v3438 = vpop.f32.mrf.mxu0
      %v3439 = vadd.f32 %v3386, %v3438
      %v3440 = vpop.f32.mrf.mxu0
      %v3441 = vadd.f32 %v3388, %v3440
      %3442 = vmatmul.bf16.gmra.mxu0 %v3288
      %v3443 = vpop.f32.mrf.mxu0
      %v3444 = vadd.f32 %v3391, %v3443
      %v3445 = vpop.f32.mrf.mxu0
      %v3446 = vadd.f32 %v3393, %v3445
      %3447 = vmatmul.bf16.gmra.mxu0 %v3291
      %v3448 = vpop.f32.mrf.mxu0
      %v3449 = vadd.f32 %v3396, %v3448
      %v3450 = vpop.f32.mrf.mxu0
      %3451 = vdwg.mxu0
      %v3452 = vld [vmem:[#allocation4 + $0x24] sm:$0xcc]
      %v3453 = vld [vmem:[#allocation4 + $0x2c] sm:$0xc]
      %v3454 = vld [vmem:[#allocation4 + $0x30] sm:$0xff]
      %v3455 = vld [vmem:[#allocation4 + $0x38] sm:$0xf]
      %v3456 = vld [vmem:[#allocation4 + $0x3c] sm:$0xff]
      %v3457 = vld [vmem:[#allocation4 + $0x44] sm:$0xf]
      %v3458 = vld [vmem:[#allocation4 + $0x48] sm:$0xff]
      %v3459 = vld [vmem:[#allocation4 + $0x50] sm:$0xf]
      %v3460 = vld [vmem:[#allocation4 + $0x54] sm:$0xff]
      %v3461 = vld [vmem:[#allocation4 + $0x5c] sm:$0xf]
      %v3462 = vld [vmem:[#allocation4 + $0x60] sm:$0xff]
      %v3463 = vld [vmem:[#allocation4 + $0x68] sm:$0xf]
      %v3464 = vld [vmem:[#allocation4 + $0x6c] sm:$0xff]
      %v3465 = vld [vmem:[#allocation4 + $0x74] sm:$0xf]
      %v3466 = vld [vmem:[#allocation4 + $0x78] sm:$0xff]
      %v3467 = vld [vmem:[#allocation4 + $0x80] sm:$0xf]
      %v3468 = vld [vmem:[#allocation4 + $0x84] sm:$0xff]
      %v3469 = vld [vmem:[#allocation4 + $0x8c] sm:$0xf]
      %v3470 = vld [vmem:[#allocation4 + $0x90] sm:$0xff]
      %v3471 = vld [vmem:[#allocation4 + $0x98] sm:$0xf]
      %v3472 = vld [vmem:[#allocation4 + $0x9c] sm:$0xff]
      %v3473 = vld [vmem:[#allocation4 + $0xa4] sm:$0xf]
      %v3474 = vld [vmem:[#allocation4 + $0xa8] sm:$0xff]
      %v3475 = vld [vmem:[#allocation4 + $0xb0] sm:$0xf]
      %v3476 = vld [vmem:[#allocation4 + $0xb4] sm:$0xff]
      %v3477 = vld [vmem:[#allocation4 + $0xbc] sm:$0xf]
      %v3478 = vld [vmem:[#allocation4 + $0xc0] sm:$0xff]
      %v3479 = vld [vmem:[#allocation4 + $0xc8] sm:$0xf]
      %v3480 = vld [vmem:[#allocation4 + $0xcc] sm:$0xff]
      %v3481 = vld [vmem:[#allocation4 + $0xd4] sm:$0xf]
      %v3482 = vld [vmem:[#allocation4 + $0xd8] sm:$0xff]
      %v3483 = vld [vmem:[#allocation4 + $0xe0] sm:$0xf]
      %v3484 = vld [vmem:[#allocation4 + $0xe4] sm:$0xff]
      %v3485 = vld [vmem:[#allocation4 + $0xec] sm:$0xf]
      %v3486 = vld [vmem:[#allocation4 + $0xf0] sm:$0x33]
      %v3487 = vld [vmem:[#allocation4 + $0xf8] sm:$0x3]
      %s3488 = scalar_lea.vmem %s3, 320
      %v3489 = vld [vmem:[%s3488] sm:$0xf]
      %v3490 = vld [vmem:[%s3488 + $0x4] sm:$0xf]
      %v3491 = vld [vmem:[%s3488 + $0x8] sm:$0xf]
      %v3492 = vld [vmem:[%s3488 + $0xc] sm:$0xf]
      %v3493 = vld [vmem:[%s3488 + $0x10] sm:$0xf]
      %v3494 = vld [vmem:[%s3488 + $0x14] sm:$0xf]
      %v3495 = vld [vmem:[%s3488 + $0x18] sm:$0xf]
      %v3496 = vld [vmem:[%s3488 + $0x1c] sm:$0xf]
      %v3497 = vld [vmem:[%s3488 + $0x20] sm:$0xf]
      %v3498 = vld [vmem:[%s3488 + $0x24] sm:$0xf]
      %v3499 = vld [vmem:[%s3488 + $0x28] sm:$0xf]
      %v3500 = vld [vmem:[%s3488 + $0x2c] sm:$0xf]
      %v3501 = vld [vmem:[%s3488 + $0x30] sm:$0xf]
      %v3502 = vld [vmem:[%s3488 + $0x34] sm:$0xf]
      %v3503 = vld [vmem:[%s3488 + $0x38] sm:$0xf]
      %v3504 = vld [vmem:[%s3488 + $0x3c] sm:$0xf]
      %v3505 = vld [vmem:[%s3488 + $0x40] sm:$0xf]
      %v3506 = vld [vmem:[%s3488 + $0x44] sm:$0xf]
      %v3507 = vld [vmem:[%s3488 + $0x48] sm:$0xf]
      %v3508 = vld [vmem:[%s3488 + $0x4c] sm:$0xf]
      %v3509 = vld [vmem:[%s3488 + $0x50] sm:$0xf]
      %v3510 = vld [vmem:[%s3488 + $0x54] sm:$0xf]
      %v3511 = vld [vmem:[%s3488 + $0x58] sm:$0xf]
      %v3512 = vld [vmem:[%s3488 + $0x5c] sm:$0xf]
      %v3513 = vld [vmem:[%s3488 + $0x60] sm:$0xf]
      %v3514 = vld [vmem:[%s3488 + $0x64] sm:$0xf]
      %v3515 = vld [vmem:[%s3488 + $0x68] sm:$0xf]
      %v3516 = vld [vmem:[%s3488 + $0x6c] sm:$0xf]
      %v3517 = vld [vmem:[%s3488 + $0x70] sm:$0xf]
      %v3518 = vld [vmem:[%s3488 + $0x74] sm:$0xf]
      %v3519 = vld [vmem:[%s3488 + $0x78] sm:$0xf]
      %v3520 = vld [vmem:[%s3488 + $0x7c] sm:$0xf]
      %v3521 = vld [vmem:[%s3488 + $0x80] sm:$0xf]
      %v3522 = vld [vmem:[%s3488 + $0x84] sm:$0xf]
      %v3523 = vld [vmem:[%s3488 + $0x88] sm:$0xf]
      %v3524 = vld [vmem:[%s3488 + $0x8c] sm:$0xf]
      %v3525 = vld [vmem:[%s3488 + $0x90] sm:$0xf]
      %v3526 = vld [vmem:[%s3488 + $0x94] sm:$0xf]
      %v3527 = vld [vmem:[%s3488 + $0x98] sm:$0xf]
      %v3528 = vld [vmem:[%s3488 + $0x9c] sm:$0xf]
      %v3565 = vunpack.c.l.b16 %v3452
      %v3566 = vunpack.c.h.b16 %v3452
      %v3567 = vunpack.c.l.b16 %v3453
      %v3568 = vunpack.c.l.b16 %v3454
      %v3569 = vunpack.c.h.b16 %v3454
      %v3570 = vunpack.c.l.b16 %v3455
      %v3571 = vunpack.c.l.b16 %v3456
      %v3572 = vunpack.c.h.b16 %v3456
      %v3573 = vunpack.c.l.b16 %v3457
      %v3574 = vunpack.c.l.b16 %v3458
      %v3575 = vunpack.c.h.b16 %v3458
      %v3576 = vunpack.c.l.b16 %v3459
      %v3577 = vunpack.c.l.b16 %v3460
      %v3578 = vunpack.c.h.b16 %v3460
      %v3579 = vunpack.c.l.b16 %v3461
      %v3580 = vunpack.c.l.b16 %v3462
      %v3581 = vunpack.c.h.b16 %v3462
      %v3582 = vunpack.c.l.b16 %v3463
      %v3583 = vunpack.c.l.b16 %v3464
      %v3584 = vunpack.c.h.b16 %v3464
      %v3585 = vunpack.c.l.b16 %v3465
      %v3586 = vunpack.c.l.b16 %v3466
      %v3587 = vunpack.c.h.b16 %v3466
      %v3588 = vunpack.c.l.b16 %v3467
      %v3589 = vunpack.c.l.b16 %v3468
      %v3590 = vunpack.c.h.b16 %v3468
      %v3591 = vunpack.c.l.b16 %v3469
      %v3592 = vunpack.c.l.b16 %v3470
      %v3593 = vunpack.c.h.b16 %v3470
      %v3594 = vunpack.c.l.b16 %v3471
      %v3595 = vunpack.c.l.b16 %v3472
      %v3596 = vunpack.c.h.b16 %v3472
      %v3597 = vunpack.c.l.b16 %v3473
      %v3598 = vunpack.c.l.b16 %v3474
      %v3599 = vunpack.c.h.b16 %v3474
      %v3600 = vunpack.c.l.b16 %v3475
      %v3601 = vunpack.c.l.b16 %v3476
      %v3602 = vunpack.c.h.b16 %v3476
      %v3603 = vunpack.c.l.b16 %v3477
      %v3604 = vunpack.c.l.b16 %v3478
      %v3605 = vunpack.c.h.b16 %v3478
      %v3606 = vunpack.c.l.b16 %v3479
      %v3607 = vunpack.c.l.b16 %v3480
      %v3608 = vunpack.c.h.b16 %v3480
      %v3609 = vunpack.c.l.b16 %v3481
      %v3610 = vunpack.c.l.b16 %v3482
      %v3611 = vunpack.c.h.b16 %v3482
      %v3612 = vunpack.c.l.b16 %v3483
      %v3613 = vunpack.c.l.b16 %v3484
      %v3614 = vunpack.c.h.b16 %v3484
      %v3615 = vunpack.c.l.b16 %v3485
      %v3616 = vunpack.c.l.b16 %v3486
      %v3617 = vunpack.c.h.b16 %v3486
      %v3618 = vunpack.c.l.b16 %v3487
      %v3619 = vpack.c.b16 %v3568, %v3565
      %v3620 = vpack.c.b16 %v3569, %v3566
      %v3621 = vpack.c.b16 %v3570, %v3567
      %v3622 = vpack.c.b16 %v3574, %v3571
      %v3623 = vpack.c.b16 %v3575, %v3572
      %v3624 = vpack.c.b16 %v3576, %v3573
      %v3625 = vpack.c.b16 %v3580, %v3577
      %v3626 = vpack.c.b16 %v3581, %v3578
      %v3627 = vpack.c.b16 %v3582, %v3579
      %v3628 = vpack.c.b16 %v3586, %v3583
      %v3629 = vpack.c.b16 %v3587, %v3584
      %v3630 = vpack.c.b16 %v3588, %v3585
      %v3631 = vpack.c.b16 %v3592, %v3589
      %v3632 = vpack.c.b16 %v3593, %v3590
      %v3633 = vpack.c.b16 %v3594, %v3591
      %v3634 = vpack.c.b16 %v3598, %v3595
      %v3635 = vpack.c.b16 %v3599, %v3596
      %v3636 = vpack.c.b16 %v3600, %v3597
      %v3637 = vpack.c.b16 %v3604, %v3601
      %v3638 = vpack.c.b16 %v3605, %v3602
      %v3639 = vpack.c.b16 %v3606, %v3603
      %v3640 = vpack.c.b16 %v3610, %v3607
      %v3641 = vpack.c.b16 %v3611, %v3608
      %v3642 = vpack.c.b16 %v3612, %v3609
      %v3643 = vpack.c.b16 %v3616, %v3613
      %v3644 = vpack.c.b16 %v3617, %v3614
      %v3645 = vpack.c.b16 %v3618, %v3615
      %vm3646 = vcmask 1045504
      %v3647 = vrot.slane %v3619, 2
      %v3648 = vrot.slane %v3622, 2
      %v3649 = vsel %vm3646, %v3647, %v3648
      %v3650 = vrot.slane %v3620, 2
      %v3651 = vrot.slane %v3623, 2
      %v3652 = vsel %vm3646, %v3650, %v3651
      %v3653 = vrot.slane %v3621, 2
      %v3654 = vrot.slane %v3624, 2
      %v3655 = vsel %vm3646, %v3653, %v3654
      %v3656 = vrot.slane %v3625, 2
      %v3657 = vsel %vm3646, %v3648, %v3656
      %v3658 = vrot.slane %v3626, 2
      %v3659 = vsel %vm3646, %v3651, %v3658
      %v3660 = vrot.slane %v3627, 2
      %v3661 = vsel %vm3646, %v3654, %v3660
      %v3662 = vrot.slane %v3628, 2
      %v3663 = vsel %vm3646, %v3656, %v3662
      %v3664 = vrot.slane %v3629, 2
      %v3665 = vsel %vm3646, %v3658, %v3664
      %v3666 = vrot.slane %v3630, 2
      %v3667 = vsel %vm3646, %v3660, %v3666
      %v3668 = vrot.slane %v3631, 2
      %v3669 = vsel %vm3646, %v3662, %v3668
      %v3670 = vrot.slane %v3632, 2
      %v3671 = vsel %vm3646, %v3664, %v3670
      %v3672 = vrot.slane %v3633, 2
      %v3673 = vsel %vm3646, %v3666, %v3672
      %v3674 = vrot.slane %v3634, 2
      %v3675 = vsel %vm3646, %v3668, %v3674
      %v3676 = vrot.slane %v3635, 2
      %v3677 = vsel %vm3646, %v3670, %v3676
      %v3678 = vrot.slane %v3636, 2
      %v3679 = vsel %vm3646, %v3672, %v3678
      %v3680 = vrot.slane %v3637, 2
      %v3681 = vsel %vm3646, %v3674, %v3680
      %v3682 = vrot.slane %v3638, 2
      %v3683 = vsel %vm3646, %v3676, %v3682
      %v3684 = vrot.slane %v3639, 2
      %v3685 = vsel %vm3646, %v3678, %v3684
      %v3686 = vrot.slane %v3640, 2
      %v3687 = vsel %vm3646, %v3680, %v3686
      %v3688 = vrot.slane %v3641, 2
      %v3689 = vsel %vm3646, %v3682, %v3688
      %v3690 = vrot.slane %v3642, 2
      %v3691 = vsel %vm3646, %v3684, %v3690
      %v3692 = vrot.slane %v3643, 2
      %v3693 = vsel %vm3646, %v3686, %v3692
      %v3694 = vrot.slane %v3644, 2
      %v3695 = vsel %vm3646, %v3688, %v3694
      %v3696 = vrot.slane %v3645, 2
      %v3697 = vsel %vm3646, %v3690, %v3696
      %v3756 = vunpack.c.l.b16 %v3489
      %v3757 = vunpack.c.l.b16 %v3490
      %v3758 = vunpack.c.l.b16 %v3491
      %v3759 = vunpack.c.l.b16 %v3492
      %v3760 = vunpack.c.l.b16 %v3493
      %v3761 = vunpack.c.l.b16 %v3494
      %v3762 = vunpack.c.l.b16 %v3495
      %v3763 = vunpack.c.l.b16 %v3496
      %v3764 = vunpack.c.l.b16 %v3497
      %v3765 = vunpack.c.l.b16 %v3498
      %v3766 = vunpack.c.l.b16 %v3499
      %v3767 = vunpack.c.l.b16 %v3500
      %v3768 = vunpack.c.l.b16 %v3501
      %v3769 = vunpack.c.l.b16 %v3502
      %v3770 = vunpack.c.l.b16 %v3503
      %v3771 = vunpack.c.l.b16 %v3504
      %v3772 = vunpack.c.l.b16 %v3505
      %v3773 = vunpack.c.l.b16 %v3506
      %v3774 = vunpack.c.l.b16 %v3507
      %v3775 = vunpack.c.l.b16 %v3508
      %v3776 = vunpack.c.l.b16 %v3509
      %v3777 = vunpack.c.l.b16 %v3510
      %v3778 = vunpack.c.l.b16 %v3511
      %v3779 = vunpack.c.l.b16 %v3512
      %v3780 = vunpack.c.l.b16 %v3513
      %v3781 = vunpack.c.l.b16 %v3514
      %v3782 = vunpack.c.l.b16 %v3515
      %v3783 = vunpack.c.l.b16 %v3516
      %v3784 = vunpack.c.l.b16 %v3517
      %v3785 = vunpack.c.l.b16 %v3518
      %v3786 = vunpack.c.l.b16 %v3519
      %v3787 = vunpack.c.l.b16 %v3520
      %v3788 = vunpack.c.l.b16 %v3521
      %v3789 = vunpack.c.l.b16 %v3522
      %v3790 = vunpack.c.l.b16 %v3523
      %v3791 = vunpack.c.l.b16 %v3524
      %v3792 = vunpack.c.l.b16 %v3525
      %v3793 = vunpack.c.l.b16 %v3526
      %v3794 = vunpack.c.l.b16 %v3527
      %v3795 = vunpack.c.l.b16 %v3528
      %v3796 = vpack.c.b16 %v3757, %v3756
      %v3797 = vpack.c.b16 %v3759, %v3758
      %v3798 = vpack.c.b16 %v3761, %v3760
      %v3799 = vpack.c.b16 %v3763, %v3762
      %v3800 = vpack.c.b16 %v3765, %v3764
      %v3801 = vpack.c.b16 %v3767, %v3766
      %v3802 = vpack.c.b16 %v3769, %v3768
      %v3803 = vpack.c.b16 %v3771, %v3770
      %v3804 = vpack.c.b16 %v3773, %v3772
      %v3805 = vpack.c.b16 %v3775, %v3774
      %v3806 = vpack.c.b16 %v3777, %v3776
      %v3807 = vpack.c.b16 %v3779, %v3778
      %v3808 = vpack.c.b16 %v3781, %v3780
      %v3809 = vpack.c.b16 %v3783, %v3782
      %v3810 = vpack.c.b16 %v3785, %v3784
      %v3811 = vpack.c.b16 %v3787, %v3786
      %v3812 = vpack.c.b16 %v3789, %v3788
      %v3813 = vpack.c.b16 %v3791, %v3790
      %v3814 = vpack.c.b16 %v3793, %v3792
      %v3815 = vpack.c.b16 %v3795, %v3794
      %v3837 = vsel %vm958, %v3655, 0
      %v3840 = vsel %vm958, %v3661, 0
      %v3843 = vsel %vm958, %v3667, 0
      %v3846 = vsel %vm958, %v3673, 0
      %v3849 = vsel %vm958, %v3679, 0
      %v3852 = vsel %vm958, %v3685, 0
      %v3855 = vsel %vm958, %v3691, 0
      %v3858 = vsel %vm958, %v3697, 0
      %v3861 = vsel %vm958, %v3696, 0
      %3863 = vmatpush.bf16.msra.mxu0 %v3803
      %3864 = vmatpush.bf16.msra.mxu0 %v3802
      %3865 = vmatpush.bf16.msra.mxu0 %v3801
      %3866 = vmatpush.bf16.msra.mxu0 %v3800
      %3867 = vmatpush.bf16.msra.mxu0 %v3799
      %3868 = vmatpush.bf16.msra.mxu0 %v3798
      %3869 = vmatpush.bf16.msra.mxu0 %v3797
      %3870 = vmatpush.bf16.msra.mxu0 %v3796
      %3871 = vmatmul.bf16.gmra.mxu0 %v3649
      %v3872 = vpop.f32.mrf.mxu0
      %v3873 = vadd.f32 0.0, %v3872
      %v3874 = vpop.f32.mrf.mxu0
      %v3875 = vadd.f32 0.0, %v3874
      %3876 = vmatmul.bf16.gmra.mxu0 %v3657
      %v3877 = vpop.f32.mrf.mxu0
      %v3878 = vadd.f32 0.0, %v3877
      %v3879 = vpop.f32.mrf.mxu0
      %v3880 = vadd.f32 0.0, %v3879
      %3881 = vmatmul.bf16.gmra.mxu0 %v3663
      %v3882 = vpop.f32.mrf.mxu0
      %v3883 = vadd.f32 0.0, %v3882
      %v3884 = vpop.f32.mrf.mxu0
      %v3885 = vadd.f32 0.0, %v3884
      %3886 = vmatmul.bf16.gmra.mxu0 %v3669
      %v3887 = vpop.f32.mrf.mxu0
      %v3888 = vadd.f32 0.0, %v3887
      %v3889 = vpop.f32.mrf.mxu0
      %v3890 = vadd.f32 0.0, %v3889
      %3891 = vmatmul.bf16.gmra.mxu0 %v3675
      %v3892 = vpop.f32.mrf.mxu0
      %v3893 = vadd.f32 0.0, %v3892
      %v3894 = vpop.f32.mrf.mxu0
      %v3895 = vadd.f32 0.0, %v3894
      %3896 = vmatmul.bf16.gmra.mxu0 %v3681
      %v3897 = vpop.f32.mrf.mxu0
      %v3898 = vadd.f32 0.0, %v3897
      %v3899 = vpop.f32.mrf.mxu0
      %v3900 = vadd.f32 0.0, %v3899
      %3901 = vmatmul.bf16.gmra.mxu0 %v3687
      %v3902 = vpop.f32.mrf.mxu0
      %v3903 = vadd.f32 0.0, %v3902
      %v3904 = vpop.f32.mrf.mxu0
      %v3905 = vadd.f32 0.0, %v3904
      %3906 = vmatmul.bf16.gmra.mxu0 %v3693
      %v3907 = vpop.f32.mrf.mxu0
      %v3908 = vadd.f32 0.0, %v3907
      %v3909 = vpop.f32.mrf.mxu0
      %v3910 = vadd.f32 0.0, %v3909
      %3911 = vmatmul.bf16.gmra.mxu0 %v3692
      %v3912 = vpop.f32.mrf.mxu0
      %v3913 = vadd.f32 0.0, %v3912
      %v3914 = vpop.f32.mrf.mxu0
      %3915 = vdwg.mxu0
      %3916 = vmatpush.bf16.msra.mxu0 %v3811
      %3917 = vmatpush.bf16.msra.mxu0 %v3810
      %3918 = vmatpush.bf16.msra.mxu0 %v3809
      %3919 = vmatpush.bf16.msra.mxu0 %v3808
      %3920 = vmatpush.bf16.msra.mxu0 %v3807
      %3921 = vmatpush.bf16.msra.mxu0 %v3806
      %3922 = vmatpush.bf16.msra.mxu0 %v3805
      %3923 = vmatpush.bf16.msra.mxu0 %v3804
      %3924 = vmatmul.bf16.gmra.mxu0 %v3652
      %v3925 = vpop.f32.mrf.mxu0
      %v3926 = vadd.f32 %v3873, %v3925
      %v3927 = vpop.f32.mrf.mxu0
      %v3928 = vadd.f32 %v3875, %v3927
      %3929 = vmatmul.bf16.gmra.mxu0 %v3659
      %v3930 = vpop.f32.mrf.mxu0
      %v3931 = vadd.f32 %v3878, %v3930
      %v3932 = vpop.f32.mrf.mxu0
      %v3933 = vadd.f32 %v3880, %v3932
      %3934 = vmatmul.bf16.gmra.mxu0 %v3665
      %v3935 = vpop.f32.mrf.mxu0
      %v3936 = vadd.f32 %v3883, %v3935
      %v3937 = vpop.f32.mrf.mxu0
      %v3938 = vadd.f32 %v3885, %v3937
      %3939 = vmatmul.bf16.gmra.mxu0 %v3671
      %v3940 = vpop.f32.mrf.mxu0
      %v3941 = vadd.f32 %v3888, %v3940
      %v3942 = vpop.f32.mrf.mxu0
      %v3943 = vadd.f32 %v3890, %v3942
      %3944 = vmatmul.bf16.gmra.mxu0 %v3677
      %v3945 = vpop.f32.mrf.mxu0
      %v3946 = vadd.f32 %v3893, %v3945
      %v3947 = vpop.f32.mrf.mxu0
      %v3948 = vadd.f32 %v3895, %v3947
      %3949 = vmatmul.bf16.gmra.mxu0 %v3683
      %v3950 = vpop.f32.mrf.mxu0
      %v3951 = vadd.f32 %v3898, %v3950
      %v3952 = vpop.f32.mrf.mxu0
      %v3953 = vadd.f32 %v3900, %v3952
      %3954 = vmatmul.bf16.gmra.mxu0 %v3689
      %v3955 = vpop.f32.mrf.mxu0
      %v3956 = vadd.f32 %v3903, %v3955
      %v3957 = vpop.f32.mrf.mxu0
      %v3958 = vadd.f32 %v3905, %v3957
      %3959 = vmatmul.bf16.gmra.mxu0 %v3695
      %v3960 = vpop.f32.mrf.mxu0
      %v3961 = vadd.f32 %v3908, %v3960
      %v3962 = vpop.f32.mrf.mxu0
      %v3963 = vadd.f32 %v3910, %v3962
      %3964 = vmatmul.bf16.gmra.mxu0 %v3694
      %v3965 = vpop.f32.mrf.mxu0
      %v3966 = vadd.f32 %v3913, %v3965
      %v3967 = vpop.f32.mrf.mxu0
      %3968 = vdwg.mxu0
      %3969 = vmatpush.bf16.msra.mxu0 0
      %3970 = vmatpush.bf16.msra.mxu0 0
      %3971 = vmatpush.bf16.msra.mxu0 0
      %3972 = vmatpush.bf16.msra.mxu0 0
      %3973 = vmatpush.bf16.msra.mxu0 %v3815
      %3974 = vmatpush.bf16.msra.mxu0 %v3814
      %3975 = vmatpush.bf16.msra.mxu0 %v3813
      %3976 = vmatpush.bf16.msra.mxu0 %v3812
      %3977 = vmatmul.bf16.gmra.mxu0 %v3837
      %v3978 = vpop.f32.mrf.mxu0
      %v3979 = vadd.f32 %v3926, %v3978
      %v3980 = vpop.f32.mrf.mxu0
      %v3981 = vadd.f32 %v3928, %v3980
      %3982 = vmatmul.bf16.gmra.mxu0 %v3840
      %v3983 = vpop.f32.mrf.mxu0
      %v3984 = vadd.f32 %v3931, %v3983
      %v3985 = vpop.f32.mrf.mxu0
      %v3986 = vadd.f32 %v3933, %v3985
      %3987 = vmatmul.bf16.gmra.mxu0 %v3843
      %v3988 = vpop.f32.mrf.mxu0
      %v3989 = vadd.f32 %v3936, %v3988
      %v3990 = vpop.f32.mrf.mxu0
      %v3991 = vadd.f32 %v3938, %v3990
      %3992 = vmatmul.bf16.gmra.mxu0 %v3846
      %v3993 = vpop.f32.mrf.mxu0
      %v3994 = vadd.f32 %v3941, %v3993
      %v3995 = vpop.f32.mrf.mxu0
      %v3996 = vadd.f32 %v3943, %v3995
      %3997 = vmatmul.bf16.gmra.mxu0 %v3849
      %v3998 = vpop.f32.mrf.mxu0
      %v3999 = vadd.f32 %v3946, %v3998
      %v4000 = vpop.f32.mrf.mxu0
      %v4001 = vadd.f32 %v3948, %v4000
      %4002 = vmatmul.bf16.gmra.mxu0 %v3852
      %v4003 = vpop.f32.mrf.mxu0
      %v4004 = vadd.f32 %v3951, %v4003
      %v4005 = vpop.f32.mrf.mxu0
      %v4006 = vadd.f32 %v3953, %v4005
      %4007 = vmatmul.bf16.gmra.mxu0 %v3855
      %v4008 = vpop.f32.mrf.mxu0
      %v4009 = vadd.f32 %v3956, %v4008
      %v4010 = vpop.f32.mrf.mxu0
      %v4011 = vadd.f32 %v3958, %v4010
      %4012 = vmatmul.bf16.gmra.mxu0 %v3858
      %v4013 = vpop.f32.mrf.mxu0
      %v4014 = vadd.f32 %v3961, %v4013
      %v4015 = vpop.f32.mrf.mxu0
      %v4016 = vadd.f32 %v3963, %v4015
      %4017 = vmatmul.bf16.gmra.mxu0 %v3861
      %v4018 = vpop.f32.mrf.mxu0
      %v4019 = vadd.f32 %v3966, %v4018
      %v4020 = vpop.f32.mrf.mxu0
      %4021 = vdwg.mxu0
      %v4022 = vadd.f32 %v3409, %v3979
      %v4023 = vadd.f32 %v3411, %v3981
      %v4024 = vadd.f32 %v3414, %v3984
      %v4025 = vadd.f32 %v3416, %v3986
      %v4026 = vadd.f32 %v3419, %v3989
      %v4027 = vadd.f32 %v3421, %v3991
      %v4028 = vadd.f32 %v3424, %v3994
      %v4029 = vadd.f32 %v3426, %v3996
      %v4030 = vadd.f32 %v3429, %v3999
      %v4031 = vadd.f32 %v3431, %v4001
      %v4032 = vadd.f32 %v3434, %v4004
      %v4033 = vadd.f32 %v3436, %v4006
      %v4034 = vadd.f32 %v3439, %v4009
      %v4035 = vadd.f32 %v3441, %v4011
      %v4036 = vadd.f32 %v3444, %v4014
      %v4037 = vadd.f32 %v3446, %v4016
      %v4038 = vadd.f32 %v3449, %v4019
      %v4039 = vld [vmem:[#allocation4 + $0x3c] sm:$0xee]
      %v4040 = vld [vmem:[#allocation4 + $0x44] sm:$0xe]
      %v4041 = vld [vmem:[#allocation4 + $0x48] sm:$0xff]
      %v4042 = vld [vmem:[#allocation4 + $0x50] sm:$0xf]
      %v4043 = vld [vmem:[#allocation4 + $0x54] sm:$0xff]
      %v4044 = vld [vmem:[#allocation4 + $0x5c] sm:$0xf]
      %v4045 = vld [vmem:[#allocation4 + $0x60] sm:$0xff]
      %v4046 = vld [vmem:[#allocation4 + $0x68] sm:$0xf]
      %v4047 = vld [vmem:[#allocation4 + $0x6c] sm:$0xff]
      %v4048 = vld [vmem:[#allocation4 + $0x74] sm:$0xf]
      %v4049 = vld [vmem:[#allocation4 + $0x78] sm:$0xff]
      %v4050 = vld [vmem:[#allocation4 + $0x80] sm:$0xf]
      %v4051 = vld [vmem:[#allocation4 + $0x84] sm:$0xff]
      %v4052 = vld [vmem:[#allocation4 + $0x8c] sm:$0xf]
      %v4053 = vld [vmem:[#allocation4 + $0x90] sm:$0xff]
      %v4054 = vld [vmem:[#allocation4 + $0x98] sm:$0xf]
      %v4055 = vld [vmem:[#allocation4 + $0x9c] sm:$0xff]
      %v4056 = vld [vmem:[#allocation4 + $0xa4] sm:$0xf]
      %v4057 = vld [vmem:[#allocation4 + $0xa8] sm:$0xff]
      %v4058 = vld [vmem:[#allocation4 + $0xb0] sm:$0xf]
      %v4059 = vld [vmem:[#allocation4 + $0xb4] sm:$0xff]
      %v4060 = vld [vmem:[#allocation4 + $0xbc] sm:$0xf]
      %v4061 = vld [vmem:[#allocation4 + $0xc0] sm:$0xff]
      %v4062 = vld [vmem:[#allocation4 + $0xc8] sm:$0xf]
      %v4063 = vld [vmem:[#allocation4 + $0xcc] sm:$0xff]
      %v4064 = vld [vmem:[#allocation4 + $0xd4] sm:$0xf]
      %v4065 = vld [vmem:[#allocation4 + $0xd8] sm:$0xff]
      %v4066 = vld [vmem:[#allocation4 + $0xe0] sm:$0xf]
      %v4067 = vld [vmem:[#allocation4 + $0xe4] sm:$0xff]
      %v4068 = vld [vmem:[#allocation4 + $0xec] sm:$0xf]
      %v4069 = vld [vmem:[#allocation4 + $0xf0] sm:$0xff]
      %v4070 = vld [vmem:[#allocation4 + $0xf8] sm:$0xf]
      %v4071 = vld [vmem:[#allocation4 + $0xfc] sm:$0xff]
      %v4072 = vld [vmem:[#allocation4 + $0x104] sm:$0xf]
      %v4073 = vld [vmem:[#allocation4 + $0x108] sm:$0x11]
      %v4074 = vld [vmem:[#allocation4 + $0x110] sm:$0x1]
      %s4075 = scalar_lea.vmem %s3, 480
      %v4076 = vld [vmem:[%s4075] sm:$0xf]
      %v4077 = vld [vmem:[%s4075 + $0x4] sm:$0xf]
      %v4078 = vld [vmem:[%s4075 + $0x8] sm:$0xf]
      %v4079 = vld [vmem:[%s4075 + $0xc] sm:$0xf]
      %v4080 = vld [vmem:[%s4075 + $0x10] sm:$0xf]
      %v4081 = vld [vmem:[%s4075 + $0x14] sm:$0xf]
      %v4082 = vld [vmem:[%s4075 + $0x18] sm:$0xf]
      %v4083 = vld [vmem:[%s4075 + $0x1c] sm:$0xf]
      %v4084 = vld [vmem:[%s4075 + $0x20] sm:$0xf]
      %v4085 = vld [vmem:[%s4075 + $0x24] sm:$0xf]
      %v4086 = vld [vmem:[%s4075 + $0x28] sm:$0xf]
      %v4087 = vld [vmem:[%s4075 + $0x2c] sm:$0xf]
      %v4088 = vld [vmem:[%s4075 + $0x30] sm:$0xf]
      %v4089 = vld [vmem:[%s4075 + $0x34] sm:$0xf]
      %v4090 = vld [vmem:[%s4075 + $0x38] sm:$0xf]
      %v4091 = vld [vmem:[%s4075 + $0x3c] sm:$0xf]
      %v4092 = vld [vmem:[%s4075 + $0x40] sm:$0xf]
      %v4093 = vld [vmem:[%s4075 + $0x44] sm:$0xf]
      %v4094 = vld [vmem:[%s4075 + $0x48] sm:$0xf]
      %v4095 = vld [vmem:[%s4075 + $0x4c] sm:$0xf]
      %v4096 = vld [vmem:[%s4075 + $0x50] sm:$0xf]
      %v4097 = vld [vmem:[%s4075 + $0x54] sm:$0xf]
      %v4098 = vld [vmem:[%s4075 + $0x58] sm:$0xf]
      %v4099 = vld [vmem:[%s4075 + $0x5c] sm:$0xf]
      %v4100 = vld [vmem:[%s4075 + $0x60] sm:$0xf]
      %v4101 = vld [vmem:[%s4075 + $0x64] sm:$0xf]
      %v4102 = vld [vmem:[%s4075 + $0x68] sm:$0xf]
      %v4103 = vld [vmem:[%s4075 + $0x6c] sm:$0xf]
      %v4104 = vld [vmem:[%s4075 + $0x70] sm:$0xf]
      %v4105 = vld [vmem:[%s4075 + $0x74] sm:$0xf]
      %v4106 = vld [vmem:[%s4075 + $0x78] sm:$0xf]
      %v4107 = vld [vmem:[%s4075 + $0x7c] sm:$0xf]
      %v4108 = vld [vmem:[%s4075 + $0x80] sm:$0xf]
      %v4109 = vld [vmem:[%s4075 + $0x84] sm:$0xf]
      %v4110 = vld [vmem:[%s4075 + $0x88] sm:$0xf]
      %v4111 = vld [vmem:[%s4075 + $0x8c] sm:$0xf]
      %v4112 = vld [vmem:[%s4075 + $0x90] sm:$0xf]
      %v4113 = vld [vmem:[%s4075 + $0x94] sm:$0xf]
      %v4114 = vld [vmem:[%s4075 + $0x98] sm:$0xf]
      %v4115 = vld [vmem:[%s4075 + $0x9c] sm:$0xf]
      %v4152 = vunpack.c.l.b16 %v4039
      %v4153 = vunpack.c.h.b16 %v4039
      %v4154 = vunpack.c.l.b16 %v4040
      %v4155 = vunpack.c.l.b16 %v4041
      %v4156 = vunpack.c.h.b16 %v4041
      %v4157 = vunpack.c.l.b16 %v4042
      %v4158 = vunpack.c.l.b16 %v4043
      %v4159 = vunpack.c.h.b16 %v4043
      %v4160 = vunpack.c.l.b16 %v4044
      %v4161 = vunpack.c.l.b16 %v4045
      %v4162 = vunpack.c.h.b16 %v4045
      %v4163 = vunpack.c.l.b16 %v4046
      %v4164 = vunpack.c.l.b16 %v4047
      %v4165 = vunpack.c.h.b16 %v4047
      %v4166 = vunpack.c.l.b16 %v4048
      %v4167 = vunpack.c.l.b16 %v4049
      %v4168 = vunpack.c.h.b16 %v4049
      %v4169 = vunpack.c.l.b16 %v4050
      %v4170 = vunpack.c.l.b16 %v4051
      %v4171 = vunpack.c.h.b16 %v4051
      %v4172 = vunpack.c.l.b16 %v4052
      %v4173 = vunpack.c.l.b16 %v4053
      %v4174 = vunpack.c.h.b16 %v4053
      %v4175 = vunpack.c.l.b16 %v4054
      %v4176 = vunpack.c.l.b16 %v4055
      %v4177 = vunpack.c.h.b16 %v4055
      %v4178 = vunpack.c.l.b16 %v4056
      %v4179 = vunpack.c.l.b16 %v4057
      %v4180 = vunpack.c.h.b16 %v4057
      %v4181 = vunpack.c.l.b16 %v4058
      %v4182 = vunpack.c.l.b16 %v4059
      %v4183 = vunpack.c.h.b16 %v4059
      %v4184 = vunpack.c.l.b16 %v4060
      %v4185 = vunpack.c.l.b16 %v4061
      %v4186 = vunpack.c.h.b16 %v4061
      %v4187 = vunpack.c.l.b16 %v4062
      %v4188 = vunpack.c.l.b16 %v4063
      %v4189 = vunpack.c.h.b16 %v4063
      %v4190 = vunpack.c.l.b16 %v4064
      %v4191 = vunpack.c.l.b16 %v4065
      %v4192 = vunpack.c.h.b16 %v4065
      %v4193 = vunpack.c.l.b16 %v4066
      %v4194 = vunpack.c.l.b16 %v4067
      %v4195 = vunpack.c.h.b16 %v4067
      %v4196 = vunpack.c.l.b16 %v4068
      %v4197 = vunpack.c.l.b16 %v4069
      %v4198 = vunpack.c.h.b16 %v4069
      %v4199 = vunpack.c.l.b16 %v4070
      %v4200 = vunpack.c.l.b16 %v4071
      %v4201 = vunpack.c.h.b16 %v4071
      %v4202 = vunpack.c.l.b16 %v4072
      %v4203 = vunpack.c.l.b16 %v4073
      %v4204 = vunpack.c.h.b16 %v4073
      %v4205 = vunpack.c.l.b16 %v4074
      %v4206 = vpack.c.b16 %v4155, %v4152
      %v4207 = vpack.c.b16 %v4156, %v4153
      %v4208 = vpack.c.b16 %v4157, %v4154
      %v4209 = vpack.c.b16 %v4161, %v4158
      %v4210 = vpack.c.b16 %v4162, %v4159
      %v4211 = vpack.c.b16 %v4163, %v4160
      %v4212 = vpack.c.b16 %v4167, %v4164
      %v4213 = vpack.c.b16 %v4168, %v4165
      %v4214 = vpack.c.b16 %v4169, %v4166
      %v4215 = vpack.c.b16 %v4173, %v4170
      %v4216 = vpack.c.b16 %v4174, %v4171
      %v4217 = vpack.c.b16 %v4175, %v4172
      %v4218 = vpack.c.b16 %v4179, %v4176
      %v4219 = vpack.c.b16 %v4180, %v4177
      %v4220 = vpack.c.b16 %v4181, %v4178
      %v4221 = vpack.c.b16 %v4185, %v4182
      %v4222 = vpack.c.b16 %v4186, %v4183
      %v4223 = vpack.c.b16 %v4187, %v4184
      %v4224 = vpack.c.b16 %v4191, %v4188
      %v4225 = vpack.c.b16 %v4192, %v4189
      %v4226 = vpack.c.b16 %v4193, %v4190
      %v4227 = vpack.c.b16 %v4197, %v4194
      %v4228 = vpack.c.b16 %v4198, %v4195
      %v4229 = vpack.c.b16 %v4199, %v4196
      %v4230 = vpack.c.b16 %v4203, %v4200
      %v4231 = vpack.c.b16 %v4204, %v4201
      %v4232 = vpack.c.b16 %v4205, %v4202
      %vm4233 = vcmask 1046528
      %v4234 = vrot.slane %v4206, 1
      %v4235 = vrot.slane %v4209, 1
      %v4236 = vsel %vm4233, %v4234, %v4235
      %v4237 = vrot.slane %v4207, 1
      %v4238 = vrot.slane %v4210, 1
      %v4239 = vsel %vm4233, %v4237, %v4238
      %v4240 = vrot.slane %v4208, 1
      %v4241 = vrot.slane %v4211, 1
      %v4242 = vsel %vm4233, %v4240, %v4241
      %v4243 = vrot.slane %v4212, 1
      %v4244 = vsel %vm4233, %v4235, %v4243
      %v4245 = vrot.slane %v4213, 1
      %v4246 = vsel %vm4233, %v4238, %v4245
      %v4247 = vrot.slane %v4214, 1
      %v4248 = vsel %vm4233, %v4241, %v4247
      %v4249 = vrot.slane %v4215, 1
      %v4250 = vsel %vm4233, %v4243, %v4249
      %v4251 = vrot.slane %v4216, 1
      %v4252 = vsel %vm4233, %v4245, %v4251
      %v4253 = vrot.slane %v4217, 1
      %v4254 = vsel %vm4233, %v4247, %v4253
      %v4255 = vrot.slane %v4218, 1
      %v4256 = vsel %vm4233, %v4249, %v4255
      %v4257 = vrot.slane %v4219, 1
      %v4258 = vsel %vm4233, %v4251, %v4257
      %v4259 = vrot.slane %v4220, 1
      %v4260 = vsel %vm4233, %v4253, %v4259
      %v4261 = vrot.slane %v4221, 1
      %v4262 = vsel %vm4233, %v4255, %v4261
      %v4263 = vrot.slane %v4222, 1
      %v4264 = vsel %vm4233, %v4257, %v4263
      %v4265 = vrot.slane %v4223, 1
      %v4266 = vsel %vm4233, %v4259, %v4265
      %v4267 = vrot.slane %v4224, 1
      %v4268 = vsel %vm4233, %v4261, %v4267
      %v4269 = vrot.slane %v4225, 1
      %v4270 = vsel %vm4233, %v4263, %v4269
      %v4271 = vrot.slane %v4226, 1
      %v4272 = vsel %vm4233, %v4265, %v4271
      %v4273 = vrot.slane %v4227, 1
      %v4274 = vsel %vm4233, %v4267, %v4273
      %v4275 = vrot.slane %v4228, 1
      %v4276 = vsel %vm4233, %v4269, %v4275
      %v4277 = vrot.slane %v4229, 1
      %v4278 = vsel %vm4233, %v4271, %v4277
      %v4279 = vrot.slane %v4230, 1
      %v4280 = vsel %vm4233, %v4273, %v4279
      %v4281 = vrot.slane %v4231, 1
      %v4282 = vsel %vm4233, %v4275, %v4281
      %v4283 = vrot.slane %v4232, 1
      %v4284 = vsel %vm4233, %v4277, %v4283
      %v4343 = vunpack.c.l.b16 %v4076
      %v4344 = vunpack.c.l.b16 %v4077
      %v4345 = vunpack.c.l.b16 %v4078
      %v4346 = vunpack.c.l.b16 %v4079
      %v4347 = vunpack.c.l.b16 %v4080
      %v4348 = vunpack.c.l.b16 %v4081
      %v4349 = vunpack.c.l.b16 %v4082
      %v4350 = vunpack.c.l.b16 %v4083
      %v4351 = vunpack.c.l.b16 %v4084
      %v4352 = vunpack.c.l.b16 %v4085
      %v4353 = vunpack.c.l.b16 %v4086
      %v4354 = vunpack.c.l.b16 %v4087
      %v4355 = vunpack.c.l.b16 %v4088
      %v4356 = vunpack.c.l.b16 %v4089
      %v4357 = vunpack.c.l.b16 %v4090
      %v4358 = vunpack.c.l.b16 %v4091
      %v4359 = vunpack.c.l.b16 %v4092
      %v4360 = vunpack.c.l.b16 %v4093
      %v4361 = vunpack.c.l.b16 %v4094
      %v4362 = vunpack.c.l.b16 %v4095
      %v4363 = vunpack.c.l.b16 %v4096
      %v4364 = vunpack.c.l.b16 %v4097
      %v4365 = vunpack.c.l.b16 %v4098
      %v4366 = vunpack.c.l.b16 %v4099
      %v4367 = vunpack.c.l.b16 %v4100
      %v4368 = vunpack.c.l.b16 %v4101
      %v4369 = vunpack.c.l.b16 %v4102
      %v4370 = vunpack.c.l.b16 %v4103
      %v4371 = vunpack.c.l.b16 %v4104
      %v4372 = vunpack.c.l.b16 %v4105
      %v4373 = vunpack.c.l.b16 %v4106
      %v4374 = vunpack.c.l.b16 %v4107
      %v4375 = vunpack.c.l.b16 %v4108
      %v4376 = vunpack.c.l.b16 %v4109
      %v4377 = vunpack.c.l.b16 %v4110
      %v4378 = vunpack.c.l.b16 %v4111
      %v4379 = vunpack.c.l.b16 %v4112
      %v4380 = vunpack.c.l.b16 %v4113
      %v4381 = vunpack.c.l.b16 %v4114
      %v4382 = vunpack.c.l.b16 %v4115
      %v4383 = vpack.c.b16 %v4344, %v4343
      %v4384 = vpack.c.b16 %v4346, %v4345
      %v4385 = vpack.c.b16 %v4348, %v4347
      %v4386 = vpack.c.b16 %v4350, %v4349
      %v4387 = vpack.c.b16 %v4352, %v4351
      %v4388 = vpack.c.b16 %v4354, %v4353
      %v4389 = vpack.c.b16 %v4356, %v4355
      %v4390 = vpack.c.b16 %v4358, %v4357
      %v4391 = vpack.c.b16 %v4360, %v4359
      %v4392 = vpack.c.b16 %v4362, %v4361
      %v4393 = vpack.c.b16 %v4364, %v4363
      %v4394 = vpack.c.b16 %v4366, %v4365
      %v4395 = vpack.c.b16 %v4368, %v4367
      %v4396 = vpack.c.b16 %v4370, %v4369
      %v4397 = vpack.c.b16 %v4372, %v4371
      %v4398 = vpack.c.b16 %v4374, %v4373
      %v4399 = vpack.c.b16 %v4376, %v4375
      %v4400 = vpack.c.b16 %v4378, %v4377
      %v4401 = vpack.c.b16 %v4380, %v4379
      %v4402 = vpack.c.b16 %v4382, %v4381
      %v4424 = vsel %vm958, %v4242, 0
      %v4427 = vsel %vm958, %v4248, 0
      %v4430 = vsel %vm958, %v4254, 0
      %v4433 = vsel %vm958, %v4260, 0
      %v4436 = vsel %vm958, %v4266, 0
      %v4439 = vsel %vm958, %v4272, 0
      %v4442 = vsel %vm958, %v4278, 0
      %v4445 = vsel %vm958, %v4284, 0
      %v4448 = vsel %vm958, %v4283, 0
      %4450 = vmatpush.bf16.msra.mxu0 %v4390
      %4451 = vmatpush.bf16.msra.mxu0 %v4389
      %4452 = vmatpush.bf16.msra.mxu0 %v4388
      %4453 = vmatpush.bf16.msra.mxu0 %v4387
      %4454 = vmatpush.bf16.msra.mxu0 %v4386
      %4455 = vmatpush.bf16.msra.mxu0 %v4385
      %4456 = vmatpush.bf16.msra.mxu0 %v4384
      %4457 = vmatpush.bf16.msra.mxu0 %v4383
      %4458 = vmatmul.bf16.gmra.mxu0 %v4236
      %v4459 = vpop.f32.mrf.mxu0
      %v4460 = vadd.f32 0.0, %v4459
      %v4461 = vpop.f32.mrf.mxu0
      %v4462 = vadd.f32 0.0, %v4461
      %4463 = vmatmul.bf16.gmra.mxu0 %v4244
      %v4464 = vpop.f32.mrf.mxu0
      %v4465 = vadd.f32 0.0, %v4464
      %v4466 = vpop.f32.mrf.mxu0
      %v4467 = vadd.f32 0.0, %v4466
      %4468 = vmatmul.bf16.gmra.mxu0 %v4250
      %v4469 = vpop.f32.mrf.mxu0
      %v4470 = vadd.f32 0.0, %v4469
      %v4471 = vpop.f32.mrf.mxu0
      %v4472 = vadd.f32 0.0, %v4471
      %4473 = vmatmul.bf16.gmra.mxu0 %v4256
      %v4474 = vpop.f32.mrf.mxu0
      %v4475 = vadd.f32 0.0, %v4474
      %v4476 = vpop.f32.mrf.mxu0
      %v4477 = vadd.f32 0.0, %v4476
      %4478 = vmatmul.bf16.gmra.mxu0 %v4262
      %v4479 = vpop.f32.mrf.mxu0
      %v4480 = vadd.f32 0.0, %v4479
      %v4481 = vpop.f32.mrf.mxu0
      %v4482 = vadd.f32 0.0, %v4481
      %4483 = vmatmul.bf16.gmra.mxu0 %v4268
      %v4484 = vpop.f32.mrf.mxu0
      %v4485 = vadd.f32 0.0, %v4484
      %v4486 = vpop.f32.mrf.mxu0
      %v4487 = vadd.f32 0.0, %v4486
      %4488 = vmatmul.bf16.gmra.mxu0 %v4274
      %v4489 = vpop.f32.mrf.mxu0
      %v4490 = vadd.f32 0.0, %v4489
      %v4491 = vpop.f32.mrf.mxu0
      %v4492 = vadd.f32 0.0, %v4491
      %4493 = vmatmul.bf16.gmra.mxu0 %v4280
      %v4494 = vpop.f32.mrf.mxu0
      %v4495 = vadd.f32 0.0, %v4494
      %v4496 = vpop.f32.mrf.mxu0
      %v4497 = vadd.f32 0.0, %v4496
      %4498 = vmatmul.bf16.gmra.mxu0 %v4279
      %v4499 = vpop.f32.mrf.mxu0
      %v4500 = vadd.f32 0.0, %v4499
      %v4501 = vpop.f32.mrf.mxu0
      %4502 = vdwg.mxu0
      %4503 = vmatpush.bf16.msra.mxu0 %v4398
      %4504 = vmatpush.bf16.msra.mxu0 %v4397
      %4505 = vmatpush.bf16.msra.mxu0 %v4396
      %4506 = vmatpush.bf16.msra.mxu0 %v4395
      %4507 = vmatpush.bf16.msra.mxu0 %v4394
      %4508 = vmatpush.bf16.msra.mxu0 %v4393
      %4509 = vmatpush.bf16.msra.mxu0 %v4392
      %4510 = vmatpush.bf16.msra.mxu0 %v4391
      %4511 = vmatmul.bf16.gmra.mxu0 %v4239
      %v4512 = vpop.f32.mrf.mxu0
      %v4513 = vadd.f32 %v4460, %v4512
      %v4514 = vpop.f32.mrf.mxu0
      %v4515 = vadd.f32 %v4462, %v4514
      %4516 = vmatmul.bf16.gmra.mxu0 %v4246
      %v4517 = vpop.f32.mrf.mxu0
      %v4518 = vadd.f32 %v4465, %v4517
      %v4519 = vpop.f32.mrf.mxu0
      %v4520 = vadd.f32 %v4467, %v4519
      %4521 = vmatmul.bf16.gmra.mxu0 %v4252
      %v4522 = vpop.f32.mrf.mxu0
      %v4523 = vadd.f32 %v4470, %v4522
      %v4524 = vpop.f32.mrf.mxu0
      %v4525 = vadd.f32 %v4472, %v4524
      %4526 = vmatmul.bf16.gmra.mxu0 %v4258
      %v4527 = vpop.f32.mrf.mxu0
      %v4528 = vadd.f32 %v4475, %v4527
      %v4529 = vpop.f32.mrf.mxu0
      %v4530 = vadd.f32 %v4477, %v4529
      %4531 = vmatmul.bf16.gmra.mxu0 %v4264
      %v4532 = vpop.f32.mrf.mxu0
      %v4533 = vadd.f32 %v4480, %v4532
      %v4534 = vpop.f32.mrf.mxu0
      %v4535 = vadd.f32 %v4482, %v4534
      %4536 = vmatmul.bf16.gmra.mxu0 %v4270
      %v4537 = vpop.f32.mrf.mxu0
      %v4538 = vadd.f32 %v4485, %v4537
      %v4539 = vpop.f32.mrf.mxu0
      %v4540 = vadd.f32 %v4487, %v4539
      %4541 = vmatmul.bf16.gmra.mxu0 %v4276
      %v4542 = vpop.f32.mrf.mxu0
      %v4543 = vadd.f32 %v4490, %v4542
      %v4544 = vpop.f32.mrf.mxu0
      %v4545 = vadd.f32 %v4492, %v4544
      %4546 = vmatmul.bf16.gmra.mxu0 %v4282
      %v4547 = vpop.f32.mrf.mxu0
      %v4548 = vadd.f32 %v4495, %v4547
      %v4549 = vpop.f32.mrf.mxu0
      %v4550 = vadd.f32 %v4497, %v4549
      %4551 = vmatmul.bf16.gmra.mxu0 %v4281
      %v4552 = vpop.f32.mrf.mxu0
      %v4553 = vadd.f32 %v4500, %v4552
      %v4554 = vpop.f32.mrf.mxu0
      %4555 = vdwg.mxu0
      %4556 = vmatpush.bf16.msra.mxu0 0
      %4557 = vmatpush.bf16.msra.mxu0 0
      %4558 = vmatpush.bf16.msra.mxu0 0
      %4559 = vmatpush.bf16.msra.mxu0 0
      %4560 = vmatpush.bf16.msra.mxu0 %v4402
      %4561 = vmatpush.bf16.msra.mxu0 %v4401
      %4562 = vmatpush.bf16.msra.mxu0 %v4400
      %4563 = vmatpush.bf16.msra.mxu0 %v4399
      %4564 = vmatmul.bf16.gmra.mxu0 %v4424
      %v4565 = vpop.f32.mrf.mxu0
      %v4566 = vadd.f32 %v4513, %v4565
      %v4567 = vpop.f32.mrf.mxu0
      %v4568 = vadd.f32 %v4515, %v4567
      %4569 = vmatmul.bf16.gmra.mxu0 %v4427
      %v4570 = vpop.f32.mrf.mxu0
      %v4571 = vadd.f32 %v4518, %v4570
      %v4572 = vpop.f32.mrf.mxu0
      %v4573 = vadd.f32 %v4520, %v4572
      %4574 = vmatmul.bf16.gmra.mxu0 %v4430
      %v4575 = vpop.f32.mrf.mxu0
      %v4576 = vadd.f32 %v4523, %v4575
      %v4577 = vpop.f32.mrf.mxu0
      %v4578 = vadd.f32 %v4525, %v4577
      %4579 = vmatmul.bf16.gmra.mxu0 %v4433
      %v4580 = vpop.f32.mrf.mxu0
      %v4581 = vadd.f32 %v4528, %v4580
      %v4582 = vpop.f32.mrf.mxu0
      %v4583 = vadd.f32 %v4530, %v4582
      %4584 = vmatmul.bf16.gmra.mxu0 %v4436
      %v4585 = vpop.f32.mrf.mxu0
      %v4586 = vadd.f32 %v4533, %v4585
      %v4587 = vpop.f32.mrf.mxu0
      %v4588 = vadd.f32 %v4535, %v4587
      %4589 = vmatmul.bf16.gmra.mxu0 %v4439
      %v4590 = vpop.f32.mrf.mxu0
      %v4591 = vadd.f32 %v4538, %v4590
      %v4592 = vpop.f32.mrf.mxu0
      %v4593 = vadd.f32 %v4540, %v4592
      %4594 = vmatmul.bf16.gmra.mxu0 %v4442
      %v4595 = vpop.f32.mrf.mxu0
      %v4596 = vadd.f32 %v4543, %v4595
      %v4597 = vpop.f32.mrf.mxu0
      %v4598 = vadd.f32 %v4545, %v4597
      %4599 = vmatmul.bf16.gmra.mxu0 %v4445
      %v4600 = vpop.f32.mrf.mxu0
      %v4601 = vadd.f32 %v4548, %v4600
      %v4602 = vpop.f32.mrf.mxu0
      %v4603 = vadd.f32 %v4550, %v4602
      %4604 = vmatmul.bf16.gmra.mxu0 %v4448
      %v4605 = vpop.f32.mrf.mxu0
      %v4606 = vadd.f32 %v4553, %v4605
      %v4607 = vpop.f32.mrf.mxu0
      %4608 = vdwg.mxu0
      %v4609 = vadd.f32 %v4022, %v4566
      %v4610 = vadd.f32 %v4023, %v4568
      %v4611 = vadd.f32 %v4024, %v4571
      %v4612 = vadd.f32 %v4025, %v4573
      %v4613 = vadd.f32 %v4026, %v4576
      %v4614 = vadd.f32 %v4027, %v4578
      %v4615 = vadd.f32 %v4028, %v4581
      %v4616 = vadd.f32 %v4029, %v4583
      %v4617 = vadd.f32 %v4030, %v4586
      %v4618 = vadd.f32 %v4031, %v4588
      %v4619 = vadd.f32 %v4032, %v4591
      %v4620 = vadd.f32 %v4033, %v4593
      %v4621 = vadd.f32 %v4034, %v4596
      %v4622 = vadd.f32 %v4035, %v4598
      %v4623 = vadd.f32 %v4036, %v4601
      %v4624 = vadd.f32 %v4037, %v4603
      %v4625 = vadd.f32 %v4038, %v4606
      %v4626 = vld [vmem:[#allocation4 + $0x54] sm:$0xff]
      %v4627 = vld [vmem:[#allocation4 + $0x5c] sm:$0xf]
      %v4628 = vld [vmem:[#allocation4 + $0x60] sm:$0xff]
      %v4629 = vld [vmem:[#allocation4 + $0x68] sm:$0xf]
      %v4630 = vld [vmem:[#allocation4 + $0x6c] sm:$0xff]
      %v4631 = vld [vmem:[#allocation4 + $0x74] sm:$0xf]
      %v4632 = vld [vmem:[#allocation4 + $0x78] sm:$0xff]
      %v4633 = vld [vmem:[#allocation4 + $0x80] sm:$0xf]
      %v4634 = vld [vmem:[#allocation4 + $0x84] sm:$0xff]
      %v4635 = vld [vmem:[#allocation4 + $0x8c] sm:$0xf]
      %v4636 = vld [vmem:[#allocation4 + $0x90] sm:$0xff]
      %v4637 = vld [vmem:[#allocation4 + $0x98] sm:$0xf]
      %v4638 = vld [vmem:[#allocation4 + $0x9c] sm:$0xff]
      %v4639 = vld [vmem:[#allocation4 + $0xa4] sm:$0xf]
      %v4640 = vld [vmem:[#allocation4 + $0xa8] sm:$0xff]
      %v4641 = vld [vmem:[#allocation4 + $0xb0] sm:$0xf]
      %v4642 = vld [vmem:[#allocation4 + $0xb4] sm:$0xff]
      %v4643 = vld [vmem:[#allocation4 + $0xbc] sm:$0xf]
      %v4644 = vld [vmem:[#allocation4 + $0xc0] sm:$0xff]
      %v4645 = vld [vmem:[#allocation4 + $0xc8] sm:$0xf]
      %v4646 = vld [vmem:[#allocation4 + $0xcc] sm:$0xff]
      %v4647 = vld [vmem:[#allocation4 + $0xd4] sm:$0xf]
      %v4648 = vld [vmem:[#allocation4 + $0xd8] sm:$0xff]
      %v4649 = vld [vmem:[#allocation4 + $0xe0] sm:$0xf]
      %v4650 = vld [vmem:[#allocation4 + $0xe4] sm:$0xff]
      %v4651 = vld [vmem:[#allocation4 + $0xec] sm:$0xf]
      %v4652 = vld [vmem:[#allocation4 + $0xf0] sm:$0xff]
      %v4653 = vld [vmem:[#allocation4 + $0xf8] sm:$0xf]
      %v4654 = vld [vmem:[#allocation4 + $0xfc] sm:$0xff]
      %v4655 = vld [vmem:[#allocation4 + $0x104] sm:$0xf]
      %v4656 = vld [vmem:[#allocation4 + $0x108] sm:$0xff]
      %v4657 = vld [vmem:[#allocation4 + $0x110] sm:$0xf]
      %v4658 = vld [vmem:[#allocation4 + $0x114] sm:$0xff]
      %v4659 = vld [vmem:[#allocation4 + $0x11c] sm:$0xf]
      %s4660 = scalar_lea.vmem %s3, 640
      %v4661 = vld [vmem:[%s4660] sm:$0xf]
      %v4662 = vld [vmem:[%s4660 + $0x4] sm:$0xf]
      %v4663 = vld [vmem:[%s4660 + $0x8] sm:$0xf]
      %v4664 = vld [vmem:[%s4660 + $0xc] sm:$0xf]
      %v4665 = vld [vmem:[%s4660 + $0x10] sm:$0xf]
      %v4666 = vld [vmem:[%s4660 + $0x14] sm:$0xf]
      %v4667 = vld [vmem:[%s4660 + $0x18] sm:$0xf]
      %v4668 = vld [vmem:[%s4660 + $0x1c] sm:$0xf]
      %v4669 = vld [vmem:[%s4660 + $0x20] sm:$0xf]
      %v4670 = vld [vmem:[%s4660 + $0x24] sm:$0xf]
      %v4671 = vld [vmem:[%s4660 + $0x28] sm:$0xf]
      %v4672 = vld [vmem:[%s4660 + $0x2c] sm:$0xf]
      %v4673 = vld [vmem:[%s4660 + $0x30] sm:$0xf]
      %v4674 = vld [vmem:[%s4660 + $0x34] sm:$0xf]
      %v4675 = vld [vmem:[%s4660 + $0x38] sm:$0xf]
      %v4676 = vld [vmem:[%s4660 + $0x3c] sm:$0xf]
      %v4677 = vld [vmem:[%s4660 + $0x40] sm:$0xf]
      %v4678 = vld [vmem:[%s4660 + $0x44] sm:$0xf]
      %v4679 = vld [vmem:[%s4660 + $0x48] sm:$0xf]
      %v4680 = vld [vmem:[%s4660 + $0x4c] sm:$0xf]
      %v4681 = vld [vmem:[%s4660 + $0x50] sm:$0xf]
      %v4682 = vld [vmem:[%s4660 + $0x54] sm:$0xf]
      %v4683 = vld [vmem:[%s4660 + $0x58] sm:$0xf]
      %v4684 = vld [vmem:[%s4660 + $0x5c] sm:$0xf]
      %v4685 = vld [vmem:[%s4660 + $0x60] sm:$0xf]
      %v4686 = vld [vmem:[%s4660 + $0x64] sm:$0xf]
      %v4687 = vld [vmem:[%s4660 + $0x68] sm:$0xf]
      %v4688 = vld [vmem:[%s4660 + $0x6c] sm:$0xf]
      %v4689 = vld [vmem:[%s4660 + $0x70] sm:$0xf]
      %v4690 = vld [vmem:[%s4660 + $0x74] sm:$0xf]
      %v4691 = vld [vmem:[%s4660 + $0x78] sm:$0xf]
      %v4692 = vld [vmem:[%s4660 + $0x7c] sm:$0xf]
      %v4693 = vld [vmem:[%s4660 + $0x80] sm:$0xf]
      %v4694 = vld [vmem:[%s4660 + $0x84] sm:$0xf]
      %v4695 = vld [vmem:[%s4660 + $0x88] sm:$0xf]
      %v4696 = vld [vmem:[%s4660 + $0x8c] sm:$0xf]
      %v4697 = vld [vmem:[%s4660 + $0x90] sm:$0xf]
      %v4698 = vld [vmem:[%s4660 + $0x94] sm:$0xf]
      %v4699 = vld [vmem:[%s4660 + $0x98] sm:$0xf]
      %v4700 = vld [vmem:[%s4660 + $0x9c] sm:$0xf]
      %v4735 = vunpack.c.l.b16 %v4626
      %v4736 = vunpack.c.h.b16 %v4626
      %v4737 = vunpack.c.l.b16 %v4627
      %v4738 = vunpack.c.l.b16 %v4628
      %v4739 = vunpack.c.h.b16 %v4628
      %v4740 = vunpack.c.l.b16 %v4629
      %v4741 = vunpack.c.l.b16 %v4630
      %v4742 = vunpack.c.h.b16 %v4630
      %v4743 = vunpack.c.l.b16 %v4631
      %v4744 = vunpack.c.l.b16 %v4632
      %v4745 = vunpack.c.h.b16 %v4632
      %v4746 = vunpack.c.l.b16 %v4633
      %v4747 = vunpack.c.l.b16 %v4634
      %v4748 = vunpack.c.h.b16 %v4634
      %v4749 = vunpack.c.l.b16 %v4635
      %v4750 = vunpack.c.l.b16 %v4636
      %v4751 = vunpack.c.h.b16 %v4636
      %v4752 = vunpack.c.l.b16 %v4637
      %v4753 = vunpack.c.l.b16 %v4638
      %v4754 = vunpack.c.h.b16 %v4638
      %v4755 = vunpack.c.l.b16 %v4639
      %v4756 = vunpack.c.l.b16 %v4640
      %v4757 = vunpack.c.h.b16 %v4640
      %v4758 = vunpack.c.l.b16 %v4641
      %v4759 = vunpack.c.l.b16 %v4642
      %v4760 = vunpack.c.h.b16 %v4642
      %v4761 = vunpack.c.l.b16 %v4643
      %v4762 = vunpack.c.l.b16 %v4644
      %v4763 = vunpack.c.h.b16 %v4644
      %v4764 = vunpack.c.l.b16 %v4645
      %v4765 = vunpack.c.l.b16 %v4646
      %v4766 = vunpack.c.h.b16 %v4646
      %v4767 = vunpack.c.l.b16 %v4647
      %v4768 = vunpack.c.l.b16 %v4648
      %v4769 = vunpack.c.h.b16 %v4648
      %v4770 = vunpack.c.l.b16 %v4649
      %v4771 = vunpack.c.l.b16 %v4650
      %v4772 = vunpack.c.h.b16 %v4650
      %v4773 = vunpack.c.l.b16 %v4651
      %v4774 = vunpack.c.l.b16 %v4652
      %v4775 = vunpack.c.h.b16 %v4652
      %v4776 = vunpack.c.l.b16 %v4653
      %v4777 = vunpack.c.l.b16 %v4654
      %v4778 = vunpack.c.h.b16 %v4654
      %v4779 = vunpack.c.l.b16 %v4655
      %v4780 = vunpack.c.l.b16 %v4656
      %v4781 = vunpack.c.h.b16 %v4656
      %v4782 = vunpack.c.l.b16 %v4657
      %v4783 = vunpack.c.l.b16 %v4658
      %v4784 = vunpack.c.h.b16 %v4658
      %v4785 = vunpack.c.l.b16 %v4659
      %v4786 = vpack.c.b16 %v4738, %v4735
      %v4787 = vpack.c.b16 %v4739, %v4736
      %v4788 = vpack.c.b16 %v4740, %v4737
      %v4789 = vpack.c.b16 %v4744, %v4741
      %v4790 = vpack.c.b16 %v4745, %v4742
      %v4791 = vpack.c.b16 %v4746, %v4743
      %v4792 = vpack.c.b16 %v4750, %v4747
      %v4793 = vpack.c.b16 %v4751, %v4748
      %v4794 = vpack.c.b16 %v4752, %v4749
      %v4795 = vpack.c.b16 %v4756, %v4753
      %v4796 = vpack.c.b16 %v4757, %v4754
      %v4797 = vpack.c.b16 %v4758, %v4755
      %v4798 = vpack.c.b16 %v4762, %v4759
      %v4799 = vpack.c.b16 %v4763, %v4760
      %v4800 = vpack.c.b16 %v4764, %v4761
      %v4801 = vpack.c.b16 %v4768, %v4765
      %v4802 = vpack.c.b16 %v4769, %v4766
      %v4803 = vpack.c.b16 %v4770, %v4767
      %v4804 = vpack.c.b16 %v4774, %v4771
      %v4805 = vpack.c.b16 %v4775, %v4772
      %v4806 = vpack.c.b16 %v4776, %v4773
      %v4807 = vpack.c.b16 %v4780, %v4777
      %v4808 = vpack.c.b16 %v4781, %v4778
      %v4809 = vpack.c.b16 %v4782, %v4779
      %v4810 = vpack.c.b16 %v4783, %v4783
      %v4811 = vpack.c.b16 %v4784, %v4784
      %v4812 = vpack.c.b16 %v4785, %v4785
      %v4871 = vunpack.c.l.b16 %v4661
      %v4872 = vunpack.c.l.b16 %v4662
      %v4873 = vunpack.c.l.b16 %v4663
      %v4874 = vunpack.c.l.b16 %v4664
      %v4875 = vunpack.c.l.b16 %v4665
      %v4876 = vunpack.c.l.b16 %v4666
      %v4877 = vunpack.c.l.b16 %v4667
      %v4878 = vunpack.c.l.b16 %v4668
      %v4879 = vunpack.c.l.b16 %v4669
      %v4880 = vunpack.c.l.b16 %v4670
      %v4881 = vunpack.c.l.b16 %v4671
      %v4882 = vunpack.c.l.b16 %v4672
      %v4883 = vunpack.c.l.b16 %v4673
      %v4884 = vunpack.c.l.b16 %v4674
      %v4885 = vunpack.c.l.b16 %v4675
      %v4886 = vunpack.c.l.b16 %v4676
      %v4887 = vunpack.c.l.b16 %v4677
      %v4888 = vunpack.c.l.b16 %v4678
      %v4889 = vunpack.c.l.b16 %v4679
      %v4890 = vunpack.c.l.b16 %v4680
      %v4891 = vunpack.c.l.b16 %v4681
      %v4892 = vunpack.c.l.b16 %v4682
      %v4893 = vunpack.c.l.b16 %v4683
      %v4894 = vunpack.c.l.b16 %v4684
      %v4895 = vunpack.c.l.b16 %v4685
      %v4896 = vunpack.c.l.b16 %v4686
      %v4897 = vunpack.c.l.b16 %v4687
      %v4898 = vunpack.c.l.b16 %v4688
      %v4899 = vunpack.c.l.b16 %v4689
      %v4900 = vunpack.c.l.b16 %v4690
      %v4901 = vunpack.c.l.b16 %v4691
      %v4902 = vunpack.c.l.b16 %v4692
      %v4903 = vunpack.c.l.b16 %v4693
      %v4904 = vunpack.c.l.b16 %v4694
      %v4905 = vunpack.c.l.b16 %v4695
      %v4906 = vunpack.c.l.b16 %v4696
      %v4907 = vunpack.c.l.b16 %v4697
      %v4908 = vunpack.c.l.b16 %v4698
      %v4909 = vunpack.c.l.b16 %v4699
      %v4910 = vunpack.c.l.b16 %v4700
      %v4911 = vpack.c.b16 %v4872, %v4871
      %v4912 = vpack.c.b16 %v4874, %v4873
      %v4913 = vpack.c.b16 %v4876, %v4875
      %v4914 = vpack.c.b16 %v4878, %v4877
      %v4915 = vpack.c.b16 %v4880, %v4879
      %v4916 = vpack.c.b16 %v4882, %v4881
      %v4917 = vpack.c.b16 %v4884, %v4883
      %v4918 = vpack.c.b16 %v4886, %v4885
      %v4919 = vpack.c.b16 %v4888, %v4887
      %v4920 = vpack.c.b16 %v4890, %v4889
      %v4921 = vpack.c.b16 %v4892, %v4891
      %v4922 = vpack.c.b16 %v4894, %v4893
      %v4923 = vpack.c.b16 %v4896, %v4895
      %v4924 = vpack.c.b16 %v4898, %v4897
      %v4925 = vpack.c.b16 %v4900, %v4899
      %v4926 = vpack.c.b16 %v4902, %v4901
      %v4927 = vpack.c.b16 %v4904, %v4903
      %v4928 = vpack.c.b16 %v4906, %v4905
      %v4929 = vpack.c.b16 %v4908, %v4907
      %v4930 = vpack.c.b16 %v4910, %v4909
      %v4952 = vsel %vm958, %v4788, 0
      %v4955 = vsel %vm958, %v4791, 0
      %v4958 = vsel %vm958, %v4794, 0
      %v4961 = vsel %vm958, %v4797, 0
      %v4964 = vsel %vm958, %v4800, 0
      %v4967 = vsel %vm958, %v4803, 0
      %v4970 = vsel %vm958, %v4806, 0
      %v4973 = vsel %vm958, %v4809, 0
      %v4976 = vsel %vm958, %v4812, 0
      %4978 = vmatpush.bf16.msra.mxu0 %v4918
      %4979 = vmatpush.bf16.msra.mxu0 %v4917
      %4980 = vmatpush.bf16.msra.mxu0 %v4916
      %4981 = vmatpush.bf16.msra.mxu0 %v4915
      %4982 = vmatpush.bf16.msra.mxu0 %v4914
      %4983 = vmatpush.bf16.msra.mxu0 %v4913
      %4984 = vmatpush.bf16.msra.mxu0 %v4912
      %4985 = vmatpush.bf16.msra.mxu0 %v4911
      %4986 = vmatmul.bf16.gmra.mxu0 %v4786
      %v4987 = vpop.f32.mrf.mxu0
      %v4988 = vadd.f32 0.0, %v4987
      %v4989 = vpop.f32.mrf.mxu0
      %v4990 = vadd.f32 0.0, %v4989
      %4991 = vmatmul.bf16.gmra.mxu0 %v4789
      %v4992 = vpop.f32.mrf.mxu0
      %v4993 = vadd.f32 0.0, %v4992
      %v4994 = vpop.f32.mrf.mxu0
      %v4995 = vadd.f32 0.0, %v4994
      %4996 = vmatmul.bf16.gmra.mxu0 %v4792
      %v4997 = vpop.f32.mrf.mxu0
      %v4998 = vadd.f32 0.0, %v4997
      %v4999 = vpop.f32.mrf.mxu0
      %v5000 = vadd.f32 0.0, %v4999
      %5001 = vmatmul.bf16.gmra.mxu0 %v4795
      %v5002 = vpop.f32.mrf.mxu0
      %v5003 = vadd.f32 0.0, %v5002
      %v5004 = vpop.f32.mrf.mxu0
      %v5005 = vadd.f32 0.0, %v5004
      %5006 = vmatmul.bf16.gmra.mxu0 %v4798
      %v5007 = vpop.f32.mrf.mxu0
      %v5008 = vadd.f32 0.0, %v5007
      %v5009 = vpop.f32.mrf.mxu0
      %v5010 = vadd.f32 0.0, %v5009
      %5011 = vmatmul.bf16.gmra.mxu0 %v4801
      %v5012 = vpop.f32.mrf.mxu0
      %v5013 = vadd.f32 0.0, %v5012
      %v5014 = vpop.f32.mrf.mxu0
      %v5015 = vadd.f32 0.0, %v5014
      %5016 = vmatmul.bf16.gmra.mxu0 %v4804
      %v5017 = vpop.f32.mrf.mxu0
      %v5018 = vadd.f32 0.0, %v5017
      %v5019 = vpop.f32.mrf.mxu0
      %v5020 = vadd.f32 0.0, %v5019
      %5021 = vmatmul.bf16.gmra.mxu0 %v4807
      %v5022 = vpop.f32.mrf.mxu0
      %v5023 = vadd.f32 0.0, %v5022
      %v5024 = vpop.f32.mrf.mxu0
      %v5025 = vadd.f32 0.0, %v5024
      %5026 = vmatmul.bf16.gmra.mxu0 %v4810
      %v5027 = vpop.f32.mrf.mxu0
      %v5028 = vadd.f32 0.0, %v5027
      %v5029 = vpop.f32.mrf.mxu0
      %5030 = vdwg.mxu0
      %5031 = vmatpush.bf16.msra.mxu0 %v4926
      %5032 = vmatpush.bf16.msra.mxu0 %v4925
      %5033 = vmatpush.bf16.msra.mxu0 %v4924
      %5034 = vmatpush.bf16.msra.mxu0 %v4923
      %5035 = vmatpush.bf16.msra.mxu0 %v4922
      %5036 = vmatpush.bf16.msra.mxu0 %v4921
      %5037 = vmatpush.bf16.msra.mxu0 %v4920
      %5038 = vmatpush.bf16.msra.mxu0 %v4919
      %5039 = vmatmul.bf16.gmra.mxu0 %v4787
      %v5040 = vpop.f32.mrf.mxu0
      %v5041 = vadd.f32 %v4988, %v5040
      %v5042 = vpop.f32.mrf.mxu0
      %v5043 = vadd.f32 %v4990, %v5042
      %5044 = vmatmul.bf16.gmra.mxu0 %v4790
      %v5045 = vpop.f32.mrf.mxu0
      %v5046 = vadd.f32 %v4993, %v5045
      %v5047 = vpop.f32.mrf.mxu0
      %v5048 = vadd.f32 %v4995, %v5047
      %5049 = vmatmul.bf16.gmra.mxu0 %v4793
      %v5050 = vpop.f32.mrf.mxu0
      %v5051 = vadd.f32 %v4998, %v5050
      %v5052 = vpop.f32.mrf.mxu0
      %v5053 = vadd.f32 %v5000, %v5052
      %5054 = vmatmul.bf16.gmra.mxu0 %v4796
      %v5055 = vpop.f32.mrf.mxu0
      %v5056 = vadd.f32 %v5003, %v5055
      %v5057 = vpop.f32.mrf.mxu0
      %v5058 = vadd.f32 %v5005, %v5057
      %5059 = vmatmul.bf16.gmra.mxu0 %v4799
      %v5060 = vpop.f32.mrf.mxu0
      %v5061 = vadd.f32 %v5008, %v5060
      %v5062 = vpop.f32.mrf.mxu0
      %v5063 = vadd.f32 %v5010, %v5062
      %5064 = vmatmul.bf16.gmra.mxu0 %v4802
      %v5065 = vpop.f32.mrf.mxu0
      %v5066 = vadd.f32 %v5013, %v5065
      %v5067 = vpop.f32.mrf.mxu0
      %v5068 = vadd.f32 %v5015, %v5067
      %5069 = vmatmul.bf16.gmra.mxu0 %v4805
      %v5070 = vpop.f32.mrf.mxu0
      %v5071 = vadd.f32 %v5018, %v5070
      %v5072 = vpop.f32.mrf.mxu0
      %v5073 = vadd.f32 %v5020, %v5072
      %5074 = vmatmul.bf16.gmra.mxu0 %v4808
      %v5075 = vpop.f32.mrf.mxu0
      %v5076 = vadd.f32 %v5023, %v5075
      %v5077 = vpop.f32.mrf.mxu0
      %v5078 = vadd.f32 %v5025, %v5077
      %5079 = vmatmul.bf16.gmra.mxu0 %v4811
      %v5080 = vpop.f32.mrf.mxu0
      %v5081 = vadd.f32 %v5028, %v5080
      %v5082 = vpop.f32.mrf.mxu0
      %5083 = vdwg.mxu0
      %5084 = vmatpush.bf16.msra.mxu0 0
      %5085 = vmatpush.bf16.msra.mxu0 0
      %5086 = vmatpush.bf16.msra.mxu0 0
      %5087 = vmatpush.bf16.msra.mxu0 0
      %5088 = vmatpush.bf16.msra.mxu0 %v4930
      %5089 = vmatpush.bf16.msra.mxu0 %v4929
      %5090 = vmatpush.bf16.msra.mxu0 %v4928
      %5091 = vmatpush.bf16.msra.mxu0 %v4927
      %5092 = vmatmul.bf16.gmra.mxu0 %v4952
      %v5093 = vpop.f32.mrf.mxu0
      %v5094 = vadd.f32 %v5041, %v5093
      %v5095 = vpop.f32.mrf.mxu0
      %v5096 = vadd.f32 %v5043, %v5095
      %5097 = vmatmul.bf16.gmra.mxu0 %v4955
      %v5098 = vpop.f32.mrf.mxu0
      %v5099 = vadd.f32 %v5046, %v5098
      %v5100 = vpop.f32.mrf.mxu0
      %v5101 = vadd.f32 %v5048, %v5100
      %5102 = vmatmul.bf16.gmra.mxu0 %v4958
      %v5103 = vpop.f32.mrf.mxu0
      %v5104 = vadd.f32 %v5051, %v5103
      %v5105 = vpop.f32.mrf.mxu0
      %v5106 = vadd.f32 %v5053, %v5105
      %5107 = vmatmul.bf16.gmra.mxu0 %v4961
      %v5108 = vpop.f32.mrf.mxu0
      %v5109 = vadd.f32 %v5056, %v5108
      %v5110 = vpop.f32.mrf.mxu0
      %v5111 = vadd.f32 %v5058, %v5110
      %5112 = vmatmul.bf16.gmra.mxu0 %v4964
      %v5113 = vpop.f32.mrf.mxu0
      %v5114 = vadd.f32 %v5061, %v5113
      %v5115 = vpop.f32.mrf.mxu0
      %v5116 = vadd.f32 %v5063, %v5115
      %5117 = vmatmul.bf16.gmra.mxu0 %v4967
      %v5118 = vpop.f32.mrf.mxu0
      %v5119 = vadd.f32 %v5066, %v5118
      %v5120 = vpop.f32.mrf.mxu0
      %v5121 = vadd.f32 %v5068, %v5120
      %5122 = vmatmul.bf16.gmra.mxu0 %v4970
      %v5123 = vpop.f32.mrf.mxu0
      %v5124 = vadd.f32 %v5071, %v5123
      %v5125 = vpop.f32.mrf.mxu0
      %v5126 = vadd.f32 %v5073, %v5125
      %5127 = vmatmul.bf16.gmra.mxu0 %v4973
      %v5128 = vpop.f32.mrf.mxu0
      %v5129 = vadd.f32 %v5076, %v5128
      %v5130 = vpop.f32.mrf.mxu0
      %v5131 = vadd.f32 %v5078, %v5130
      %5132 = vmatmul.bf16.gmra.mxu0 %v4976
      %v5133 = vpop.f32.mrf.mxu0
      %v5134 = vadd.f32 %v5081, %v5133
      %v5135 = vpop.f32.mrf.mxu0
      %5136 = vdwg.mxu0
      %v5137 = vadd.f32 %v4609, %v5094
      %v5138 = vadd.f32 %v4610, %v5096
      %v5139 = vadd.f32 %v4611, %v5099
      %v5140 = vadd.f32 %v4612, %v5101
      %v5141 = vadd.f32 %v4613, %v5104
      %v5142 = vadd.f32 %v4614, %v5106
      %v5143 = vadd.f32 %v4615, %v5109
      %v5144 = vadd.f32 %v4616, %v5111
      %v5145 = vadd.f32 %v4617, %v5114
      %v5146 = vadd.f32 %v4618, %v5116
      %v5147 = vadd.f32 %v4619, %v5119
      %v5148 = vadd.f32 %v4620, %v5121
      %v5149 = vadd.f32 %v4621, %v5124
      %v5150 = vadd.f32 %v4622, %v5126
      %v5151 = vadd.f32 %v4623, %v5129
      %v5152 = vadd.f32 %v4624, %v5131
      %v5153 = vadd.f32 %v4625, %v5134
      %5154 = vst.msk [vmem:[#allocation5] sm:$0xff] %vm958, %v5137
      %5155 = vst.msk [vmem:[#allocation5 + $0x8] sm:$0xff] %vm958, %v5138
      %5156 = vst.msk [vmem:[#allocation5 + $0x10] sm:$0xff] %vm958, %v5139
      %5157 = vst.msk [vmem:[#allocation5 + $0x18] sm:$0xff] %vm958, %v5140
      %5158 = vst.msk [vmem:[#allocation5 + $0x20] sm:$0xff] %vm958, %v5141
      %5159 = vst.msk [vmem:[#allocation5 + $0x28] sm:$0xff] %vm958, %v5142
      %5160 = vst.msk [vmem:[#allocation5 + $0x30] sm:$0xff] %vm958, %v5143
      %5161 = vst.msk [vmem:[#allocation5 + $0x38] sm:$0xff] %vm958, %v5144
      %5162 = vst.msk [vmem:[#allocation5 + $0x40] sm:$0xff] %vm958, %v5145
      %5163 = vst.msk [vmem:[#allocation5 + $0x48] sm:$0xff] %vm958, %v5146
      %5164 = vst.msk [vmem:[#allocation5 + $0x50] sm:$0xff] %vm958, %v5147
      %5165 = vst.msk [vmem:[#allocation5 + $0x58] sm:$0xff] %vm958, %v5148
      %5166 = vst.msk [vmem:[#allocation5 + $0x60] sm:$0xff] %vm958, %v5149
      %5167 = vst.msk [vmem:[#allocation5 + $0x68] sm:$0xff] %vm958, %v5150
      %5168 = vst.msk [vmem:[#allocation5 + $0x70] sm:$0xff] %vm958, %v5151
      %5169 = vst.msk [vmem:[#allocation5 + $0x78] sm:$0xff] %vm958, %v5152
      %5170 = vst.msk [vmem:[#allocation5 + $0x80] sm:$0xff] %vm958, %v5153
      %v5171 = vld [vmem:[#allocation5] sm:$0xff]
      %v5172 = vld [vmem:[#allocation5 + $0x8] sm:$0xff]
      %v5173 = vld [vmem:[#allocation5 + $0x10] sm:$0xff]
      %v5174 = vld [vmem:[#allocation5 + $0x18] sm:$0xff]
      %v5175 = vld [vmem:[#allocation5 + $0x20] sm:$0xff]
      %v5176 = vld [vmem:[#allocation5 + $0x28] sm:$0xff]
      %v5177 = vld [vmem:[#allocation5 + $0x30] sm:$0xff]
      %v5178 = vld [vmem:[#allocation5 + $0x38] sm:$0xff]
      %v5179 = vld [vmem:[#allocation5 + $0x40] sm:$0xff]
      %v5180 = vld [vmem:[#allocation5 + $0x48] sm:$0xff]
      %v5181 = vld [vmem:[#allocation5 + $0x50] sm:$0xff]
      %v5182 = vld [vmem:[#allocation5 + $0x58] sm:$0xff]
      %v5183 = vld [vmem:[#allocation5 + $0x60] sm:$0xff]
      %v5184 = vld [vmem:[#allocation5 + $0x68] sm:$0xff]
      %v5185 = vld [vmem:[#allocation5 + $0x70] sm:$0xff]
      %v5186 = vld [vmem:[#allocation5 + $0x78] sm:$0x3]
      %v5187 = vld [vmem:[#allocation5 + $0xe] sm:$0xff]
      %v5188 = vld [vmem:[#allocation5 + $0x16] sm:$0xff]
      %v5189 = vld [vmem:[#allocation5 + $0x1e] sm:$0xff]
      %v5190 = vld [vmem:[#allocation5 + $0x26] sm:$0xff]
      %v5191 = vld [vmem:[#allocation5 + $0x2e] sm:$0xff]
      %v5192 = vld [vmem:[#allocation5 + $0x36] sm:$0xff]
      %v5193 = vld [vmem:[#allocation5 + $0x3e] sm:$0xff]
      %v5194 = vld [vmem:[#allocation5 + $0x46] sm:$0xff]
      %v5195 = vld [vmem:[#allocation5 + $0x4e] sm:$0xff]
      %v5196 = vld [vmem:[#allocation5 + $0x56] sm:$0xff]
      %v5197 = vld [vmem:[#allocation5 + $0x5e] sm:$0xff]
      %v5198 = vld [vmem:[#allocation5 + $0x66] sm:$0xff]
      %v5199 = vld [vmem:[#allocation5 + $0x6e] sm:$0xff]
      %v5200 = vld [vmem:[#allocation5 + $0x76] sm:$0xff]
      %v5201 = vld [vmem:[#allocation5 + $0x7e] sm:$0xff]
      %v5202 = vld [vmem:[#allocation5 + $0x86] sm:$0x3]
      %v5203 = vmax.f32 %v5171, %v5187
      %v5204 = vmax.f32 %v5172, %v5188
      %v5205 = vmax.f32 %v5173, %v5189
      %v5206 = vmax.f32 %v5174, %v5190
      %v5207 = vmax.f32 %v5175, %v5191
      %v5208 = vmax.f32 %v5176, %v5192
      %v5209 = vmax.f32 %v5177, %v5193
      %v5210 = vmax.f32 %v5178, %v5194
      %v5211 = vmax.f32 %v5179, %v5195
      %v5212 = vmax.f32 %v5180, %v5196
      %v5213 = vmax.f32 %v5181, %v5197
      %v5214 = vmax.f32 %v5182, %v5198
      %v5215 = vmax.f32 %v5183, %v5199
      %v5216 = vmax.f32 %v5184, %v5200
      %v5217 = vmax.f32 %v5185, %v5201
      %v5218 = vmax.f32 %v5186, %v5202
      %vm5235 = vcmask 1046528
      %v5236 = vrot.slane %v5203, 1
      %v5237 = vrot.slane %v5204, 1
      %v5238 = vsel %vm5235, %v5236, %v5237
      %v5239 = vrot.slane %v5205, 1
      %v5240 = vsel %vm5235, %v5237, %v5239
      %v5241 = vrot.slane %v5206, 1
      %v5242 = vsel %vm5235, %v5239, %v5241
      %v5243 = vrot.slane %v5207, 1
      %v5244 = vsel %vm5235, %v5241, %v5243
      %v5245 = vrot.slane %v5208, 1
      %v5246 = vsel %vm5235, %v5243, %v5245
      %v5247 = vrot.slane %v5209, 1
      %v5248 = vsel %vm5235, %v5245, %v5247
      %v5249 = vrot.slane %v5210, 1
      %v5250 = vsel %vm5235, %v5247, %v5249
      %v5251 = vrot.slane %v5211, 1
      %v5252 = vsel %vm5235, %v5249, %v5251
      %v5253 = vrot.slane %v5212, 1
      %v5254 = vsel %vm5235, %v5251, %v5253
      %v5255 = vrot.slane %v5213, 1
      %v5256 = vsel %vm5235, %v5253, %v5255
      %v5257 = vrot.slane %v5214, 1
      %v5258 = vsel %vm5235, %v5255, %v5257
      %v5259 = vrot.slane %v5215, 1
      %v5260 = vsel %vm5235, %v5257, %v5259
      %v5261 = vrot.slane %v5216, 1
      %v5262 = vsel %vm5235, %v5259, %v5261
      %v5263 = vrot.slane %v5217, 1
      %v5264 = vsel %vm5235, %v5261, %v5263
      %v5265 = vrot.slane %v5218, 1
      %v5266 = vsel %vm5235, %v5263, %v5265
      %v5283 = vmax.f32 %v5203, %v5238
      %v5284 = vmax.f32 %v5204, %v5240
      %v5285 = vmax.f32 %v5205, %v5242
      %v5286 = vmax.f32 %v5206, %v5244
      %v5287 = vmax.f32 %v5207, %v5246
      %v5288 = vmax.f32 %v5208, %v5248
      %v5289 = vmax.f32 %v5209, %v5250
      %v5290 = vmax.f32 %v5210, %v5252
      %v5291 = vmax.f32 %v5211, %v5254
      %v5292 = vmax.f32 %v5212, %v5256
      %v5293 = vmax.f32 %v5213, %v5258
      %v5294 = vmax.f32 %v5214, %v5260
      %v5295 = vmax.f32 %v5215, %v5262
      %v5296 = vmax.f32 %v5216, %v5264
      %v5297 = vmax.f32 %v5217, %v5266
      %v5298 = vmax.f32 %v5218, %v5265
      %v5299 = vld [vmem:[%s4] sm:$0x1]
      %v5301 = vperm.slane %v5299, 0
      %v5303 = vadd.f32 %v5283, %v5301
      %v5304 = vadd.f32 %v5284, %v5301
      %v5305 = vadd.f32 %v5285, %v5301
      %v5306 = vadd.f32 %v5286, %v5301
      %v5307 = vadd.f32 %v5287, %v5301
      %v5308 = vadd.f32 %v5288, %v5301
      %v5309 = vadd.f32 %v5289, %v5301
      %v5310 = vadd.f32 %v5290, %v5301
      %v5311 = vadd.f32 %v5291, %v5301
      %v5312 = vadd.f32 %v5292, %v5301
      %v5313 = vadd.f32 %v5293, %v5301
      %v5314 = vadd.f32 %v5294, %v5301
      %v5315 = vadd.f32 %v5295, %v5301
      %v5316 = vadd.f32 %v5296, %v5301
      %v5317 = vadd.f32 %v5297, %v5301
      %v5318 = vadd.f32 %v5298, %v5301
      %v5319 = vmax.f32 %v5303, 0.0
      %v5320 = vmax.f32 %v5304, 0.0
      %v5321 = vmax.f32 %v5305, 0.0
      %v5322 = vmax.f32 %v5306, 0.0
      %v5323 = vmax.f32 %v5307, 0.0
      %v5324 = vmax.f32 %v5308, 0.0
      %v5325 = vmax.f32 %v5309, 0.0
      %v5326 = vmax.f32 %v5310, 0.0
      %v5327 = vmax.f32 %v5311, 0.0
      %v5328 = vmax.f32 %v5312, 0.0
      %v5329 = vmax.f32 %v5313, 0.0
      %v5330 = vmax.f32 %v5314, 0.0
      %v5331 = vmax.f32 %v5315, 0.0
      %v5332 = vmax.f32 %v5316, 0.0
      %v5333 = vmax.f32 %v5317, 0.0
      %v5334 = vmax.f32 %v5318, 0.0
      %v5335 = vpack.c.bf16 %v5319, %v5319
      %v5336 = vpack.c.bf16 %v5320, %v5320
      %v5337 = vpack.c.bf16 %v5321, %v5321
      %v5338 = vpack.c.bf16 %v5322, %v5322
      %v5339 = vpack.c.bf16 %v5323, %v5323
      %v5340 = vpack.c.bf16 %v5324, %v5324
      %v5341 = vpack.c.bf16 %v5325, %v5325
      %v5342 = vpack.c.bf16 %v5326, %v5326
      %v5343 = vpack.c.bf16 %v5327, %v5327
      %v5344 = vpack.c.bf16 %v5328, %v5328
      %v5345 = vpack.c.bf16 %v5329, %v5329
      %v5346 = vpack.c.bf16 %v5330, %v5330
      %v5347 = vpack.c.bf16 %v5331, %v5331
      %v5348 = vpack.c.bf16 %v5332, %v5332
      %v5349 = vpack.c.bf16 %v5333, %v5333
      %v5350 = vpack.c.bf16 %v5334, %v5334
      %5351 = vst.msk [vmem:[%s224] sm:$0xf] %vm1313, %v5335
      %5352 = vst.msk [vmem:[%s224 + $0x4] sm:$0xf] %vm1313, %v5336
      %5353 = vst.msk [vmem:[%s224 + $0x8] sm:$0xf] %vm1313, %v5337
      %5354 = vst.msk [vmem:[%s224 + $0xc] sm:$0xf] %vm1313, %v5338
      %5355 = vst.msk [vmem:[%s224 + $0x10] sm:$0xf] %vm1313, %v5339
      %5356 = vst.msk [vmem:[%s224 + $0x14] sm:$0xf] %vm1313, %v5340
      %5357 = vst.msk [vmem:[%s224 + $0x18] sm:$0xf] %vm1313, %v5341
      %5358 = vst.msk [vmem:[%s224 + $0x1c] sm:$0xf] %vm1313, %v5342
      %5359 = vst.msk [vmem:[%s224 + $0x20] sm:$0xf] %vm1313, %v5343
      %5360 = vst.msk [vmem:[%s224 + $0x24] sm:$0xf] %vm1313, %v5344
      %5361 = vst.msk [vmem:[%s224 + $0x28] sm:$0xf] %vm1313, %v5345
      %5362 = vst.msk [vmem:[%s224 + $0x2c] sm:$0xf] %vm1313, %v5346
      %5363 = vst.msk [vmem:[%s224 + $0x30] sm:$0xf] %vm1313, %v5347
      %5364 = vst.msk [vmem:[%s224 + $0x34] sm:$0xf] %vm1313, %v5348
      %5365 = vst.msk [vmem:[%s224 + $0x38] sm:$0xf] %vm1313, %v5349
      %vm5366 = vcmask 516096
      %vm5367 = vsmask.f32 256
      %vm5368 = vmand %vm5366, %vm5367
      %v5369 = vld [vmem:[%s224 + $0x3c] sm:$0x1]
      %v5370 = vsel %vm5368, %v5350, %v5369
      %5371 = vst [vmem:[%s224 + $0x3c] sm:$0x1] %v5370
      %p5372 = scmp.lt.s32.totalorder %s16, 1
      %s5373 = scalar_select %p5372, %s16, 1
      %s5374 = smul.addr %s5373, 16
      %s5375 = smul.addr %s5374, 4
      %s5376 = scalar_lea.vmem %s5, %s5375
      // Predicated region
      $region41: #{_forward.2} parent=39 // pred_check
        %p5377 = pneg %p144
      $region42: #{_forward.2} parent=39 // pred_check_branch
        %5379 = sbr.rel (%p5377) target = $region44
      $region43: #{_forward.2} parent=39 // pred_region
        _
      $region44: #{_forward.2} parent=39 // pred_fallthru
        _
    $region40: #{_forward.2} parent=5 // pred_fallthru
      _
    %p5380 = scmp.le.s32.totalorder 2, %s11
    // Predicated region
    $region45: #{_forward.2} parent=5 // pred_check
      %p5381 = pneg %p5380
    $region46: #{_forward.2} parent=5 // pred_check_branch
      %5383 = sbr.rel (%p5381) target = $region48
    $region47: #{_forward.2} parent=5 // pred_region
      %s5384 = ssub.s32 %s11, 2
      // Predicated region
      $region49: #{_forward.2} parent=47 // pred_check
        %p5385 = pneg %p150
      $region50: #{_forward.2} parent=47 // pred_check_branch
        %5387 = sbr.rel (%p5385) target = $region52
      $region51: #{_forward.2} parent=47 // pred_region
        %p5388 = scmp.lt.s32.totalorder %s17, 1
        %s5389 = scalar_select %p5388, %s17, 1
        %s5390 = smul.addr %s5389, 16
        %s5391 = smul.addr %s5390, 4
        %s5392 = scalar_lea.vmem %s5, %s5391
      $region52: #{_forward.2} parent=47 // pred_fallthru
        _
    $region48: #{_forward.2} parent=5 // pred_fallthru
      _
  $region6: #{_forward.2} parent=0 // loop_footer
    %s15 = sadd.s32 1, %s11
  $region7: #{_forward.2} parent=0 // loop_footer_branch
    %10 = sbr.rel target = $region3
  $region8: #{_forward.2} parent=0 // loop_exit
    _

</llo_original>
